<compile_context>
chip_gen: v7x
topology: tpu7x:2x2x1
jax: 0.10.0
libtpu: 0.0.40
codegen_flags: <defaults>
</compile_context>

<pallas_src>
import functools

import numpy as np
import jax
import jax.numpy as jnp
from jax import lax
from jax.experimental import pallas as pl
from jax.experimental.pallas import tpu as pltpu


# --------------------------------------------------------------------------------------
# Host-side geometry (mirrors the PyTorch `mesh` helper exactly, including cuboid order).
# --------------------------------------------------------------------------------------
def mesh(image_size, mesh_size):
    img_z, img_x, img_y = image_size
    cub_z, cub_x, cub_y = mesh_size
    x_num = int(img_x / cub_x)
    y_num = int(img_y / cub_y)
    z_num = int(img_z / cub_z)
    x_coords = np.linspace(0, img_x - cub_x, x_num).astype(int)
    y_coords = np.linspace(0, img_y - cub_y, y_num).astype(int)
    z_coords = np.linspace(0, img_z - cub_z, z_num).astype(int)
    return [(z, x, y) for x in x_coords for y in y_coords for z in z_coords]


def _round_up(n, m):
    return ((n + m - 1) // m) * m


def _largest_lane_tile(total, max_tile):
    """Largest multiple of 128 that divides `total` (itself a multiple of 128) and <= max_tile."""
    nb = total // 128
    best = 1
    for d in range(1, nb + 1):
        if nb % d == 0 and d * 128 <= max_tile:
            best = d
    return best * 128


def _largest_group(total, max_group):
    """Largest divisor of `total` that is <= max_group."""
    best = 1
    for d in range(1, total + 1):
        if total % d == 0 and d <= max_group:
            best = d
    return best


# --------------------------------------------------------------------------------------
# One-time parameter preparation (hoisted out of the per-call forward):
# pad lane dims to x128 / rows to x8, cast MXU operands to bf16.
# --------------------------------------------------------------------------------------
def prepare_region_prop_params(w_prop, b_prop, w1, b1, pos_enc, w_agg, b_agg,
                               *, cub_size, num_cubs):
    D, T = w_prop.shape
    cub_dim = cub_size[0] * cub_size[1] * cub_size[2]
    E = w1.shape[1]
    C = w_agg.shape[1]
    K = num_cubs

    DP = _round_up(D, 128)
    TP = _round_up(T, 128)
    DC = _round_up(cub_dim, 128)
    EP = _round_up(E, 128)
    CP = _round_up(C, 128)

    f32, bf16 = jnp.float32, jnp.bfloat16
    return dict(
        w_prop=jnp.zeros((DP, TP), bf16).at[:D, :T].set(jnp.asarray(w_prop, bf16)),
        b_prop=jnp.zeros((1, TP), f32).at[:, :T].set(jnp.asarray(b_prop, f32).reshape(1, -1)),
        w1=jnp.zeros((DC, EP), bf16).at[:cub_dim, :E].set(jnp.asarray(w1, bf16)),
        b1=jnp.zeros((1, EP), f32).at[:, :E].set(jnp.asarray(b1, f32).reshape(1, -1)),
        pos_enc=jnp.zeros((T, EP), f32).at[:, :E].set(jnp.asarray(pos_enc, f32).reshape(T, E)),
        w_agg=jnp.zeros((K, EP, CP), bf16).at[:, :E, :C].set(
            jnp.asarray(w_agg, bf16).reshape(K, E, C)),
        # padded class columns get a large negative bias so they vanish exactly under softmax
        # (kept in f32 on purpose).
        b_agg=jnp.full((1, CP), -1e30, f32).at[:, :C].set(jnp.asarray(b_agg, f32).reshape(1, -1)),
    )


# --------------------------------------------------------------------------------------
# Kernel A: proposal head  sigmoid(x @ Wp + bp)
# grid = (output-column tiles [parallel], reduction tiles [arbitrary]); the resident output
# block is the f32 accumulator (no scratch), bf16 MXU inputs.
# --------------------------------------------------------------------------------------
def _prop_kernel(x_ref, w_ref, b_ref, o_ref):
    k = pl.program_id(1)

    @pl.when(k == 0)
    def _init():
        o_ref[...] = jnp.zeros_like(o_ref)

    o_ref[...] += jnp.dot(x_ref[...], w_ref[...], preferred_element_type=jnp.float32)

    @pl.when(k == pl.num_programs(1) - 1)
    def _fin():
        o_ref[...] = jax.nn.sigmoid(o_ref[...] + b_ref[...])


def prop_sigmoid(x_pad, w_pad, b_pad, *, tk, tn):
    bp, dp = x_pad.shape
    tp = w_pad.shape[1]
    n_j = tp // tn
    n_k = dp // tk

    # Triple-buffer the streamed weight tile only when the reduction is long enough to benefit.
    if n_k >= 3:
        w_spec = pl.BlockSpec((tk, tn), lambda j, k: (k, j), pipeline_mode=pl.Buffered(3))
    else:
        w_spec = pl.BlockSpec((tk, tn), lambda j, k: (k, j))

    flops = 2 * bp * dp * tp
    bytes_acc = x_pad.size * 2 + w_pad.size * 2 + b_pad.size * 4 + bp * tp * 4
    return pl.pallas_call(
        _prop_kernel,
        out_shape=jax.ShapeDtypeStruct((bp, tp), jnp.float32),
        grid_spec=pltpu.PrefetchScalarGridSpec(
            num_scalar_prefetch=0,
            grid=(n_j, n_k),
            in_specs=[pl.BlockSpec((bp, tk), lambda j, k: (0, k)),   # activations tile
                      w_spec,                                        # weight tile (streams)
                      pl.BlockSpec((1, tn), lambda j, k: (0, j))],   # bias tile
            out_specs=pl.BlockSpec((bp, tn), lambda j, k: (0, j))),  # resident accumulator
        compiler_params=pltpu.CompilerParams(
            dimension_semantics=("parallel", "arbitrary"),           # j parallel, k reduction
            vmem_limit_bytes=32 * 1024 * 1024),
        cost_estimate=pl.CostEstimate(flops=flops, transcendentals=bp * tp,
                                      bytes_accessed=bytes_acc),
    )(x_pad, w_pad, b_pad)


# --------------------------------------------------------------------------------------
# Kernel B: fused cuboid classifier MLP + pos-enc add + final aggregation + outer softmax.
# Each grid step processes a KB-cuboid block: the W1 matmul runs on the full (KB*BP, DC) row
# slab (good MXU row occupancy) and the aggregation accumulates into the resident output.
# The dead per-cuboid class-logits path (W2/b2) is removed: forward() discards cub_class.
# --------------------------------------------------------------------------------------
def _cls_agg_kernel(x_ref, w1_ref, b1_ref, pos_ref, wagg_ref, bagg_ref, probs_ref, *, kb, bp):
    g = pl.program_id(0)

    # classifier hidden layer for this KB-block of cuboids (bf16 MXU, f32 accumulation)
    h = jnp.dot(x_ref[...], w1_ref[...], preferred_element_type=jnp.float32) + b1_ref[...]
    h = jnp.maximum(h, 0.0)                                  # latent features

    # latent features + positional embedding of the selected cuboids
    fp16 = (h + pos_ref[...]).astype(jnp.bfloat16)

    # blocked final_agg over this KB-block:  agg[b] = sum_kk fp[kk*BP + b, :] @ W_agg[kk]
    # (unrolled static loop over kb == einsum('kbe,kec->bc'); kb is a trace-time constant)
    agg = jnp.dot(fp16[0:bp, :], wagg_ref[0], preferred_element_type=jnp.float32)
    for kk in range(1, kb):
        agg = agg + jnp.dot(fp16[kk * bp:(kk + 1) * bp, :], wagg_ref[kk],
                            preferred_element_type=jnp.float32)

    @pl.when(g == 0)
    def _init():
        probs_ref[...] = jnp.zeros_like(probs_ref)

    probs_ref[...] += agg

    @pl.when(g == pl.num_programs(0) - 1)
    def _fin():
        logits = probs_ref[...] + bagg_ref[...]              # padded class cols carry -1e30 bias
        m = jnp.max(logits, axis=-1, keepdims=True)
        e = jnp.exp(logits - m)
        # exact divide: the tile is only (BP, CP), so cost is negligible and rows sum to 1.
        probs_ref[...] = e / jnp.sum(e, axis=-1, keepdims=True)


def classifier_agg_softmax(xk, w1_p, b1_p, pos_p, wagg_p, bagg_p, *, num_cubs, kb, bp):
    dc = xk.shape[1]
    ep = w1_p.shape[1]
    cp = bagg_p.shape[1]
    n_g = num_cubs // kb
    rows = kb * bp

    flops = 2 * num_cubs * bp * (dc * ep + ep * cp)
    bytes_acc = (xk.size * 2 + w1_p.size * 2 + b1_p.size * 4 + pos_p.size * 4 +
                 wagg_p.size * 2 + bagg_p.size * 4 + bp * cp * 4)
    kern = functools.partial(_cls_agg_kernel, kb=kb, bp=bp)
    # TODO(synk): on v7x (2 TensorCores) split the KB-blocks into two halves with partial
    # accumulators combined in a trivial finalize so both cores are busy; no-op on v5e/v6e.
    return pl.pallas_call(
        kern,
        out_shape=jax.ShapeDtypeStruct((bp, cp), jnp.float32),
        grid_spec=pltpu.PrefetchScalarGridSpec(
            num_scalar_prefetch=0,
            grid=(n_g,),
            in_specs=[pl.BlockSpec((rows, dc), lambda g: (g, 0)),      # cuboid rows, KB-block
                      pl.BlockSpec((dc, ep), lambda g: (0, 0)),        # W1 (resident)
                      pl.BlockSpec((1, ep), lambda g: (0, 0)),         # b1
                      pl.BlockSpec((rows, ep), lambda g: (g, 0)),      # pos-enc rows, KB-block
                      pl.BlockSpec((kb, ep, cp), lambda g: (g, 0, 0)),  # W_agg KB-block (bf16)
                      pl.BlockSpec((1, cp), lambda g: (0, 0))],        # b_agg (f32)
            out_specs=pl.BlockSpec((bp, cp), lambda g: (0, 0))),       # resident accumulator
        compiler_params=pltpu.CompilerParams(
            dimension_semantics=("arbitrary",),                        # g is a reduction axis
            vmem_limit_bytes=32 * 1024 * 1024),
        cost_estimate=pl.CostEstimate(flops=flops, transcendentals=bp * cp,
                                      bytes_accessed=bytes_acc),
    )(xk, w1_p, b1_p, pos_p, wagg_p, bagg_p)


# --------------------------------------------------------------------------------------
# Full forward pass (approach == 'pos_enc_vec', i.e. RegionPropPipline.forward)
# --------------------------------------------------------------------------------------
@functools.partial(jax.jit, static_argnames=("cub_size", "num_cubs", "num_classes"))
def region_prop_forward(x, cuboid_coords, params, *, cub_size, num_cubs, num_classes):
    B = x.shape[0]
    D = int(np.prod(x.shape[1:]))             # channel * Z * X * Y
    T = cuboid_coords.shape[0]                # total cuboids
    K = num_cubs
    C = num_classes
    cz, cx, cy = cub_size
    cub_dim = cz * cx * cy

    DP = params["w_prop"].shape[0]            # round_up(D, 128)
    TP = params["w_prop"].shape[1]
    DC = params["w1"].shape[0]
    EP = params["w1"].shape[1]
    CP = params["b_agg"].shape[1]
    BP = _round_up(B, 16)                     # bf16 sublane packing

    f32, bf16 = jnp.float32, jnp.bfloat16

    # ---- tile selection for the prop matmul ----
    TN = _largest_lane_tile(TP, 512)                          # output-column ("parallel") tile
    # keep each streamed bf16 weight buffer around <=4 MiB so 2-3 buffers fit on all generations
    tk_budget = max(128, (4 * 1024 * 1024) // (TN * 2))
    TK = _largest_lane_tile(DP, min(8192, tk_budget))         # TK divides DP -> no wasted pad DMA

    # ---- 1) prop model + sigmoid (Pallas, reduction-tiled, bf16 MXU / f32 accum) ----
    x_flat = x.reshape(B, D).astype(bf16)
    x_pad = jnp.zeros((BP, DP), bf16).at[:B, :D].set(x_flat)
    prop_pad = prop_sigmoid(x_pad, params["w_prop"], params["b_prop"], tk=TK, tn=TN)
    prop_cubs = prop_pad[:B, :T]                              # (B, total_cubs)

    # ---- 2) top-k proposals (index selection -- JAX glue, like torch.topk descending) ----
    _top_conf, top_prop = lax.top_k(prop_cubs, K)             # (B, K)
    # TODO(synk): log_cuboid_probably_stats (logger.log_info std/min/max) is logging-only; omitted.

    # ---- 3) cuboid gather: exact-bytes batched dynamic_slice (no B*K volume replication) ----
    # Rows are ordered k-major / batch-minor so the fused kernel can block over k.
    flat_idx = jnp.transpose(top_prop).reshape(-1)            # (K*B,), row r = k*B + b
    coords = jnp.take(cuboid_coords, flat_idx, axis=0)        # (K*B, 3) = (z, x, y)
    batch_ids = jnp.tile(jnp.arange(B, dtype=jnp.int32), K)   # (K*B,)
    vol = x[:, 0]                                             # (B, Z, X, Y)

    def _extract_one(b, c):
        return lax.dynamic_slice(vol, (b, c[0], c[1], c[2]), (1, cz, cx, cy))[0]

    cubs = jax.vmap(_extract_one)(batch_ids, coords)          # (K*B, cz, cx, cy)
    # TODO(synk): at realistic volume sizes fuse this gather into kernel B (scalar-prefetched
    # coords + memory_space=pl.ANY volume + pltpu.make_async_copy double-buffering).

    cub3 = cubs.reshape(K, B, cub_dim).astype(bf16)
    xk = jnp.zeros((K, BP, DC), bf16).at[:, :B, :cub_dim].set(cub3).reshape(K * BP, DC)

    pos_rows = jnp.take(params["pos_enc"], flat_idx, axis=0).reshape(K, B, EP)
    pos_p = jnp.zeros((K, BP, EP), f32).at[:, :B].set(pos_rows).reshape(K * BP, EP)

    # ---- 4-6) fused classifier MLP + pos-enc add + final_agg + outer softmax (Pallas) ----
    # Block KB cuboids per grid step (single step at toy sizes).
    KB = _largest_group(K, max(1, 512 // BP))
    probs_pad = classifier_agg_softmax(xk, params["w1"], params["b1"], pos_p,
                                       params["w_agg"], params["b_agg"],
                                       num_cubs=K, kb=KB, bp=BP)
    # TODO(synk): per-cuboid class logits (cub_class) are computed-then-discarded by the
    # PyTorch forward(); dropped here (re-add as an optional second kernel output for training).

    classification = probs_pad[:B, :C]
    # forward() returns (softmax(agg_classification), top_prop)
    return classification, top_prop


# --------------------------------------------------------------------------------------
if __name__ == "__main__":
    IMG = (16, 16, 16)          # (Z, X, Y)
    CUB = (8, 8, 8)             # cuboid size
    B = 2                       # batch
    EMBED = 32                  # embed_dim
    K = 4                       # num_cubs (top-k)
    NUM_CLASSES = 4

    cuboids = mesh(IMG, CUB)
    TOTAL = len(cuboids)        # total_cuboids = 8
    cuboid_coords = jnp.array(cuboids, dtype=jnp.int32)              # (TOTAL, 3)

    vol_dim = IMG[0] * IMG[1] * IMG[2]        # 4096
    cub_dim = CUB[0] * CUB[1] * CUB[2]        # 512

    key = jax.random.PRNGKey(0)
    (k_x, k_wp, k_bp, k_w1, k_b1, k_pe, k_wa, k_ba) = jax.random.split(key, 8)

    # input volume, NCDHW with C=1
    x = jax.random.normal(k_x, (B, 1) + IMG, dtype=jnp.float32)

    # deterministic synthetic parameters
    w_prop = jax.random.normal(k_wp, (vol_dim, TOTAL), jnp.float32) * 0.02
    b_prop = jax.random.normal(k_bp, (1, TOTAL), jnp.float32) * 0.02
    w1 = jax.random.normal(k_w1, (cub_dim, EMBED), jnp.float32) * 0.05
    b1 = jax.random.normal(k_b1, (1, EMBED), jnp.float32) * 0.05
    pos_enc = jax.random.normal(k_pe, (1, TOTAL, EMBED), jnp.float32)   # nn.Parameter randn
    w_agg = jax.random.normal(k_wa, (K * EMBED, NUM_CLASSES), jnp.float32) * 0.05
    b_agg = jax.random.normal(k_ba, (1, NUM_CLASSES), jnp.float32) * 0.05

    # one-time padded / bf16 parameter preparation (hoisted out of the jitted forward)
    params = prepare_region_prop_params(w_prop, b_prop, w1, b1, pos_enc, w_agg, b_agg,
                                        cub_size=CUB, num_cubs=K)

    classification, top_prop = region_prop_forward(
        x, cuboid_coords, params, cub_size=CUB, num_cubs=K, num_classes=NUM_CLASSES)

    jax.block_until_ready((classification, top_prop))

    assert classification.shape == (B, NUM_CLASSES)
    assert top_prop.shape == (B, K)
    assert bool(jnp.all(jnp.isfinite(classification)))
    # exact-divide softmax: rows sum to 1
    assert bool(jnp.allclose(jnp.sum(classification, axis=-1), 1.0, atol=1e-3))

    print("KERNEL_OK")
</pallas_src>

<mosaic_0001>
module attributes {stable_mosaic.version = 11 : i64} {
  func.func @_prop_kernel(%arg0: i32, %arg1: i32, %arg2: memref<16x4096xbf16, #tpu.memory_space<vmem>>, %arg3: memref<4096x128xbf16, #tpu.memory_space<vmem>>, %arg4: memref<1x128xf32, #tpu.memory_space<vmem>>, %arg5: memref<16x128xf32, #tpu.memory_space<vmem>>) attributes {dimension_semantics = [#tpu.dimension_semantics<parallel>, #tpu.dimension_semantics<arbitrary>], iteration_bounds = array<i64: 1, 1>, scalar_prefetch = 0 : i64, scratch_operands = 0 : i64, tpu.core_type = #tpu.core_type<tc>, window_params = [{transform_indices = @transform_0, window_bounds = array<i64: 16, 4096>}, {transform_indices = @transform_1, window_bounds = array<i64: 4096, 128>}, {transform_indices = @transform_2, window_bounds = array<i64: 1, 128>}, {transform_indices = @transform_3, window_bounds = array<i64: 16, 128>}]} {
    %c0_i32 = arith.constant 0 : i32
    %0 = arith.cmpi eq, %arg1, %c0_i32 : i32
    %1 = arith.extui %0 : i1 to i32
    %c0_i32_0 = arith.constant 0 : i32
    %2 = arith.cmpi ne, %1, %c0_i32_0 : i32
    scf.if %2 {
      %cst_10 = arith.constant 0.000000e+00 : f32
      %12 = vector.broadcast %cst_10 : f32 to vector<16x128xf32>
      %c0_11 = arith.constant 0 : index
      %c0_12 = arith.constant 0 : index
      %13 = vector.load %arg5[%c0_11, %c0_12] : memref<16x128xf32, #tpu.memory_space<vmem>>, vector<16x128xf32>
      tpu.vector_store %arg5[%c0_11, %c0_12], %12 {strides = array<i32>} : memref<16x128xf32, #tpu.memory_space<vmem>>, vector<16x128xf32>,
    } else {
    }
    %c0 = arith.constant 0 : index
    %c0_1 = arith.constant 0 : index
    %3 = vector.load %arg5[%c0, %c0_1] : memref<16x128xf32, #tpu.memory_space<vmem>>, vector<16x128xf32>
    %c0_2 = arith.constant 0 : index
    %c0_3 = arith.constant 0 : index
    %4 = vector.load %arg2[%c0_2, %c0_3] : memref<16x4096xbf16, #tpu.memory_space<vmem>>, vector<16x4096xbf16>
    %c0_4 = arith.constant 0 : index
    %c0_5 = arith.constant 0 : index
    %5 = vector.load %arg3[%c0_4, %c0_5] : memref<4096x128xbf16, #tpu.memory_space<vmem>>, vector<4096x128xbf16>
    %cst = arith.constant dense<0.000000e+00> : vector<16x128xf32>
    %6 = tpu.matmul %4, %5, %cst {dimension_numbers = #tpu.dot_dimension_numbers<[1], [0], [0], [1], [0, 0, 1, 1], [], []>} : vector<16x4096xbf16>, vector<4096x128xbf16>, vector<16x128xf32> -> vector<16x128xf32>
    %7 = arith.addf %3, %6 : vector<16x128xf32>
    %c0_6 = arith.constant 0 : index
    %c0_7 = arith.constant 0 : index
    %8 = vector.load %arg5[%c0_6, %c0_7] : memref<16x128xf32, #tpu.memory_space<vmem>>, vector<16x128xf32>
    tpu.vector_store %arg5[%c0_6, %c0_7], %7 {strides = array<i32>} : memref<16x128xf32, #tpu.memory_space<vmem>>, vector<16x128xf32>,
    %c0_i32_8 = arith.constant 0 : i32
    %9 = arith.cmpi eq, %arg1, %c0_i32_8 : i32
    %10 = arith.extui %9 : i1 to i32
    %c0_i32_9 = arith.constant 0 : i32
    %11 = arith.cmpi ne, %10, %c0_i32_9 : i32
    scf.if %11 {
      %c0_10 = arith.constant 0 : index
      %c0_11 = arith.constant 0 : index
      %12 = vector.load %arg5[%c0_10, %c0_11] : memref<16x128xf32, #tpu.memory_space<vmem>>, vector<16x128xf32>
      %c0_12 = arith.constant 0 : index
      %c0_13 = arith.constant 0 : index
      %13 = vector.load %arg4[%c0_12, %c0_13] : memref<1x128xf32, #tpu.memory_space<vmem>>, vector<1x128xf32>
      %14 = vector.broadcast %13 : vector<1x128xf32> to vector<16x128xf32>
      %15 = arith.addf %12, %14 : vector<16x128xf32>
      %16 = arith.negf %15 : vector<16x128xf32>
      %17 = math.exp %16 : vector<16x128xf32>
      %cst_14 = arith.constant 1.000000e+00 : f32
      %18 = vector.broadcast %cst_14 : f32 to vector<16x128xf32>
      %19 = arith.addf %18, %17 : vector<16x128xf32>
      %20 = arith.divf %18, %19 : vector<16x128xf32>
      %c0_15 = arith.constant 0 : index
      %c0_16 = arith.constant 0 : index
      %21 = vector.load %arg5[%c0_15, %c0_16] : memref<16x128xf32, #tpu.memory_space<vmem>>, vector<16x128xf32>
      tpu.vector_store %arg5[%c0_15, %c0_16], %20 {strides = array<i32>} : memref<16x128xf32, #tpu.memory_space<vmem>>, vector<16x128xf32>,
    } else {
    }
    return
  }
  func.func @transform_0(%arg0: i32, %arg1: i32) -> (i32, i32) {
    %c0_i32 = arith.constant 0 : i32
    %c0_i32_0 = arith.constant 0 : i32
    return %c0_i32, %arg1 : i32, i32
  }
  func.func @transform_1(%arg0: i32, %arg1: i32) -> (i32, i32) {
    %c0_i32 = arith.constant 0 : i32
    return %arg1, %arg0 : i32, i32
  }
  func.func @transform_2(%arg0: i32, %arg1: i32) -> (i32, i32) {
    %c0_i32 = arith.constant 0 : i32
    %c0_i32_0 = arith.constant 0 : i32
    return %c0_i32, %arg0 : i32, i32
  }
  func.func @transform_3(%arg0: i32, %arg1: i32) -> (i32, i32) {
    %c0_i32 = arith.constant 0 : i32
    %c0_i32_0 = arith.constant 0 : i32
    return %c0_i32, %arg0 : i32, i32
  }
}

module attributes {stable_mosaic.version = 11 : i64} {
  func.func @_cls_agg_kernel(%arg0: i32, %arg1: memref<64x512xbf16, #tpu.memory_space<vmem>>, %arg2: memref<512x128xbf16, #tpu.memory_space<vmem>>, %arg3: memref<1x128xf32, #tpu.memory_space<vmem>>, %arg4: memref<64x128xf32, #tpu.memory_space<vmem>>, %arg5: memref<4x128x128xbf16, #tpu.memory_space<vmem>>, %arg6: memref<1x128xf32, #tpu.memory_space<vmem>>, %arg7: memref<16x128xf32, #tpu.memory_space<vmem>>) attributes {dimension_semantics = [#tpu.dimension_semantics<arbitrary>], iteration_bounds = array<i64: 1>, scalar_prefetch = 0 : i64, scratch_operands = 0 : i64, tpu.core_type = #tpu.core_type<tc>, window_params = [{transform_indices = @transform_0, window_bounds = array<i64: 64, 512>}, {pipeline_mode = #tpu.pipeline_mode<synchronous>, transform_indices = @transform_1, window_bounds = array<i64: 512, 128>}, {pipeline_mode = #tpu.pipeline_mode<synchronous>, transform_indices = @transform_2, window_bounds = array<i64: 1, 128>}, {transform_indices = @transform_3, window_bounds = array<i64: 64, 128>}, {transform_indices = @transform_4, window_bounds = array<i64: 4, 128, 128>}, {pipeline_mode = #tpu.pipeline_mode<synchronous>, transform_indices = @transform_5, window_bounds = array<i64: 1, 128>}, {pipeline_mode = #tpu.pipeline_mode<synchronous>, transform_indices = @transform_6, window_bounds = array<i64: 16, 128>}]} {
    %c0 = arith.constant 0 : index
    %c0_0 = arith.constant 0 : index
    %0 = vector.load %arg1[%c0, %c0_0] : memref<64x512xbf16, #tpu.memory_space<vmem>>, vector<64x512xbf16>
    %c0_1 = arith.constant 0 : index
    %c0_2 = arith.constant 0 : index
    %1 = vector.load %arg2[%c0_1, %c0_2] : memref<512x128xbf16, #tpu.memory_space<vmem>>, vector<512x128xbf16>
    %cst = arith.constant dense<0.000000e+00> : vector<64x128xf32>
    %2 = tpu.matmul %0, %1, %cst {dimension_numbers = #tpu.dot_dimension_numbers<[1], [0], [0], [1], [0, 0, 1, 1], [], []>} : vector<64x512xbf16>, vector<512x128xbf16>, vector<64x128xf32> -> vector<64x128xf32>
    %c0_3 = arith.constant 0 : index
    %c0_4 = arith.constant 0 : index
    %3 = vector.load %arg3[%c0_3, %c0_4] : memref<1x128xf32, #tpu.memory_space<vmem>>, vector<1x128xf32>
    %4 = vector.broadcast %3 : vector<1x128xf32> to vector<64x128xf32>
    %5 = arith.addf %2, %4 : vector<64x128xf32>
    %cst_5 = arith.constant 0.000000e+00 : f32
    %6 = vector.broadcast %cst_5 : f32 to vector<64x128xf32>
    %7 = arith.maximumf %5, %6 : vector<64x128xf32>
    %c0_6 = arith.constant 0 : index
    %c0_7 = arith.constant 0 : index
    %8 = vector.load %arg4[%c0_6, %c0_7] : memref<64x128xf32, #tpu.memory_space<vmem>>, vector<64x128xf32>
    %9 = arith.addf %7, %8 : vector<64x128xf32>
    %10 = arith.truncf %9 : vector<64x128xf32> to vector<64x128xbf16>
    %11 = vector.extract_strided_slice %10 {offsets = [0, 0], sizes = [16, 128], strides = [1, 1]} : vector<64x128xbf16> to vector<16x128xbf16>
    %c0_8 = arith.constant 0 : index
    %c0_9 = arith.constant 0 : index
    %c0_10 = arith.constant 0 : index
    %12 = vector.load %arg5[%c0_8, %c0_9, %c0_10] : memref<4x128x128xbf16, #tpu.memory_space<vmem>>, vector<1x128x128xbf16>
    %13 = vector.shape_cast %12 : vector<1x128x128xbf16> to vector<128x128xbf16>
    %cst_11 = arith.constant dense<0.000000e+00> : vector<16x128xf32>
    %14 = tpu.matmul %11, %13, %cst_11 {dimension_numbers = #tpu.dot_dimension_numbers<[1], [0], [0], [1], [0, 0, 1, 1], [], []>} : vector<16x128xbf16>, vector<128x128xbf16>, vector<16x128xf32> -> vector<16x128xf32>
    %15 = vector.extract_strided_slice %10 {offsets = [16, 0], sizes = [16, 128], strides = [1, 1]} : vector<64x128xbf16> to vector<16x128xbf16>
    %c1 = arith.constant 1 : index
    %c0_12 = arith.constant 0 : index
    %c0_13 = arith.constant 0 : index
    %16 = vector.load %arg5[%c1, %c0_12, %c0_13] : memref<4x128x128xbf16, #tpu.memory_space<vmem>>, vector<1x128x128xbf16>
    %17 = vector.shape_cast %16 : vector<1x128x128xbf16> to vector<128x128xbf16>
    %cst_14 = arith.constant dense<0.000000e+00> : vector<16x128xf32>
    %18 = tpu.matmul %15, %17, %cst_14 {dimension_numbers = #tpu.dot_dimension_numbers<[1], [0], [0], [1], [0, 0, 1, 1], [], []>} : vector<16x128xbf16>, vector<128x128xbf16>, vector<16x128xf32> -> vector<16x128xf32>
    %19 = arith.addf %14, %18 : vector<16x128xf32>
    %20 = vector.extract_strided_slice %10 {offsets = [32, 0], sizes = [16, 128], strides = [1, 1]} : vector<64x128xbf16> to vector<16x128xbf16>
    %c2 = arith.constant 2 : index
    %c0_15 = arith.constant 0 : index
    %c0_16 = arith.constant 0 : index
    %21 = vector.load %arg5[%c2, %c0_15, %c0_16] : memref<4x128x128xbf16, #tpu.memory_space<vmem>>, vector<1x128x128xbf16>
    %22 = vector.shape_cast %21 : vector<1x128x128xbf16> to vector<128x128xbf16>
    %cst_17 = arith.constant dense<0.000000e+00> : vector<16x128xf32>
    %23 = tpu.matmul %20, %22, %cst_17 {dimension_numbers = #tpu.dot_dimension_numbers<[1], [0], [0], [1], [0, 0, 1, 1], [], []>} : vector<16x128xbf16>, vector<128x128xbf16>, vector<16x128xf32> -> vector<16x128xf32>
    %24 = arith.addf %19, %23 : vector<16x128xf32>
    %25 = vector.extract_strided_slice %10 {offsets = [48, 0], sizes = [16, 128], strides = [1, 1]} : vector<64x128xbf16> to vector<16x128xbf16>
    %c3 = arith.constant 3 : index
    %c0_18 = arith.constant 0 : index
    %c0_19 = arith.constant 0 : index
    %26 = vector.load %arg5[%c3, %c0_18, %c0_19] : memref<4x128x128xbf16, #tpu.memory_space<vmem>>, vector<1x128x128xbf16>
    %27 = vector.shape_cast %26 : vector<1x128x128xbf16> to vector<128x128xbf16>
    %cst_20 = arith.constant dense<0.000000e+00> : vector<16x128xf32>
    %28 = tpu.matmul %25, %27, %cst_20 {dimension_numbers = #tpu.dot_dimension_numbers<[1], [0], [0], [1], [0, 0, 1, 1], [], []>} : vector<16x128xbf16>, vector<128x128xbf16>, vector<16x128xf32> -> vector<16x128xf32>
    %29 = arith.addf %24, %28 : vector<16x128xf32>
    %c0_i32 = arith.constant 0 : i32
    %30 = arith.cmpi eq, %arg0, %c0_i32 : i32
    %31 = arith.extui %30 : i1 to i32
    %c0_i32_21 = arith.constant 0 : i32
    %32 = arith.cmpi ne, %31, %c0_i32_21 : i32
    scf.if %32 {
      %cst_28 = arith.constant 0.000000e+00 : f32
      %39 = vector.broadcast %cst_28 : f32 to vector<16x128xf32>
      %c0_29 = arith.constant 0 : index
      %c0_30 = arith.constant 0 : index
      %40 = vector.load %arg7[%c0_29, %c0_30] : memref<16x128xf32, #tpu.memory_space<vmem>>, vector<16x128xf32>
      tpu.vector_store %arg7[%c0_29, %c0_30], %39 {strides = array<i32>} : memref<16x128xf32, #tpu.memory_space<vmem>>, vector<16x128xf32>,
    } else {
    }
    %c0_22 = arith.constant 0 : index
    %c0_23 = arith.constant 0 : index
    %33 = vector.load %arg7[%c0_22, %c0_23] : memref<16x128xf32, #tpu.memory_space<vmem>>, vector<16x128xf32>
    %34 = arith.addf %33, %29 : vector<16x128xf32>
    %c0_24 = arith.constant 0 : index
    %c0_25 = arith.constant 0 : index
    %35 = vector.load %arg7[%c0_24, %c0_25] : memref<16x128xf32, #tpu.memory_space<vmem>>, vector<16x128xf32>
    tpu.vector_store %arg7[%c0_24, %c0_25], %34 {strides = array<i32>} : memref<16x128xf32, #tpu.memory_space<vmem>>, vector<16x128xf32>,
    %c0_i32_26 = arith.constant 0 : i32
    %36 = arith.cmpi eq, %arg0, %c0_i32_26 : i32
    %37 = arith.extui %36 : i1 to i32
    %c0_i32_27 = arith.constant 0 : i32
    %38 = arith.cmpi ne, %37, %c0_i32_27 : i32
    scf.if %38 {
      %c0_28 = arith.constant 0 : index
      %c0_29 = arith.constant 0 : index
      %39 = vector.load %arg7[%c0_28, %c0_29] : memref<16x128xf32, #tpu.memory_space<vmem>>, vector<16x128xf32>
      %c0_30 = arith.constant 0 : index
      %c0_31 = arith.constant 0 : index
      %40 = vector.load %arg6[%c0_30, %c0_31] : memref<1x128xf32, #tpu.memory_space<vmem>>, vector<1x128xf32>
      %41 = vector.broadcast %40 : vector<1x128xf32> to vector<16x128xf32>
      %42 = arith.addf %39, %41 : vector<16x128xf32>
      %cst_32 = arith.constant dense<0xFF800000> : vector<16xf32>
      %43 = vector.multi_reduction <maximumf>, %42, %cst_32 [1] : vector<16x128xf32> to vector<16xf32>
      %44 = vector.shape_cast %43 : vector<16xf32> to vector<16x1xf32>
      %45 = vector.broadcast %44 : vector<16x1xf32> to vector<16x128xf32>
      %46 = arith.subf %42, %45 : vector<16x128xf32>
      %47 = math.exp %46 : vector<16x128xf32>
      %cst_33 = arith.constant dense<0.000000e+00> : vector<16xf32>
      %48 = vector.multi_reduction <add>, %47, %cst_33 [1] : vector<16x128xf32> to vector<16xf32>
      %49 = vector.shape_cast %48 : vector<16xf32> to vector<16x1xf32>
      %50 = vector.broadcast %49 : vector<16x1xf32> to vector<16x128xf32>
      %51 = arith.divf %47, %50 : vector<16x128xf32>
      %c0_34 = arith.constant 0 : index
      %c0_35 = arith.constant 0 : index
      %52 = vector.load %arg7[%c0_34, %c0_35] : memref<16x128xf32, #tpu.memory_space<vmem>>, vector<16x128xf32>
      tpu.vector_store %arg7[%c0_34, %c0_35], %51 {strides = array<i32>} : memref<16x128xf32, #tpu.memory_space<vmem>>, vector<16x128xf32>,
    } else {
    }
    return
  }
  func.func @transform_0(%arg0: i32) -> (i32, i32) {
    %c0_i32 = arith.constant 0 : i32
    %c0_i32_0 = arith.constant 0 : i32
    return %arg0, %c0_i32 : i32, i32
  }
  func.func @transform_1(%arg0: i32) -> (i32, i32) {
    %c0_i32 = arith.constant 0 : i32
    %c0_i32_0 = arith.constant 0 : i32
    %c0_i32_1 = arith.constant 0 : i32
    return %c0_i32, %c0_i32_0 : i32, i32
  }
  func.func @transform_2(%arg0: i32) -> (i32, i32) {
    %c0_i32 = arith.constant 0 : i32
    %c0_i32_0 = arith.constant 0 : i32
    %c0_i32_1 = arith.constant 0 : i32
    return %c0_i32, %c0_i32_0 : i32, i32
  }
  func.func @transform_3(%arg0: i32) -> (i32, i32) {
    %c0_i32 = arith.constant 0 : i32
    %c0_i32_0 = arith.constant 0 : i32
    return %arg0, %c0_i32 : i32, i32
  }
  func.func @transform_4(%arg0: i32) -> (i32, i32, i32) {
    %c0_i32 = arith.constant 0 : i32
    %c0_i32_0 = arith.constant 0 : i32
    %c0_i32_1 = arith.constant 0 : i32
    return %arg0, %c0_i32, %c0_i32_0 : i32, i32, i32
  }
  func.func @transform_5(%arg0: i32) -> (i32, i32) {
    %c0_i32 = arith.constant 0 : i32
    %c0_i32_0 = arith.constant 0 : i32
    %c0_i32_1 = arith.constant 0 : i32
    return %c0_i32, %c0_i32_0 : i32, i32
  }
  func.func @transform_6(%arg0: i32) -> (i32, i32) {
    %c0_i32 = arith.constant 0 : i32
    %c0_i32_0 = arith.constant 0 : i32
    %c0_i32_1 = arith.constant 0 : i32
    return %c0_i32, %c0_i32_0 : i32, i32
  }
}

</mosaic_0001>

<llo_original>
// kernel: custom-call.4
$region0: #{custom-call.4}
  %s0 = inlined_call_operand.vmem [shape: bf16[8,1,8,8,8], index: 0, kind: output, shape index: {}]

// kernel: region_prop_forward.3
$region0: #{region_prop_forward.3}
  #allocation0 [shape = 'u32[]', space=smem, size = 0x4, offset = 0x4, fixed_abs, tag = 'smem constant byte address 0x4 - core index']
  #allocation1 [shape = 'u32[144,128]{1,0:T(1,128)}', space=vmem, size = 0x12000, scoped, tag = 'internal scratch']
  %s0 = inlined_call_operand.vmem [shape: bf16[64,512], index: 0, kind: input, shape index: {}]
  %s1 = inlined_call_operand.vmem [shape: bf16[512,128], index: 1, kind: input, shape index: {}]
  %s2 = inlined_call_operand.vmem [shape: f32[1,128], index: 2, kind: input, shape index: {}]
  %s3 = inlined_call_operand.vmem [shape: f32[64,128], index: 3, kind: input, shape index: {}]
  %s4 = inlined_call_operand.vmem [shape: bf16[4,128,128], index: 4, kind: input, shape index: {}]
  %s5 = inlined_call_operand.vmem [shape: f32[1,128], index: 5, kind: input, shape index: {}]
  %s6 = inlined_call_operand.vmem [shape: f32[16,128], index: 6, kind: output, shape index: {}]
  %s7 = sld [smem:[#allocation0]]
  $region42: #{region_prop_forward.3} parent=0
    _
  %s9 = ssub.s32 1, %s7
  %s10 = scalar_select 0, %s9, %s7
  // Predicated region
  $region2: #{region_prop_forward.3} parent=0 // pred_check
    _
  $region3: #{region_prop_forward.3} parent=0 // pred_check_branch
    %12 = sbr.rel (0) target = $region5
  $region4: #{region_prop_forward.3} parent=0 // pred_region
    _
  $region5: #{region_prop_forward.3} parent=0 // pred_fallthru
    _
  // Predicated region
  $region6: #{region_prop_forward.3} parent=0 // pred_check
    _
  $region7: #{region_prop_forward.3} parent=0 // pred_check_branch
    %14 = sbr.rel (0) target = $region9
  $region8: #{region_prop_forward.3} parent=0 // pred_region
    _
  $region9: #{region_prop_forward.3} parent=0 // pred_fallthru
    _
  // Predicated region
  $region10: #{region_prop_forward.3} parent=0 // pred_check
    _
  $region11: #{region_prop_forward.3} parent=0 // pred_check_branch
    %16 = sbr.rel (0) target = $region13
  $region12: #{region_prop_forward.3} parent=0 // pred_region
    _
  $region13: #{region_prop_forward.3} parent=0 // pred_fallthru
    _
  // Predicated region
  $region14: #{region_prop_forward.3} parent=0 // pred_check
    _
  $region15: #{region_prop_forward.3} parent=0 // pred_check_branch
    %18 = sbr.rel (0) target = $region17
  $region16: #{region_prop_forward.3} parent=0 // pred_region
    _
  $region17: #{region_prop_forward.3} parent=0 // pred_fallthru
    _
  // Predicated region
  $region18: #{region_prop_forward.3} parent=0 // pred_check
    _
  $region19: #{region_prop_forward.3} parent=0 // pred_check_branch
    %20 = sbr.rel (0) target = $region21
  $region20: #{region_prop_forward.3} parent=0 // pred_region
    _
  $region21: #{region_prop_forward.3} parent=0 // pred_fallthru
    _
  // Predicated region
  $region22: #{region_prop_forward.3} parent=0 // pred_check
    _
  $region23: #{region_prop_forward.3} parent=0 // pred_check_branch
    %22 = sbr.rel (0) target = $region25
  $region24: #{region_prop_forward.3} parent=0 // pred_region
    _
  $region25: #{region_prop_forward.3} parent=0 // pred_fallthru
    _
  %v24 = vld [vmem:[%s0] sm:$0xff]
  %v25 = vld [vmem:[%s0 + $0x8] sm:$0xff]
  %v26 = vld [vmem:[%s0 + $0x10] sm:$0xff]
  %v27 = vld [vmem:[%s0 + $0x18] sm:$0xff]
  %v28 = vld [vmem:[%s0 + $0x20] sm:$0xff]
  %v29 = vld [vmem:[%s0 + $0x28] sm:$0xff]
  %v30 = vld [vmem:[%s0 + $0x30] sm:$0xff]
  %v31 = vld [vmem:[%s0 + $0x38] sm:$0xff]
  %v32 = vld [vmem:[%s0 + $0x40] sm:$0xff]
  %v33 = vld [vmem:[%s0 + $0x48] sm:$0xff]
  %v34 = vld [vmem:[%s0 + $0x50] sm:$0xff]
  %v35 = vld [vmem:[%s0 + $0x58] sm:$0xff]
  %v36 = vld [vmem:[%s0 + $0x60] sm:$0xff]
  %v37 = vld [vmem:[%s0 + $0x68] sm:$0xff]
  %v38 = vld [vmem:[%s0 + $0x70] sm:$0xff]
  %v39 = vld [vmem:[%s0 + $0x78] sm:$0xff]
  %v40 = vld [vmem:[%s1] sm:$0xf]
  %v41 = vld [vmem:[%s1 + $0x4] sm:$0xf]
  %v42 = vld [vmem:[%s1 + $0x8] sm:$0xf]
  %v43 = vld [vmem:[%s1 + $0xc] sm:$0xf]
  %v44 = vld [vmem:[%s1 + $0x10] sm:$0xf]
  %v45 = vld [vmem:[%s1 + $0x14] sm:$0xf]
  %v46 = vld [vmem:[%s1 + $0x18] sm:$0xf]
  %v47 = vld [vmem:[%s1 + $0x1c] sm:$0xf]
  %v48 = vld [vmem:[%s1 + $0x20] sm:$0xf]
  %v49 = vld [vmem:[%s1 + $0x24] sm:$0xf]
  %v50 = vld [vmem:[%s1 + $0x28] sm:$0xf]
  %v51 = vld [vmem:[%s1 + $0x2c] sm:$0xf]
  %v52 = vld [vmem:[%s1 + $0x30] sm:$0xf]
  %v53 = vld [vmem:[%s1 + $0x34] sm:$0xf]
  %v54 = vld [vmem:[%s1 + $0x38] sm:$0xf]
  %v55 = vld [vmem:[%s1 + $0x3c] sm:$0xf]
  %v56 = vld [vmem:[%s1 + $0x40] sm:$0xf]
  %v57 = vld [vmem:[%s1 + $0x44] sm:$0xf]
  %v58 = vld [vmem:[%s1 + $0x48] sm:$0xf]
  %v59 = vld [vmem:[%s1 + $0x4c] sm:$0xf]
  %v60 = vld [vmem:[%s1 + $0x50] sm:$0xf]
  %v61 = vld [vmem:[%s1 + $0x54] sm:$0xf]
  %v62 = vld [vmem:[%s1 + $0x58] sm:$0xf]
  %v63 = vld [vmem:[%s1 + $0x5c] sm:$0xf]
  %v64 = vld [vmem:[%s1 + $0x60] sm:$0xf]
  %v65 = vld [vmem:[%s1 + $0x64] sm:$0xf]
  %v66 = vld [vmem:[%s1 + $0x68] sm:$0xf]
  %v67 = vld [vmem:[%s1 + $0x6c] sm:$0xf]
  %v68 = vld [vmem:[%s1 + $0x70] sm:$0xf]
  %v69 = vld [vmem:[%s1 + $0x74] sm:$0xf]
  %v70 = vld [vmem:[%s1 + $0x78] sm:$0xf]
  %v71 = vld [vmem:[%s1 + $0x7c] sm:$0xf]
  %v72 = vld [vmem:[%s1 + $0x80] sm:$0xf]
  %v73 = vld [vmem:[%s1 + $0x84] sm:$0xf]
  %v74 = vld [vmem:[%s1 + $0x88] sm:$0xf]
  %v75 = vld [vmem:[%s1 + $0x8c] sm:$0xf]
  %v76 = vld [vmem:[%s1 + $0x90] sm:$0xf]
  %v77 = vld [vmem:[%s1 + $0x94] sm:$0xf]
  %v78 = vld [vmem:[%s1 + $0x98] sm:$0xf]
  %v79 = vld [vmem:[%s1 + $0x9c] sm:$0xf]
  %v80 = vld [vmem:[%s1 + $0xa0] sm:$0xf]
  %v81 = vld [vmem:[%s1 + $0xa4] sm:$0xf]
  %v82 = vld [vmem:[%s1 + $0xa8] sm:$0xf]
  %v83 = vld [vmem:[%s1 + $0xac] sm:$0xf]
  %v84 = vld [vmem:[%s1 + $0xb0] sm:$0xf]
  %v85 = vld [vmem:[%s1 + $0xb4] sm:$0xf]
  %v86 = vld [vmem:[%s1 + $0xb8] sm:$0xf]
  %v87 = vld [vmem:[%s1 + $0xbc] sm:$0xf]
  %v88 = vld [vmem:[%s1 + $0xc0] sm:$0xf]
  %v89 = vld [vmem:[%s1 + $0xc4] sm:$0xf]
  %v90 = vld [vmem:[%s1 + $0xc8] sm:$0xf]
  %v91 = vld [vmem:[%s1 + $0xcc] sm:$0xf]
  %v92 = vld [vmem:[%s1 + $0xd0] sm:$0xf]
  %v93 = vld [vmem:[%s1 + $0xd4] sm:$0xf]
  %v94 = vld [vmem:[%s1 + $0xd8] sm:$0xf]
  %v95 = vld [vmem:[%s1 + $0xdc] sm:$0xf]
  %v96 = vld [vmem:[%s1 + $0xe0] sm:$0xf]
  %v97 = vld [vmem:[%s1 + $0xe4] sm:$0xf]
  %v98 = vld [vmem:[%s1 + $0xe8] sm:$0xf]
  %v99 = vld [vmem:[%s1 + $0xec] sm:$0xf]
  %v100 = vld [vmem:[%s1 + $0xf0] sm:$0xf]
  %v101 = vld [vmem:[%s1 + $0xf4] sm:$0xf]
  %v102 = vld [vmem:[%s1 + $0xf8] sm:$0xf]
  %v103 = vld [vmem:[%s1 + $0xfc] sm:$0xf]
  %v104 = vld [vmem:[%s2] sm:$0x1]
  %v106 = vlaneseq
  %v107 = vshrl.u32 %v106, 7
  %v108 = vsub.s32 0, %v107
  %v109 = vrot.slane %v104, %v108
  %v127 = vunpack.c.l.b16 %v24
  %v128 = vunpack.c.h.b16 %v24
  %v129 = vunpack.c.l.b16 %v25
  %v130 = vunpack.c.h.b16 %v25
  %v131 = vunpack.c.l.b16 %v26
  %v132 = vunpack.c.h.b16 %v26
  %v133 = vunpack.c.l.b16 %v27
  %v134 = vunpack.c.h.b16 %v27
  %v135 = vunpack.c.l.b16 %v28
  %v136 = vunpack.c.h.b16 %v28
  %v137 = vunpack.c.l.b16 %v29
  %v138 = vunpack.c.h.b16 %v29
  %v139 = vunpack.c.l.b16 %v30
  %v140 = vunpack.c.h.b16 %v30
  %v141 = vunpack.c.l.b16 %v31
  %v142 = vunpack.c.h.b16 %v31
  %v143 = vunpack.c.l.b16 %v32
  %v144 = vunpack.c.h.b16 %v32
  %v145 = vunpack.c.l.b16 %v33
  %v146 = vunpack.c.h.b16 %v33
  %v147 = vunpack.c.l.b16 %v34
  %v148 = vunpack.c.h.b16 %v34
  %v149 = vunpack.c.l.b16 %v35
  %v150 = vunpack.c.h.b16 %v35
  %v151 = vunpack.c.l.b16 %v36
  %v152 = vunpack.c.h.b16 %v36
  %v153 = vunpack.c.l.b16 %v37
  %v154 = vunpack.c.h.b16 %v37
  %v155 = vunpack.c.l.b16 %v38
  %v156 = vunpack.c.h.b16 %v38
  %v157 = vunpack.c.l.b16 %v39
  %v158 = vunpack.c.h.b16 %v39
  %v159 = vpack.c.b16 %v131, %v127
  %v160 = vpack.c.b16 %v132, %v128
  %v161 = vpack.c.b16 %v133, %v129
  %v162 = vpack.c.b16 %v134, %v130
  %v163 = vpack.c.b16 %v139, %v135
  %v164 = vpack.c.b16 %v140, %v136
  %v165 = vpack.c.b16 %v141, %v137
  %v166 = vpack.c.b16 %v142, %v138
  %v167 = vpack.c.b16 %v147, %v143
  %v168 = vpack.c.b16 %v148, %v144
  %v169 = vpack.c.b16 %v149, %v145
  %v170 = vpack.c.b16 %v150, %v146
  %v171 = vpack.c.b16 %v155, %v151
  %v172 = vpack.c.b16 %v156, %v152
  %v173 = vpack.c.b16 %v157, %v153
  %v174 = vpack.c.b16 %v158, %v154
  %v255 = vunpack.c.l.b16 %v40
  %v256 = vunpack.c.l.b16 %v41
  %v257 = vunpack.c.l.b16 %v42
  %v258 = vunpack.c.l.b16 %v43
  %v259 = vunpack.c.l.b16 %v44
  %v260 = vunpack.c.l.b16 %v45
  %v261 = vunpack.c.l.b16 %v46
  %v262 = vunpack.c.l.b16 %v47
  %v263 = vunpack.c.l.b16 %v48
  %v264 = vunpack.c.l.b16 %v49
  %v265 = vunpack.c.l.b16 %v50
  %v266 = vunpack.c.l.b16 %v51
  %v267 = vunpack.c.l.b16 %v52
  %v268 = vunpack.c.l.b16 %v53
  %v269 = vunpack.c.l.b16 %v54
  %v270 = vunpack.c.l.b16 %v55
  %v271 = vunpack.c.l.b16 %v56
  %v272 = vunpack.c.l.b16 %v57
  %v273 = vunpack.c.l.b16 %v58
  %v274 = vunpack.c.l.b16 %v59
  %v275 = vunpack.c.l.b16 %v60
  %v276 = vunpack.c.l.b16 %v61
  %v277 = vunpack.c.l.b16 %v62
  %v278 = vunpack.c.l.b16 %v63
  %v279 = vunpack.c.l.b16 %v64
  %v280 = vunpack.c.l.b16 %v65
  %v281 = vunpack.c.l.b16 %v66
  %v282 = vunpack.c.l.b16 %v67
  %v283 = vunpack.c.l.b16 %v68
  %v284 = vunpack.c.l.b16 %v69
  %v285 = vunpack.c.l.b16 %v70
  %v286 = vunpack.c.l.b16 %v71
  %v287 = vunpack.c.l.b16 %v72
  %v288 = vunpack.c.l.b16 %v73
  %v289 = vunpack.c.l.b16 %v74
  %v290 = vunpack.c.l.b16 %v75
  %v291 = vunpack.c.l.b16 %v76
  %v292 = vunpack.c.l.b16 %v77
  %v293 = vunpack.c.l.b16 %v78
  %v294 = vunpack.c.l.b16 %v79
  %v295 = vunpack.c.l.b16 %v80
  %v296 = vunpack.c.l.b16 %v81
  %v297 = vunpack.c.l.b16 %v82
  %v298 = vunpack.c.l.b16 %v83
  %v299 = vunpack.c.l.b16 %v84
  %v300 = vunpack.c.l.b16 %v85
  %v301 = vunpack.c.l.b16 %v86
  %v302 = vunpack.c.l.b16 %v87
  %v303 = vunpack.c.l.b16 %v88
  %v304 = vunpack.c.l.b16 %v89
  %v305 = vunpack.c.l.b16 %v90
  %v306 = vunpack.c.l.b16 %v91
  %v307 = vunpack.c.l.b16 %v92
  %v308 = vunpack.c.l.b16 %v93
  %v309 = vunpack.c.l.b16 %v94
  %v310 = vunpack.c.l.b16 %v95
  %v311 = vunpack.c.l.b16 %v96
  %v312 = vunpack.c.l.b16 %v97
  %v313 = vunpack.c.l.b16 %v98
  %v314 = vunpack.c.l.b16 %v99
  %v315 = vunpack.c.l.b16 %v100
  %v316 = vunpack.c.l.b16 %v101
  %v317 = vunpack.c.l.b16 %v102
  %v318 = vunpack.c.l.b16 %v103
  %v319 = vpack.c.b16 %v256, %v255
  %v320 = vpack.c.b16 %v258, %v257
  %v321 = vpack.c.b16 %v260, %v259
  %v322 = vpack.c.b16 %v262, %v261
  %v323 = vpack.c.b16 %v264, %v263
  %v324 = vpack.c.b16 %v266, %v265
  %v325 = vpack.c.b16 %v268, %v267
  %v326 = vpack.c.b16 %v270, %v269
  %v327 = vpack.c.b16 %v272, %v271
  %v328 = vpack.c.b16 %v274, %v273
  %v329 = vpack.c.b16 %v276, %v275
  %v330 = vpack.c.b16 %v278, %v277
  %v331 = vpack.c.b16 %v280, %v279
  %v332 = vpack.c.b16 %v282, %v281
  %v333 = vpack.c.b16 %v284, %v283
  %v334 = vpack.c.b16 %v286, %v285
  %v335 = vpack.c.b16 %v288, %v287
  %v336 = vpack.c.b16 %v290, %v289
  %v337 = vpack.c.b16 %v292, %v291
  %v338 = vpack.c.b16 %v294, %v293
  %v339 = vpack.c.b16 %v296, %v295
  %v340 = vpack.c.b16 %v298, %v297
  %v341 = vpack.c.b16 %v300, %v299
  %v342 = vpack.c.b16 %v302, %v301
  %v343 = vpack.c.b16 %v304, %v303
  %v344 = vpack.c.b16 %v306, %v305
  %v345 = vpack.c.b16 %v308, %v307
  %v346 = vpack.c.b16 %v310, %v309
  %v347 = vpack.c.b16 %v312, %v311
  %v348 = vpack.c.b16 %v314, %v313
  %v349 = vpack.c.b16 %v316, %v315
  %v350 = vpack.c.b16 %v318, %v317
  %383 = vmatprep.subr.bf16.mxu0 0
  %384 = vmatpush1.bf16.msra.mxu0 %v319
  %385 = vmatprep.subr.bf16.mxu0 0
  %386 = vmatpush1.bf16.msra.mxu0 %v320
  %387 = vmatprep.subr.bf16.mxu0 0
  %388 = vmatpush1.bf16.msra.mxu0 %v321
  %389 = vmatprep.subr.bf16.mxu0 0
  %390 = vmatpush1.bf16.msra.mxu0 %v322
  %391 = vmatprep.subr.bf16.mxu0 0
  %392 = vmatpush1.bf16.msra.mxu0 %v323
  %393 = vmatprep.subr.bf16.mxu0 0
  %394 = vmatpush1.bf16.msra.mxu0 %v324
  %395 = vmatprep.subr.bf16.mxu0 0
  %396 = vmatpush1.bf16.msra.mxu0 %v325
  %397 = vmatprep.subr.bf16.mxu0 0
  %398 = vmatpush1.bf16.msra.mxu0 %v326
  %399 = vmatprep.subr.bf16.mxu0 0
  %400 = vmatpush1.bf16.msra.mxu0 %v327
  %401 = vmatprep.subr.bf16.mxu0 0
  %402 = vmatpush1.bf16.msra.mxu0 %v328
  %403 = vmatprep.subr.bf16.mxu0 0
  %404 = vmatpush1.bf16.msra.mxu0 %v329
  %405 = vmatprep.subr.bf16.mxu0 0
  %406 = vmatpush1.bf16.msra.mxu0 %v330
  %407 = vmatprep.subr.bf16.mxu0 0
  %408 = vmatpush1.bf16.msra.mxu0 %v331
  %409 = vmatprep.subr.bf16.mxu0 0
  %410 = vmatpush1.bf16.msra.mxu0 %v332
  %411 = vmatprep.subr.bf16.mxu0 0
  %412 = vmatpush1.bf16.msra.mxu0 %v333
  %413 = vmatprep.subr.bf16.mxu0 0
  %414 = vmatpush1.bf16.msra.mxu0 %v334
  %415 = vmatprep.mubr.bf16.mxu0 %v160
  %416 = vmatmul.mubr.bf16.gmra.mrb[0].mxu0 %v159
  %v417 = vpop.f32.mrb[0].mxu0
  %v418 = vadd.f32 %v109, %v417
  %v419 = vpop.f32.mrb[0].mxu0
  %v420 = vpop.f32.mrb[0].mxu0
  %v421 = vadd.f32 %v109, %v420
  %v422 = vpop.f32.mrb[0].mxu0
  %423 = vmatprep.mubr.bf16.mxu0 %v164
  %424 = vmatmul.mubr.bf16.gmra.mrb[0].mxu0 %v163
  %v425 = vpop.f32.mrb[0].mxu0
  %v426 = vadd.f32 %v109, %v425
  %v427 = vpop.f32.mrb[0].mxu0
  %v428 = vpop.f32.mrb[0].mxu0
  %v429 = vadd.f32 %v109, %v428
  %v430 = vpop.f32.mrb[0].mxu0
  %431 = vmatprep.mubr.bf16.mxu0 %v168
  %432 = vmatmul.mubr.bf16.gmra.mrb[0].mxu0 %v167
  %v433 = vpop.f32.mrb[0].mxu0
  %v434 = vadd.f32 %v109, %v433
  %v435 = vpop.f32.mrb[0].mxu0
  %v436 = vpop.f32.mrb[0].mxu0
  %v437 = vadd.f32 %v109, %v436
  %v438 = vpop.f32.mrb[0].mxu0
  %439 = vmatprep.mubr.bf16.mxu0 %v172
  %440 = vmatmul.mubr.bf16.gmra.mrb[0].mxu0 %v171
  %v441 = vpop.f32.mrb[0].mxu0
  %v442 = vadd.f32 %v109, %v441
  %v443 = vpop.f32.mrb[0].mxu0
  %v444 = vpop.f32.mrb[0].mxu0
  %v445 = vadd.f32 %v109, %v444
  %v446 = vpop.f32.mrb[0].mxu0
  %447 = vdwg.mxu0
  %448 = vmatprep.subr.bf16.mxu0 0
  %449 = vmatpush1.bf16.msra.mxu0 %v335
  %450 = vmatprep.subr.bf16.mxu0 0
  %451 = vmatpush1.bf16.msra.mxu0 %v336
  %452 = vmatprep.subr.bf16.mxu0 0
  %453 = vmatpush1.bf16.msra.mxu0 %v337
  %454 = vmatprep.subr.bf16.mxu0 0
  %455 = vmatpush1.bf16.msra.mxu0 %v338
  %456 = vmatprep.subr.bf16.mxu0 0
  %457 = vmatpush1.bf16.msra.mxu0 %v339
  %458 = vmatprep.subr.bf16.mxu0 0
  %459 = vmatpush1.bf16.msra.mxu0 %v340
  %460 = vmatprep.subr.bf16.mxu0 0
  %461 = vmatpush1.bf16.msra.mxu0 %v341
  %462 = vmatprep.subr.bf16.mxu0 0
  %463 = vmatpush1.bf16.msra.mxu0 %v342
  %464 = vmatprep.subr.bf16.mxu0 0
  %465 = vmatpush1.bf16.msra.mxu0 %v343
  %466 = vmatprep.subr.bf16.mxu0 0
  %467 = vmatpush1.bf16.msra.mxu0 %v344
  %468 = vmatprep.subr.bf16.mxu0 0
  %469 = vmatpush1.bf16.msra.mxu0 %v345
  %470 = vmatprep.subr.bf16.mxu0 0
  %471 = vmatpush1.bf16.msra.mxu0 %v346
  %472 = vmatprep.subr.bf16.mxu0 0
  %473 = vmatpush1.bf16.msra.mxu0 %v347
  %474 = vmatprep.subr.bf16.mxu0 0
  %475 = vmatpush1.bf16.msra.mxu0 %v348
  %476 = vmatprep.subr.bf16.mxu0 0
  %477 = vmatpush1.bf16.msra.mxu0 %v349
  %478 = vmatprep.subr.bf16.mxu0 0
  %479 = vmatpush1.bf16.msra.mxu0 %v350
  %480 = vmatprep.mubr.bf16.mxu0 %v162
  %481 = vmatmul.mubr.bf16.gmra.mrb[0].mxu0 %v161
  %v482 = vpop.f32.mrb[0].mxu0
  %v483 = vadd.f32 %v418, %v482
  %v484 = vpop.f32.mrb[0].mxu0
  %v485 = vpop.f32.mrb[0].mxu0
  %v486 = vadd.f32 %v421, %v485
  %v487 = vpop.f32.mrb[0].mxu0
  %488 = vmatprep.mubr.bf16.mxu0 %v166
  %489 = vmatmul.mubr.bf16.gmra.mrb[0].mxu0 %v165
  %v490 = vpop.f32.mrb[0].mxu0
  %v491 = vadd.f32 %v426, %v490
  %v492 = vpop.f32.mrb[0].mxu0
  %v493 = vpop.f32.mrb[0].mxu0
  %v494 = vadd.f32 %v429, %v493
  %v495 = vpop.f32.mrb[0].mxu0
  %496 = vmatprep.mubr.bf16.mxu0 %v170
  %497 = vmatmul.mubr.bf16.gmra.mrb[0].mxu0 %v169
  %v498 = vpop.f32.mrb[0].mxu0
  %v499 = vadd.f32 %v434, %v498
  %v500 = vpop.f32.mrb[0].mxu0
  %v501 = vpop.f32.mrb[0].mxu0
  %v502 = vadd.f32 %v437, %v501
  %v503 = vpop.f32.mrb[0].mxu0
  %504 = vmatprep.mubr.bf16.mxu0 %v174
  %505 = vmatmul.mubr.bf16.gmra.mrb[0].mxu0 %v173
  %v506 = vpop.f32.mrb[0].mxu0
  %v507 = vadd.f32 %v442, %v506
  %v508 = vpop.f32.mrb[0].mxu0
  %v509 = vpop.f32.mrb[0].mxu0
  %v510 = vadd.f32 %v445, %v509
  %v511 = vpop.f32.mrb[0].mxu0
  %512 = vdwg.mxu0
  %v513 = vmax.f32 %v483, 0.0
  %v514 = vmax.f32 %v486, 0.0
  %v515 = vmax.f32 %v491, 0.0
  %v516 = vmax.f32 %v494, 0.0
  %v517 = vmax.f32 %v499, 0.0
  %v518 = vmax.f32 %v502, 0.0
  %v519 = vmax.f32 %v507, 0.0
  %v520 = vmax.f32 %v510, 0.0
  %v521 = vld [vmem:[%s3] sm:$0xff]
  %v522 = vld [vmem:[%s3 + $0x8] sm:$0xff]
  %v523 = vld [vmem:[%s3 + $0x10] sm:$0xff]
  %v524 = vld [vmem:[%s3 + $0x18] sm:$0xff]
  %v525 = vld [vmem:[%s3 + $0x20] sm:$0xff]
  %v526 = vld [vmem:[%s3 + $0x28] sm:$0xff]
  %v527 = vld [vmem:[%s3 + $0x30] sm:$0xff]
  %v528 = vld [vmem:[%s3 + $0x38] sm:$0xff]
  %v529 = vadd.f32 %v513, %v521
  %v530 = vadd.f32 %v514, %v522
  %v531 = vadd.f32 %v515, %v523
  %v532 = vadd.f32 %v516, %v524
  %v533 = vadd.f32 %v517, %v525
  %v534 = vadd.f32 %v518, %v526
  %v535 = vadd.f32 %v519, %v527
  %v536 = vadd.f32 %v520, %v528
  %v537 = vpack.c.bf16 %v530, %v529
  %v538 = vpack.c.bf16 %v532, %v531
  %v539 = vpack.c.bf16 %v534, %v533
  %v540 = vpack.c.bf16 %v536, %v535
  %v541 = vld [vmem:[%s4] sm:$0xf]
  %v542 = vld [vmem:[%s4 + $0x4] sm:$0xf]
  %v543 = vld [vmem:[%s4 + $0x8] sm:$0xf]
  %v544 = vld [vmem:[%s4 + $0xc] sm:$0xf]
  %v545 = vld [vmem:[%s4 + $0x10] sm:$0xf]
  %v546 = vld [vmem:[%s4 + $0x14] sm:$0xf]
  %v547 = vld [vmem:[%s4 + $0x18] sm:$0xf]
  %v548 = vld [vmem:[%s4 + $0x1c] sm:$0xf]
  %v549 = vld [vmem:[%s4 + $0x20] sm:$0xf]
  %v550 = vld [vmem:[%s4 + $0x24] sm:$0xf]
  %v551 = vld [vmem:[%s4 + $0x28] sm:$0xf]
  %v552 = vld [vmem:[%s4 + $0x2c] sm:$0xf]
  %v553 = vld [vmem:[%s4 + $0x30] sm:$0xf]
  %v554 = vld [vmem:[%s4 + $0x34] sm:$0xf]
  %v555 = vld [vmem:[%s4 + $0x38] sm:$0xf]
  %v556 = vld [vmem:[%s4 + $0x3c] sm:$0xf]
  %s557 = scalar_lea.vmem %s4, 64
  %v558 = vld [vmem:[%s557] sm:$0xf]
  %v559 = vld [vmem:[%s557 + $0x4] sm:$0xf]
  %v560 = vld [vmem:[%s557 + $0x8] sm:$0xf]
  %v561 = vld [vmem:[%s557 + $0xc] sm:$0xf]
  %v562 = vld [vmem:[%s557 + $0x10] sm:$0xf]
  %v563 = vld [vmem:[%s557 + $0x14] sm:$0xf]
  %v564 = vld [vmem:[%s557 + $0x18] sm:$0xf]
  %v565 = vld [vmem:[%s557 + $0x1c] sm:$0xf]
  %v566 = vld [vmem:[%s557 + $0x20] sm:$0xf]
  %v567 = vld [vmem:[%s557 + $0x24] sm:$0xf]
  %v568 = vld [vmem:[%s557 + $0x28] sm:$0xf]
  %v569 = vld [vmem:[%s557 + $0x2c] sm:$0xf]
  %v570 = vld [vmem:[%s557 + $0x30] sm:$0xf]
  %v571 = vld [vmem:[%s557 + $0x34] sm:$0xf]
  %v572 = vld [vmem:[%s557 + $0x38] sm:$0xf]
  %v573 = vld [vmem:[%s557 + $0x3c] sm:$0xf]
  %v590 = vunpack.c.l.b16 %v558
  %v591 = vunpack.c.l.b16 %v559
  %v592 = vunpack.c.l.b16 %v560
  %v593 = vunpack.c.l.b16 %v561
  %v594 = vunpack.c.l.b16 %v562
  %v595 = vunpack.c.l.b16 %v563
  %v596 = vunpack.c.l.b16 %v564
  %v597 = vunpack.c.l.b16 %v565
  %v598 = vunpack.c.l.b16 %v566
  %v599 = vunpack.c.l.b16 %v567
  %v600 = vunpack.c.l.b16 %v568
  %v601 = vunpack.c.l.b16 %v569
  %v602 = vunpack.c.l.b16 %v570
  %v603 = vunpack.c.l.b16 %v571
  %v604 = vunpack.c.l.b16 %v572
  %v605 = vunpack.c.l.b16 %v573
  %v606 = vpack.c.b16 %v591, %v590
  %v607 = vpack.c.b16 %v593, %v592
  %v608 = vpack.c.b16 %v595, %v594
  %v609 = vpack.c.b16 %v597, %v596
  %v610 = vpack.c.b16 %v599, %v598
  %v611 = vpack.c.b16 %v601, %v600
  %v612 = vpack.c.b16 %v603, %v602
  %v613 = vpack.c.b16 %v605, %v604
  %622 = vmatprep.subr.bf16.mxu0 0
  %623 = vmatpush1.bf16.msra.mxu0 %v606
  %624 = vmatprep.subr.bf16.mxu0 0
  %625 = vmatpush1.bf16.msra.mxu0 %v607
  %626 = vmatprep.subr.bf16.mxu0 0
  %627 = vmatpush1.bf16.msra.mxu0 %v608
  %628 = vmatprep.subr.bf16.mxu0 0
  %629 = vmatpush1.bf16.msra.mxu0 %v609
  %630 = vmatprep.subr.bf16.mxu0 0
  %631 = vmatpush1.bf16.msra.mxu0 %v610
  %632 = vmatprep.subr.bf16.mxu0 0
  %633 = vmatpush1.bf16.msra.mxu0 %v611
  %634 = vmatprep.subr.bf16.mxu0 0
  %635 = vmatpush1.bf16.msra.mxu0 %v612
  %636 = vmatprep.subr.bf16.mxu0 0
  %637 = vmatpush1.bf16.msra.mxu0 %v613
  %638 = vmatprep.subr.bf16.mxu0 0
  %639 = vmatpush1.bf16.msra.mxu0 0
  %640 = vmatprep.subr.bf16.mxu0 0
  %641 = vmatpush1.bf16.msra.mxu0 0
  %642 = vmatprep.subr.bf16.mxu0 0
  %643 = vmatpush1.bf16.msra.mxu0 0
  %644 = vmatprep.subr.bf16.mxu0 0
  %645 = vmatpush1.bf16.msra.mxu0 0
  %646 = vmatprep.subr.bf16.mxu0 0
  %647 = vmatpush1.bf16.msra.mxu0 0
  %648 = vmatprep.subr.bf16.mxu0 0
  %649 = vmatpush1.bf16.msra.mxu0 0
  %650 = vmatprep.subr.bf16.mxu0 0
  %651 = vmatpush1.bf16.msra.mxu0 0
  %652 = vmatprep.subr.bf16.mxu0 0
  %653 = vmatpush1.bf16.msra.mxu0 0
  %654 = vmatprep.mubr.bf16.mxu0 0
  %655 = vmatmul.mubr.bf16.gmra.mrb[0].mxu0 %v538
  %v656 = vpop.f32.mrb[0].mxu0
  %v657 = vadd.f32 0.0, %v656
  %v658 = vpop.f32.mrb[0].mxu0
  %v659 = vpop.f32.mrb[0].mxu0
  %v660 = vadd.f32 0.0, %v659
  %v661 = vpop.f32.mrb[0].mxu0
  %662 = vdwg.mxu0
  %v679 = vunpack.c.l.b16 %v541
  %v680 = vunpack.c.l.b16 %v542
  %v681 = vunpack.c.l.b16 %v543
  %v682 = vunpack.c.l.b16 %v544
  %v683 = vunpack.c.l.b16 %v545
  %v684 = vunpack.c.l.b16 %v546
  %v685 = vunpack.c.l.b16 %v547
  %v686 = vunpack.c.l.b16 %v548
  %v687 = vunpack.c.l.b16 %v549
  %v688 = vunpack.c.l.b16 %v550
  %v689 = vunpack.c.l.b16 %v551
  %v690 = vunpack.c.l.b16 %v552
  %v691 = vunpack.c.l.b16 %v553
  %v692 = vunpack.c.l.b16 %v554
  %v693 = vunpack.c.l.b16 %v555
  %v694 = vunpack.c.l.b16 %v556
  %v695 = vpack.c.b16 %v680, %v679
  %v696 = vpack.c.b16 %v682, %v681
  %v697 = vpack.c.b16 %v684, %v683
  %v698 = vpack.c.b16 %v686, %v685
  %v699 = vpack.c.b16 %v688, %v687
  %v700 = vpack.c.b16 %v690, %v689
  %v701 = vpack.c.b16 %v692, %v691
  %v702 = vpack.c.b16 %v694, %v693
  %711 = vmatprep.subr.bf16.mxu0 0
  %712 = vmatpush1.bf16.msra.mxu0 %v695
  %713 = vmatprep.subr.bf16.mxu0 0
  %714 = vmatpush1.bf16.msra.mxu0 %v696
  %715 = vmatprep.subr.bf16.mxu0 0
  %716 = vmatpush1.bf16.msra.mxu0 %v697
  %717 = vmatprep.subr.bf16.mxu0 0
  %718 = vmatpush1.bf16.msra.mxu0 %v698
  %719 = vmatprep.subr.bf16.mxu0 0
  %720 = vmatpush1.bf16.msra.mxu0 %v699
  %721 = vmatprep.subr.bf16.mxu0 0
  %722 = vmatpush1.bf16.msra.mxu0 %v700
  %723 = vmatprep.subr.bf16.mxu0 0
  %724 = vmatpush1.bf16.msra.mxu0 %v701
  %725 = vmatprep.subr.bf16.mxu0 0
  %726 = vmatpush1.bf16.msra.mxu0 %v702
  %727 = vmatprep.subr.bf16.mxu0 0
  %728 = vmatpush1.bf16.msra.mxu0 0
  %729 = vmatprep.subr.bf16.mxu0 0
  %730 = vmatpush1.bf16.msra.mxu0 0
  %731 = vmatprep.subr.bf16.mxu0 0
  %732 = vmatpush1.bf16.msra.mxu0 0
  %733 = vmatprep.subr.bf16.mxu0 0
  %734 = vmatpush1.bf16.msra.mxu0 0
  %735 = vmatprep.subr.bf16.mxu0 0
  %736 = vmatpush1.bf16.msra.mxu0 0
  %737 = vmatprep.subr.bf16.mxu0 0
  %738 = vmatpush1.bf16.msra.mxu0 0
  %739 = vmatprep.subr.bf16.mxu0 0
  %740 = vmatpush1.bf16.msra.mxu0 0
  %741 = vmatprep.subr.bf16.mxu0 0
  %742 = vmatpush1.bf16.msra.mxu0 0
  %743 = vmatprep.mubr.bf16.mxu0 0
  %744 = vmatmul.mubr.bf16.gmra.mrb[0].mxu0 %v537
  %v745 = vpop.f32.mrb[0].mxu0
  %v746 = vadd.f32 %v657, %v745
  %v747 = vpop.f32.mrb[0].mxu0
  %v748 = vpop.f32.mrb[0].mxu0
  %v749 = vadd.f32 %v660, %v748
  %v750 = vpop.f32.mrb[0].mxu0
  %751 = vdwg.mxu0
  %s752 = scalar_lea.vmem %s4, 128
  %v753 = vld [vmem:[%s752] sm:$0xf]
  %v754 = vld [vmem:[%s752 + $0x4] sm:$0xf]
  %v755 = vld [vmem:[%s752 + $0x8] sm:$0xf]
  %v756 = vld [vmem:[%s752 + $0xc] sm:$0xf]
  %v757 = vld [vmem:[%s752 + $0x10] sm:$0xf]
  %v758 = vld [vmem:[%s752 + $0x14] sm:$0xf]
  %v759 = vld [vmem:[%s752 + $0x18] sm:$0xf]
  %v760 = vld [vmem:[%s752 + $0x1c] sm:$0xf]
  %v761 = vld [vmem:[%s752 + $0x20] sm:$0xf]
  %v762 = vld [vmem:[%s752 + $0x24] sm:$0xf]
  %v763 = vld [vmem:[%s752 + $0x28] sm:$0xf]
  %v764 = vld [vmem:[%s752 + $0x2c] sm:$0xf]
  %v765 = vld [vmem:[%s752 + $0x30] sm:$0xf]
  %v766 = vld [vmem:[%s752 + $0x34] sm:$0xf]
  %v767 = vld [vmem:[%s752 + $0x38] sm:$0xf]
  %v768 = vld [vmem:[%s752 + $0x3c] sm:$0xf]
  %v785 = vunpack.c.l.b16 %v753
  %v786 = vunpack.c.l.b16 %v754
  %v787 = vunpack.c.l.b16 %v755
  %v788 = vunpack.c.l.b16 %v756
  %v789 = vunpack.c.l.b16 %v757
  %v790 = vunpack.c.l.b16 %v758
  %v791 = vunpack.c.l.b16 %v759
  %v792 = vunpack.c.l.b16 %v760
  %v793 = vunpack.c.l.b16 %v761
  %v794 = vunpack.c.l.b16 %v762
  %v795 = vunpack.c.l.b16 %v763
  %v796 = vunpack.c.l.b16 %v764
  %v797 = vunpack.c.l.b16 %v765
  %v798 = vunpack.c.l.b16 %v766
  %v799 = vunpack.c.l.b16 %v767
  %v800 = vunpack.c.l.b16 %v768
  %v801 = vpack.c.b16 %v786, %v785
  %v802 = vpack.c.b16 %v788, %v787
  %v803 = vpack.c.b16 %v790, %v789
  %v804 = vpack.c.b16 %v792, %v791
  %v805 = vpack.c.b16 %v794, %v793
  %v806 = vpack.c.b16 %v796, %v795
  %v807 = vpack.c.b16 %v798, %v797
  %v808 = vpack.c.b16 %v800, %v799
  %817 = vmatprep.subr.bf16.mxu0 0
  %818 = vmatpush1.bf16.msra.mxu0 %v801
  %819 = vmatprep.subr.bf16.mxu0 0
  %820 = vmatpush1.bf16.msra.mxu0 %v802
  %821 = vmatprep.subr.bf16.mxu0 0
  %822 = vmatpush1.bf16.msra.mxu0 %v803
  %823 = vmatprep.subr.bf16.mxu0 0
  %824 = vmatpush1.bf16.msra.mxu0 %v804
  %825 = vmatprep.subr.bf16.mxu0 0
  %826 = vmatpush1.bf16.msra.mxu0 %v805
  %827 = vmatprep.subr.bf16.mxu0 0
  %828 = vmatpush1.bf16.msra.mxu0 %v806
  %829 = vmatprep.subr.bf16.mxu0 0
  %830 = vmatpush1.bf16.msra.mxu0 %v807
  %831 = vmatprep.subr.bf16.mxu0 0
  %832 = vmatpush1.bf16.msra.mxu0 %v808
  %833 = vmatprep.subr.bf16.mxu0 0
  %834 = vmatpush1.bf16.msra.mxu0 0
  %835 = vmatprep.subr.bf16.mxu0 0
  %836 = vmatpush1.bf16.msra.mxu0 0
  %837 = vmatprep.subr.bf16.mxu0 0
  %838 = vmatpush1.bf16.msra.mxu0 0
  %839 = vmatprep.subr.bf16.mxu0 0
  %840 = vmatpush1.bf16.msra.mxu0 0
  %841 = vmatprep.subr.bf16.mxu0 0
  %842 = vmatpush1.bf16.msra.mxu0 0
  %843 = vmatprep.subr.bf16.mxu0 0
  %844 = vmatpush1.bf16.msra.mxu0 0
  %845 = vmatprep.subr.bf16.mxu0 0
  %846 = vmatpush1.bf16.msra.mxu0 0
  %847 = vmatprep.subr.bf16.mxu0 0
  %848 = vmatpush1.bf16.msra.mxu0 0
  %849 = vmatprep.mubr.bf16.mxu0 0
  %850 = vmatmul.mubr.bf16.gmra.mrb[0].mxu0 %v539
  %v851 = vpop.f32.mrb[0].mxu0
  %v852 = vadd.f32 0.0, %v851
  %v853 = vpop.f32.mrb[0].mxu0
  %v854 = vpop.f32.mrb[0].mxu0
  %v855 = vadd.f32 0.0, %v854
  %v856 = vpop.f32.mrb[0].mxu0
  %857 = vdwg.mxu0
  %v858 = vadd.f32 %v746, %v852
  %v859 = vadd.f32 %v749, %v855
  %s860 = scalar_lea.vmem %s4, 192
  %v861 = vld [vmem:[%s860] sm:$0xf]
  %v862 = vld [vmem:[%s860 + $0x4] sm:$0xf]
  %v863 = vld [vmem:[%s860 + $0x8] sm:$0xf]
  %v864 = vld [vmem:[%s860 + $0xc] sm:$0xf]
  %v865 = vld [vmem:[%s860 + $0x10] sm:$0xf]
  %v866 = vld [vmem:[%s860 + $0x14] sm:$0xf]
  %v867 = vld [vmem:[%s860 + $0x18] sm:$0xf]
  %v868 = vld [vmem:[%s860 + $0x1c] sm:$0xf]
  %v869 = vld [vmem:[%s860 + $0x20] sm:$0xf]
  %v870 = vld [vmem:[%s860 + $0x24] sm:$0xf]
  %v871 = vld [vmem:[%s860 + $0x28] sm:$0xf]
  %v872 = vld [vmem:[%s860 + $0x2c] sm:$0xf]
  %v873 = vld [vmem:[%s860 + $0x30] sm:$0xf]
  %v874 = vld [vmem:[%s860 + $0x34] sm:$0xf]
  %v875 = vld [vmem:[%s860 + $0x38] sm:$0xf]
  %v876 = vld [vmem:[%s860 + $0x3c] sm:$0xf]
  %v893 = vunpack.c.l.b16 %v861
  %v894 = vunpack.c.l.b16 %v862
  %v895 = vunpack.c.l.b16 %v863
  %v896 = vunpack.c.l.b16 %v864
  %v897 = vunpack.c.l.b16 %v865
  %v898 = vunpack.c.l.b16 %v866
  %v899 = vunpack.c.l.b16 %v867
  %v900 = vunpack.c.l.b16 %v868
  %v901 = vunpack.c.l.b16 %v869
  %v902 = vunpack.c.l.b16 %v870
  %v903 = vunpack.c.l.b16 %v871
  %v904 = vunpack.c.l.b16 %v872
  %v905 = vunpack.c.l.b16 %v873
  %v906 = vunpack.c.l.b16 %v874
  %v907 = vunpack.c.l.b16 %v875
  %v908 = vunpack.c.l.b16 %v876
  %v909 = vpack.c.b16 %v894, %v893
  %v910 = vpack.c.b16 %v896, %v895
  %v911 = vpack.c.b16 %v898, %v897
  %v912 = vpack.c.b16 %v900, %v899
  %v913 = vpack.c.b16 %v902, %v901
  %v914 = vpack.c.b16 %v904, %v903
  %v915 = vpack.c.b16 %v906, %v905
  %v916 = vpack.c.b16 %v908, %v907
  %925 = vmatprep.subr.bf16.mxu0 0
  %926 = vmatpush1.bf16.msra.mxu0 %v909
  %927 = vmatprep.subr.bf16.mxu0 0
  %928 = vmatpush1.bf16.msra.mxu0 %v910
  %929 = vmatprep.subr.bf16.mxu0 0
  %930 = vmatpush1.bf16.msra.mxu0 %v911
  %931 = vmatprep.subr.bf16.mxu0 0
  %932 = vmatpush1.bf16.msra.mxu0 %v912
  %933 = vmatprep.subr.bf16.mxu0 0
  %934 = vmatpush1.bf16.msra.mxu0 %v913
  %935 = vmatprep.subr.bf16.mxu0 0
  %936 = vmatpush1.bf16.msra.mxu0 %v914
  %937 = vmatprep.subr.bf16.mxu0 0
  %938 = vmatpush1.bf16.msra.mxu0 %v915
  %939 = vmatprep.subr.bf16.mxu0 0
  %940 = vmatpush1.bf16.msra.mxu0 %v916
  %941 = vmatprep.subr.bf16.mxu0 0
  %942 = vmatpush1.bf16.msra.mxu0 0
  %943 = vmatprep.subr.bf16.mxu0 0
  %944 = vmatpush1.bf16.msra.mxu0 0
  %945 = vmatprep.subr.bf16.mxu0 0
  %946 = vmatpush1.bf16.msra.mxu0 0
  %947 = vmatprep.subr.bf16.mxu0 0
  %948 = vmatpush1.bf16.msra.mxu0 0
  %949 = vmatprep.subr.bf16.mxu0 0
  %950 = vmatpush1.bf16.msra.mxu0 0
  %951 = vmatprep.subr.bf16.mxu0 0
  %952 = vmatpush1.bf16.msra.mxu0 0
  %953 = vmatprep.subr.bf16.mxu0 0
  %954 = vmatpush1.bf16.msra.mxu0 0
  %955 = vmatprep.subr.bf16.mxu0 0
  %956 = vmatpush1.bf16.msra.mxu0 0
  %957 = vmatprep.mubr.bf16.mxu0 0
  %958 = vmatmul.mubr.bf16.gmra.mrb[0].mxu0 %v540
  %v959 = vpop.f32.mrb[0].mxu0
  %v960 = vadd.f32 0.0, %v959
  %v961 = vpop.f32.mrb[0].mxu0
  %v962 = vpop.f32.mrb[0].mxu0
  %v963 = vadd.f32 0.0, %v962
  %v964 = vpop.f32.mrb[0].mxu0
  %965 = vdwg.mxu0
  %v966 = vadd.f32 %v858, %v960
  %v967 = vadd.f32 %v859, %v963
  %p968 = scmp.eq.s32.totalorder 0, 0
  // Predicated region
  $region26: #{region_prop_forward.3} parent=0 // pred_check
    %p969 = pneg %p968
  $region27: #{region_prop_forward.3} parent=0 // pred_check_branch
    %971 = sbr.rel (%p969) target = $region29
  $region28: #{region_prop_forward.3} parent=0 // pred_region
    %972 = vst [vmem:[%s6] sm:$0xff] 0.0
    %973 = vst [vmem:[%s6 + $0x8] sm:$0xff] 0.0
  $region29: #{region_prop_forward.3} parent=0 // pred_fallthru
    _
  %v974 = vld [vmem:[%s6] sm:$0xff]
  %v975 = vld [vmem:[%s6 + $0x8] sm:$0xff]
  %v976 = vadd.f32 %v974, %v966
  %v977 = vadd.f32 %v975, %v967
  %978 = vst [vmem:[%s6] sm:$0xff] %v976
  %979 = vst [vmem:[%s6 + $0x8] sm:$0xff] %v977
  // Predicated region
  $region30: #{region_prop_forward.3} parent=0 // pred_check
    %p980 = pneg %p968
  $region31: #{region_prop_forward.3} parent=0 // pred_check_branch
    %982 = sbr.rel (%p980) target = $region33
  $region32: #{region_prop_forward.3} parent=0 // pred_region
    %v983 = vld [vmem:[%s6] sm:$0xff]
    %v984 = vld [vmem:[%s6 + $0x8] sm:$0xff]
    %v985 = vld [vmem:[%s5] sm:$0x1]
    %v987 = vlaneseq
    %v988 = vshrl.u32 %v987, 7
    %v989 = vsub.s32 0, %v988
    %v990 = vrot.slane %v985, %v989
    %v992 = vadd.f32 %v983, %v990
    %v993 = vadd.f32 %v984, %v990
    %994 = vmax.xlane.f32.xlu0 %v992
    %v995 = vpop.xlane.xlu0 %994
    %996 = vmax.xlane.f32.xlu0 %v993
    %v997 = vpop.xlane.xlu0 %996
    %v998 = vsub.f32 %v992, %v995
    %v999 = vsub.f32 %v993, %v997
    %v1000 = vmul.f32 %v998, 1.442695
    %v1001 = vpow.pop %v1000
    %v1002 = vmul.f32 %v999, 1.442695
    %v1003 = vpow.pop %v1002
    %1004 = vadd.xlane.f32.xlu0 %v1001
    %v1005 = vpop.xlane.xlu0 %1004
    %1006 = vadd.xlane.f32.xlu0 %v1003
    %v1007 = vpop.xlane.xlu0 %1006
    %v1008 = vrcp.pop %v1005
    %v1009 = vmul.f32 %v1001, %v1008
    %v1010 = vrcp.pop %v1007
    %v1011 = vmul.f32 %v1003, %v1010
    %1012 = vst [vmem:[%s6] sm:$0xff] %v1009
    %1013 = vst [vmem:[%s6 + $0x8] sm:$0xff] %v1011
  $region33: #{region_prop_forward.3} parent=0 // pred_fallthru
    _
  // Predicated region
  $region34: #{region_prop_forward.3} parent=0 // pred_check
    _
  $region35: #{region_prop_forward.3} parent=0 // pred_check_branch
    %1015 = sbr.rel (0) target = $region37
  $region36: #{region_prop_forward.3} parent=0 // pred_region
    _
  $region37: #{region_prop_forward.3} parent=0 // pred_fallthru
    _
  // Predicated region
  $region38: #{region_prop_forward.3} parent=0 // pred_check
    _
  $region39: #{region_prop_forward.3} parent=0 // pred_check_branch
    %1017 = sbr.rel (0) target = $region41
  $region40: #{region_prop_forward.3} parent=0 // pred_region
    _
  $region41: #{region_prop_forward.3} parent=0 // pred_fallthru
    _

// kernel: region_prop_forward.2
$region0: #{region_prop_forward.2}
  #allocation0 [shape = 'u32[]', space=smem, size = 0x4, offset = 0x4, fixed_abs, tag = 'smem constant byte address 0x4 - core index']
  #allocation1 [shape = 'u32[144,128]{1,0:T(1,128)}', space=vmem, size = 0x12000, scoped, tag = 'internal scratch']
  %s0 = inlined_call_operand.vmem [shape: bf16[16,4096], index: 0, kind: input, shape index: {}]
  %s1 = inlined_call_operand.hbm [shape: bf16[4096,128], index: 1, kind: input, shape index: {}]
  %s2 = inlined_call_operand.vmem [shape: f32[1,128], index: 2, kind: input, shape index: {}]
  %s3 = inlined_call_operand.vmem [shape: f32[16,128], index: 3, kind: output, shape index: {}]
  %s4 = sld [smem:[#allocation0]]
  $region34: #{region_prop_forward.2} parent=0
    _
  %s6 = ssub.s32 1, %s4
  %s7 = scalar_select 0, %s6, %s4
  $region1: #{region_prop_forward.2} parent=0
    #allocation2 [shape = 'u8[1048576]{0}', space=vmem, size = 0x100000, scoped, tag = 'input window, operand 1, single buffered']
    #allocation3 [shape = 's32[1]{0}', space=sflag, size = 0x4, scoped, tag = 'scoped memory for region_prop_forward.2']
    %8 = vsyncpa [#allocation3], 0
    // Predicated region
    $region2: #{region_prop_forward.2} parent=1 // pred_check
      _
    $region3: #{region_prop_forward.2} parent=1 // pred_check_branch
      %10 = sbr.rel (0) target = $region5
    $region4: #{region_prop_forward.2} parent=1 // pred_region
      _
    $region5: #{region_prop_forward.2} parent=1 // pred_fallthru
      _
    // Predicated region
    $region6: #{region_prop_forward.2} parent=1 // pred_check
      _
    $region7: #{region_prop_forward.2} parent=1 // pred_check_branch
      %12 = sbr.rel (0) target = $region9
    $region8: #{region_prop_forward.2} parent=1 // pred_region
      %s14 = ssub.s32 32768, 32768
      %15 = vsyncadd [#allocation3], %s14
      %s16 = sshll.u32 [#allocation2], 4
      %s17 = int_to_ptr.vmem [resolvable:$true] %s16
      %22 = dma.hbm_to_vmem [thread:$0]  %s1, 32768, %s17, [#allocation3], 64, 64, 4
    $region9: #{region_prop_forward.2} parent=1 // pred_fallthru
      _
    // Predicated region
    $region10: #{region_prop_forward.2} parent=1 // pred_check
      _
    $region11: #{region_prop_forward.2} parent=1 // pred_check_branch
      %24 = sbr.rel (0) target = $region13
    $region12: #{region_prop_forward.2} parent=1 // pred_region
      _
    $region13: #{region_prop_forward.2} parent=1 // pred_fallthru
      _
    // Predicated region
    $region14: #{region_prop_forward.2} parent=1 // pred_check
      _
    $region15: #{region_prop_forward.2} parent=1 // pred_check_branch
      %26 = sbr.rel (0) target = $region17
    $region16: #{region_prop_forward.2} parent=1 // pred_region
      %27 = dma.done [#allocation3], 32768
    $region17: #{region_prop_forward.2} parent=1 // pred_fallthru
      _
    %p29 = scmp.eq.s32.totalorder 0, 0
    // Predicated region
    $region18: #{region_prop_forward.2} parent=1 // pred_check
      %p30 = pneg %p29
    $region19: #{region_prop_forward.2} parent=1 // pred_check_branch
      %32 = sbr.rel (%p30) target = $region21
    $region20: #{region_prop_forward.2} parent=1 // pred_region
      %33 = vst [vmem:[%s3] sm:$0xff] 0.0
      %34 = vst [vmem:[%s3 + $0x8] sm:$0xff] 0.0
    $region21: #{region_prop_forward.2} parent=1 // pred_fallthru
      _
    %v35 = vld [vmem:[%s3] sm:$0xff]
    %v36 = vld [vmem:[%s3 + $0x8] sm:$0xff]
    %v37 = vld [vmem:[%s0] sm:$0xff]
    %v38 = vld [vmem:[%s0 + $0x8] sm:$0xff]
    %v39 = vld [vmem:[%s0 + $0x10] sm:$0xff]
    %v40 = vld [vmem:[%s0 + $0x18] sm:$0xff]
    %v41 = vld [vmem:[%s0 + $0x20] sm:$0xff]
    %v42 = vld [vmem:[%s0 + $0x28] sm:$0xff]
    %v43 = vld [vmem:[%s0 + $0x30] sm:$0xff]
    %v44 = vld [vmem:[%s0 + $0x38] sm:$0xff]
    %v45 = vld [vmem:[%s0 + $0x40] sm:$0xff]
    %v46 = vld [vmem:[%s0 + $0x48] sm:$0xff]
    %v47 = vld [vmem:[%s0 + $0x50] sm:$0xff]
    %v48 = vld [vmem:[%s0 + $0x58] sm:$0xff]
    %v49 = vld [vmem:[%s0 + $0x60] sm:$0xff]
    %v50 = vld [vmem:[%s0 + $0x68] sm:$0xff]
    %v51 = vld [vmem:[%s0 + $0x70] sm:$0xff]
    %v52 = vld [vmem:[%s0 + $0x78] sm:$0xff]
    %v53 = vld [vmem:[%s0 + $0x80] sm:$0xff]
    %v54 = vld [vmem:[%s0 + $0x88] sm:$0xff]
    %v55 = vld [vmem:[%s0 + $0x90] sm:$0xff]
    %v56 = vld [vmem:[%s0 + $0x98] sm:$0xff]
    %v57 = vld [vmem:[%s0 + $0xa0] sm:$0xff]
    %v58 = vld [vmem:[%s0 + $0xa8] sm:$0xff]
    %v59 = vld [vmem:[%s0 + $0xb0] sm:$0xff]
    %v60 = vld [vmem:[%s0 + $0xb8] sm:$0xff]
    %v61 = vld [vmem:[%s0 + $0xc0] sm:$0xff]
    %v62 = vld [vmem:[%s0 + $0xc8] sm:$0xff]
    %v63 = vld [vmem:[%s0 + $0xd0] sm:$0xff]
    %v64 = vld [vmem:[%s0 + $0xd8] sm:$0xff]
    %v65 = vld [vmem:[%s0 + $0xe0] sm:$0xff]
    %v66 = vld [vmem:[%s0 + $0xe8] sm:$0xff]
    %v67 = vld [vmem:[%s0 + $0xf0] sm:$0xff]
    %v68 = vld [vmem:[%s0 + $0xf8] sm:$0xff]
    %v69 = vld [vmem:[#allocation2] sm:$0xf]
    %v70 = vld [vmem:[#allocation2 + $0x4] sm:$0xf]
    %v71 = vld [vmem:[#allocation2 + $0x8] sm:$0xf]
    %v72 = vld [vmem:[#allocation2 + $0xc] sm:$0xf]
    %v73 = vld [vmem:[#allocation2 + $0x10] sm:$0xf]
    %v74 = vld [vmem:[#allocation2 + $0x14] sm:$0xf]
    %v75 = vld [vmem:[#allocation2 + $0x18] sm:$0xf]
    %v76 = vld [vmem:[#allocation2 + $0x1c] sm:$0xf]
    %v77 = vld [vmem:[#allocation2 + $0x20] sm:$0xf]
    %v78 = vld [vmem:[#allocation2 + $0x24] sm:$0xf]
    %v79 = vld [vmem:[#allocation2 + $0x28] sm:$0xf]
    %v80 = vld [vmem:[#allocation2 + $0x2c] sm:$0xf]
    %v81 = vld [vmem:[#allocation2 + $0x30] sm:$0xf]
    %v82 = vld [vmem:[#allocation2 + $0x34] sm:$0xf]
    %v83 = vld [vmem:[#allocation2 + $0x38] sm:$0xf]
    %v84 = vld [vmem:[#allocation2 + $0x3c] sm:$0xf]
    %v85 = vld [vmem:[#allocation2 + $0x40] sm:$0xf]
    %v86 = vld [vmem:[#allocation2 + $0x44] sm:$0xf]
    %v87 = vld [vmem:[#allocation2 + $0x48] sm:$0xf]
    %v88 = vld [vmem:[#allocation2 + $0x4c] sm:$0xf]
    %v89 = vld [vmem:[#allocation2 + $0x50] sm:$0xf]
    %v90 = vld [vmem:[#allocation2 + $0x54] sm:$0xf]
    %v91 = vld [vmem:[#allocation2 + $0x58] sm:$0xf]
    %v92 = vld [vmem:[#allocation2 + $0x5c] sm:$0xf]
    %v93 = vld [vmem:[#allocation2 + $0x60] sm:$0xf]
    %v94 = vld [vmem:[#allocation2 + $0x64] sm:$0xf]
    %v95 = vld [vmem:[#allocation2 + $0x68] sm:$0xf]
    %v96 = vld [vmem:[#allocation2 + $0x6c] sm:$0xf]
    %v97 = vld [vmem:[#allocation2 + $0x70] sm:$0xf]
    %v98 = vld [vmem:[#allocation2 + $0x74] sm:$0xf]
    %v99 = vld [vmem:[#allocation2 + $0x78] sm:$0xf]
    %v100 = vld [vmem:[#allocation2 + $0x7c] sm:$0xf]
    %v101 = vld [vmem:[#allocation2 + $0x80] sm:$0xf]
    %v102 = vld [vmem:[#allocation2 + $0x84] sm:$0xf]
    %v103 = vld [vmem:[#allocation2 + $0x88] sm:$0xf]
    %v104 = vld [vmem:[#allocation2 + $0x8c] sm:$0xf]
    %v105 = vld [vmem:[#allocation2 + $0x90] sm:$0xf]
    %v106 = vld [vmem:[#allocation2 + $0x94] sm:$0xf]
    %v107 = vld [vmem:[#allocation2 + $0x98] sm:$0xf]
    %v108 = vld [vmem:[#allocation2 + $0x9c] sm:$0xf]
    %v109 = vld [vmem:[#allocation2 + $0xa0] sm:$0xf]
    %v110 = vld [vmem:[#allocation2 + $0xa4] sm:$0xf]
    %v111 = vld [vmem:[#allocation2 + $0xa8] sm:$0xf]
    %v112 = vld [vmem:[#allocation2 + $0xac] sm:$0xf]
    %v113 = vld [vmem:[#allocation2 + $0xb0] sm:$0xf]
    %v114 = vld [vmem:[#allocation2 + $0xb4] sm:$0xf]
    %v115 = vld [vmem:[#allocation2 + $0xb8] sm:$0xf]
    %v116 = vld [vmem:[#allocation2 + $0xbc] sm:$0xf]
    %v117 = vld [vmem:[#allocation2 + $0xc0] sm:$0xf]
    %v118 = vld [vmem:[#allocation2 + $0xc4] sm:$0xf]
    %v119 = vld [vmem:[#allocation2 + $0xc8] sm:$0xf]
    %v120 = vld [vmem:[#allocation2 + $0xcc] sm:$0xf]
    %v121 = vld [vmem:[#allocation2 + $0xd0] sm:$0xf]
    %v122 = vld [vmem:[#allocation2 + $0xd4] sm:$0xf]
    %v123 = vld [vmem:[#allocation2 + $0xd8] sm:$0xf]
    %v124 = vld [vmem:[#allocation2 + $0xdc] sm:$0xf]
    %v125 = vld [vmem:[#allocation2 + $0xe0] sm:$0xf]
    %v126 = vld [vmem:[#allocation2 + $0xe4] sm:$0xf]
    %v127 = vld [vmem:[#allocation2 + $0xe8] sm:$0xf]
    %v128 = vld [vmem:[#allocation2 + $0xec] sm:$0xf]
    %v129 = vld [vmem:[#allocation2 + $0xf0] sm:$0xf]
    %v130 = vld [vmem:[#allocation2 + $0xf4] sm:$0xf]
    %v131 = vld [vmem:[#allocation2 + $0xf8] sm:$0xf]
    %v132 = vld [vmem:[#allocation2 + $0xfc] sm:$0xf]
    %v133 = vld [vmem:[#allocation2 + $0x100] sm:$0xf]
    %v134 = vld [vmem:[#allocation2 + $0x104] sm:$0xf]
    %v135 = vld [vmem:[#allocation2 + $0x108] sm:$0xf]
    %v136 = vld [vmem:[#allocation2 + $0x10c] sm:$0xf]
    %v137 = vld [vmem:[#allocation2 + $0x110] sm:$0xf]
    %v138 = vld [vmem:[#allocation2 + $0x114] sm:$0xf]
    %v139 = vld [vmem:[#allocation2 + $0x118] sm:$0xf]
    %v140 = vld [vmem:[#allocation2 + $0x11c] sm:$0xf]
    %v141 = vld [vmem:[#allocation2 + $0x120] sm:$0xf]
    %v142 = vld [vmem:[#allocation2 + $0x124] sm:$0xf]
    %v143 = vld [vmem:[#allocation2 + $0x128] sm:$0xf]
    %v144 = vld [vmem:[#allocation2 + $0x12c] sm:$0xf]
    %v145 = vld [vmem:[#allocation2 + $0x130] sm:$0xf]
    %v146 = vld [vmem:[#allocation2 + $0x134] sm:$0xf]
    %v147 = vld [vmem:[#allocation2 + $0x138] sm:$0xf]
    %v148 = vld [vmem:[#allocation2 + $0x13c] sm:$0xf]
    %v149 = vld [vmem:[#allocation2 + $0x140] sm:$0xf]
    %v150 = vld [vmem:[#allocation2 + $0x144] sm:$0xf]
    %v151 = vld [vmem:[#allocation2 + $0x148] sm:$0xf]
    %v152 = vld [vmem:[#allocation2 + $0x14c] sm:$0xf]
    %v153 = vld [vmem:[#allocation2 + $0x150] sm:$0xf]
    %v154 = vld [vmem:[#allocation2 + $0x154] sm:$0xf]
    %v155 = vld [vmem:[#allocation2 + $0x158] sm:$0xf]
    %v156 = vld [vmem:[#allocation2 + $0x15c] sm:$0xf]
    %v157 = vld [vmem:[#allocation2 + $0x160] sm:$0xf]
    %v158 = vld [vmem:[#allocation2 + $0x164] sm:$0xf]
    %v159 = vld [vmem:[#allocation2 + $0x168] sm:$0xf]
    %v160 = vld [vmem:[#allocation2 + $0x16c] sm:$0xf]
    %v161 = vld [vmem:[#allocation2 + $0x170] sm:$0xf]
    %v162 = vld [vmem:[#allocation2 + $0x174] sm:$0xf]
    %v163 = vld [vmem:[#allocation2 + $0x178] sm:$0xf]
    %v164 = vld [vmem:[#allocation2 + $0x17c] sm:$0xf]
    %v165 = vld [vmem:[#allocation2 + $0x180] sm:$0xf]
    %v166 = vld [vmem:[#allocation2 + $0x184] sm:$0xf]
    %v167 = vld [vmem:[#allocation2 + $0x188] sm:$0xf]
    %v168 = vld [vmem:[#allocation2 + $0x18c] sm:$0xf]
    %v169 = vld [vmem:[#allocation2 + $0x190] sm:$0xf]
    %v170 = vld [vmem:[#allocation2 + $0x194] sm:$0xf]
    %v171 = vld [vmem:[#allocation2 + $0x198] sm:$0xf]
    %v172 = vld [vmem:[#allocation2 + $0x19c] sm:$0xf]
    %v173 = vld [vmem:[#allocation2 + $0x1a0] sm:$0xf]
    %v174 = vld [vmem:[#allocation2 + $0x1a4] sm:$0xf]
    %v175 = vld [vmem:[#allocation2 + $0x1a8] sm:$0xf]
    %v176 = vld [vmem:[#allocation2 + $0x1ac] sm:$0xf]
    %v177 = vld [vmem:[#allocation2 + $0x1b0] sm:$0xf]
    %v178 = vld [vmem:[#allocation2 + $0x1b4] sm:$0xf]
    %v179 = vld [vmem:[#allocation2 + $0x1b8] sm:$0xf]
    %v180 = vld [vmem:[#allocation2 + $0x1bc] sm:$0xf]
    %v181 = vld [vmem:[#allocation2 + $0x1c0] sm:$0xf]
    %v182 = vld [vmem:[#allocation2 + $0x1c4] sm:$0xf]
    %v183 = vld [vmem:[#allocation2 + $0x1c8] sm:$0xf]
    %v184 = vld [vmem:[#allocation2 + $0x1cc] sm:$0xf]
    %v185 = vld [vmem:[#allocation2 + $0x1d0] sm:$0xf]
    %v186 = vld [vmem:[#allocation2 + $0x1d4] sm:$0xf]
    %v187 = vld [vmem:[#allocation2 + $0x1d8] sm:$0xf]
    %v188 = vld [vmem:[#allocation2 + $0x1dc] sm:$0xf]
    %v189 = vld [vmem:[#allocation2 + $0x1e0] sm:$0xf]
    %v190 = vld [vmem:[#allocation2 + $0x1e4] sm:$0xf]
    %v191 = vld [vmem:[#allocation2 + $0x1e8] sm:$0xf]
    %v192 = vld [vmem:[#allocation2 + $0x1ec] sm:$0xf]
    %v193 = vld [vmem:[#allocation2 + $0x1f0] sm:$0xf]
    %v194 = vld [vmem:[#allocation2 + $0x1f4] sm:$0xf]
    %v195 = vld [vmem:[#allocation2 + $0x1f8] sm:$0xf]
    %v196 = vld [vmem:[#allocation2 + $0x1fc] sm:$0xf]
    %v197 = vld [vmem:[#allocation2 + $0x200] sm:$0xf]
    %v198 = vld [vmem:[#allocation2 + $0x204] sm:$0xf]
    %v199 = vld [vmem:[#allocation2 + $0x208] sm:$0xf]
    %v200 = vld [vmem:[#allocation2 + $0x20c] sm:$0xf]
    %v201 = vld [vmem:[#allocation2 + $0x210] sm:$0xf]
    %v202 = vld [vmem:[#allocation2 + $0x214] sm:$0xf]
    %v203 = vld [vmem:[#allocation2 + $0x218] sm:$0xf]
    %v204 = vld [vmem:[#allocation2 + $0x21c] sm:$0xf]
    %v205 = vld [vmem:[#allocation2 + $0x220] sm:$0xf]
    %v206 = vld [vmem:[#allocation2 + $0x224] sm:$0xf]
    %v207 = vld [vmem:[#allocation2 + $0x228] sm:$0xf]
    %v208 = vld [vmem:[#allocation2 + $0x22c] sm:$0xf]
    %v209 = vld [vmem:[#allocation2 + $0x230] sm:$0xf]
    %v210 = vld [vmem:[#allocation2 + $0x234] sm:$0xf]
    %v211 = vld [vmem:[#allocation2 + $0x238] sm:$0xf]
    %v212 = vld [vmem:[#allocation2 + $0x23c] sm:$0xf]
    %v213 = vld [vmem:[#allocation2 + $0x240] sm:$0xf]
    %v214 = vld [vmem:[#allocation2 + $0x244] sm:$0xf]
    %v215 = vld [vmem:[#allocation2 + $0x248] sm:$0xf]
    %v216 = vld [vmem:[#allocation2 + $0x24c] sm:$0xf]
    %v217 = vld [vmem:[#allocation2 + $0x250] sm:$0xf]
    %v218 = vld [vmem:[#allocation2 + $0x254] sm:$0xf]
    %v219 = vld [vmem:[#allocation2 + $0x258] sm:$0xf]
    %v220 = vld [vmem:[#allocation2 + $0x25c] sm:$0xf]
    %v221 = vld [vmem:[#allocation2 + $0x260] sm:$0xf]
    %v222 = vld [vmem:[#allocation2 + $0x264] sm:$0xf]
    %v223 = vld [vmem:[#allocation2 + $0x268] sm:$0xf]
    %v224 = vld [vmem:[#allocation2 + $0x26c] sm:$0xf]
    %v225 = vld [vmem:[#allocation2 + $0x270] sm:$0xf]
    %v226 = vld [vmem:[#allocation2 + $0x274] sm:$0xf]
    %v227 = vld [vmem:[#allocation2 + $0x278] sm:$0xf]
    %v228 = vld [vmem:[#allocation2 + $0x27c] sm:$0xf]
    %v229 = vld [vmem:[#allocation2 + $0x280] sm:$0xf]
    %v230 = vld [vmem:[#allocation2 + $0x284] sm:$0xf]
    %v231 = vld [vmem:[#allocation2 + $0x288] sm:$0xf]
    %v232 = vld [vmem:[#allocation2 + $0x28c] sm:$0xf]
    %v233 = vld [vmem:[#allocation2 + $0x290] sm:$0xf]
    %v234 = vld [vmem:[#allocation2 + $0x294] sm:$0xf]
    %v235 = vld [vmem:[#allocation2 + $0x298] sm:$0xf]
    %v236 = vld [vmem:[#allocation2 + $0x29c] sm:$0xf]
    %v237 = vld [vmem:[#allocation2 + $0x2a0] sm:$0xf]
    %v238 = vld [vmem:[#allocation2 + $0x2a4] sm:$0xf]
    %v239 = vld [vmem:[#allocation2 + $0x2a8] sm:$0xf]
    %v240 = vld [vmem:[#allocation2 + $0x2ac] sm:$0xf]
    %v241 = vld [vmem:[#allocation2 + $0x2b0] sm:$0xf]
    %v242 = vld [vmem:[#allocation2 + $0x2b4] sm:$0xf]
    %v243 = vld [vmem:[#allocation2 + $0x2b8] sm:$0xf]
    %v244 = vld [vmem:[#allocation2 + $0x2bc] sm:$0xf]
    %v245 = vld [vmem:[#allocation2 + $0x2c0] sm:$0xf]
    %v246 = vld [vmem:[#allocation2 + $0x2c4] sm:$0xf]
    %v247 = vld [vmem:[#allocation2 + $0x2c8] sm:$0xf]
    %v248 = vld [vmem:[#allocation2 + $0x2cc] sm:$0xf]
    %v249 = vld [vmem:[#allocation2 + $0x2d0] sm:$0xf]
    %v250 = vld [vmem:[#allocation2 + $0x2d4] sm:$0xf]
    %v251 = vld [vmem:[#allocation2 + $0x2d8] sm:$0xf]
    %v252 = vld [vmem:[#allocation2 + $0x2dc] sm:$0xf]
    %v253 = vld [vmem:[#allocation2 + $0x2e0] sm:$0xf]
    %v254 = vld [vmem:[#allocation2 + $0x2e4] sm:$0xf]
    %v255 = vld [vmem:[#allocation2 + $0x2e8] sm:$0xf]
    %v256 = vld [vmem:[#allocation2 + $0x2ec] sm:$0xf]
    %v257 = vld [vmem:[#allocation2 + $0x2f0] sm:$0xf]
    %v258 = vld [vmem:[#allocation2 + $0x2f4] sm:$0xf]
    %v259 = vld [vmem:[#allocation2 + $0x2f8] sm:$0xf]
    %v260 = vld [vmem:[#allocation2 + $0x2fc] sm:$0xf]
    %v261 = vld [vmem:[#allocation2 + $0x300] sm:$0xf]
    %v262 = vld [vmem:[#allocation2 + $0x304] sm:$0xf]
    %v263 = vld [vmem:[#allocation2 + $0x308] sm:$0xf]
    %v264 = vld [vmem:[#allocation2 + $0x30c] sm:$0xf]
    %v265 = vld [vmem:[#allocation2 + $0x310] sm:$0xf]
    %v266 = vld [vmem:[#allocation2 + $0x314] sm:$0xf]
    %v267 = vld [vmem:[#allocation2 + $0x318] sm:$0xf]
    %v268 = vld [vmem:[#allocation2 + $0x31c] sm:$0xf]
    %v269 = vld [vmem:[#allocation2 + $0x320] sm:$0xf]
    %v270 = vld [vmem:[#allocation2 + $0x324] sm:$0xf]
    %v271 = vld [vmem:[#allocation2 + $0x328] sm:$0xf]
    %v272 = vld [vmem:[#allocation2 + $0x32c] sm:$0xf]
    %v273 = vld [vmem:[#allocation2 + $0x330] sm:$0xf]
    %v274 = vld [vmem:[#allocation2 + $0x334] sm:$0xf]
    %v275 = vld [vmem:[#allocation2 + $0x338] sm:$0xf]
    %v276 = vld [vmem:[#allocation2 + $0x33c] sm:$0xf]
    %v277 = vld [vmem:[#allocation2 + $0x340] sm:$0xf]
    %v278 = vld [vmem:[#allocation2 + $0x344] sm:$0xf]
    %v279 = vld [vmem:[#allocation2 + $0x348] sm:$0xf]
    %v280 = vld [vmem:[#allocation2 + $0x34c] sm:$0xf]
    %v281 = vld [vmem:[#allocation2 + $0x350] sm:$0xf]
    %v282 = vld [vmem:[#allocation2 + $0x354] sm:$0xf]
    %v283 = vld [vmem:[#allocation2 + $0x358] sm:$0xf]
    %v284 = vld [vmem:[#allocation2 + $0x35c] sm:$0xf]
    %v285 = vld [vmem:[#allocation2 + $0x360] sm:$0xf]
    %v286 = vld [vmem:[#allocation2 + $0x364] sm:$0xf]
    %v287 = vld [vmem:[#allocation2 + $0x368] sm:$0xf]
    %v288 = vld [vmem:[#allocation2 + $0x36c] sm:$0xf]
    %v289 = vld [vmem:[#allocation2 + $0x370] sm:$0xf]
    %v290 = vld [vmem:[#allocation2 + $0x374] sm:$0xf]
    %v291 = vld [vmem:[#allocation2 + $0x378] sm:$0xf]
    %v292 = vld [vmem:[#allocation2 + $0x37c] sm:$0xf]
    %v293 = vld [vmem:[#allocation2 + $0x380] sm:$0xf]
    %v294 = vld [vmem:[#allocation2 + $0x384] sm:$0xf]
    %v295 = vld [vmem:[#allocation2 + $0x388] sm:$0xf]
    %v296 = vld [vmem:[#allocation2 + $0x38c] sm:$0xf]
    %v297 = vld [vmem:[#allocation2 + $0x390] sm:$0xf]
    %v298 = vld [vmem:[#allocation2 + $0x394] sm:$0xf]
    %v299 = vld [vmem:[#allocation2 + $0x398] sm:$0xf]
    %v300 = vld [vmem:[#allocation2 + $0x39c] sm:$0xf]
    %v301 = vld [vmem:[#allocation2 + $0x3a0] sm:$0xf]
    %v302 = vld [vmem:[#allocation2 + $0x3a4] sm:$0xf]
    %v303 = vld [vmem:[#allocation2 + $0x3a8] sm:$0xf]
    %v304 = vld [vmem:[#allocation2 + $0x3ac] sm:$0xf]
    %v305 = vld [vmem:[#allocation2 + $0x3b0] sm:$0xf]
    %v306 = vld [vmem:[#allocation2 + $0x3b4] sm:$0xf]
    %v307 = vld [vmem:[#allocation2 + $0x3b8] sm:$0xf]
    %v308 = vld [vmem:[#allocation2 + $0x3bc] sm:$0xf]
    %v309 = vld [vmem:[#allocation2 + $0x3c0] sm:$0xf]
    %v310 = vld [vmem:[#allocation2 + $0x3c4] sm:$0xf]
    %v311 = vld [vmem:[#allocation2 + $0x3c8] sm:$0xf]
    %v312 = vld [vmem:[#allocation2 + $0x3cc] sm:$0xf]
    %v313 = vld [vmem:[#allocation2 + $0x3d0] sm:$0xf]
    %v314 = vld [vmem:[#allocation2 + $0x3d4] sm:$0xf]
    %v315 = vld [vmem:[#allocation2 + $0x3d8] sm:$0xf]
    %v316 = vld [vmem:[#allocation2 + $0x3dc] sm:$0xf]
    %v317 = vld [vmem:[#allocation2 + $0x3e0] sm:$0xf]
    %v318 = vld [vmem:[#allocation2 + $0x3e4] sm:$0xf]
    %v319 = vld [vmem:[#allocation2 + $0x3e8] sm:$0xf]
    %v320 = vld [vmem:[#allocation2 + $0x3ec] sm:$0xf]
    %v321 = vld [vmem:[#allocation2 + $0x3f0] sm:$0xf]
    %v322 = vld [vmem:[#allocation2 + $0x3f4] sm:$0xf]
    %v323 = vld [vmem:[#allocation2 + $0x3f8] sm:$0xf]
    %v324 = vld [vmem:[#allocation2 + $0x3fc] sm:$0xf]
    %v325 = vld [vmem:[#allocation2 + $0x400] sm:$0xf]
    %v326 = vld [vmem:[#allocation2 + $0x404] sm:$0xf]
    %v327 = vld [vmem:[#allocation2 + $0x408] sm:$0xf]
    %v328 = vld [vmem:[#allocation2 + $0x40c] sm:$0xf]
    %v329 = vld [vmem:[#allocation2 + $0x410] sm:$0xf]
    %v330 = vld [vmem:[#allocation2 + $0x414] sm:$0xf]
    %v331 = vld [vmem:[#allocation2 + $0x418] sm:$0xf]
    %v332 = vld [vmem:[#allocation2 + $0x41c] sm:$0xf]
    %v333 = vld [vmem:[#allocation2 + $0x420] sm:$0xf]
    %v334 = vld [vmem:[#allocation2 + $0x424] sm:$0xf]
    %v335 = vld [vmem:[#allocation2 + $0x428] sm:$0xf]
    %v336 = vld [vmem:[#allocation2 + $0x42c] sm:$0xf]
    %v337 = vld [vmem:[#allocation2 + $0x430] sm:$0xf]
    %v338 = vld [vmem:[#allocation2 + $0x434] sm:$0xf]
    %v339 = vld [vmem:[#allocation2 + $0x438] sm:$0xf]
    %v340 = vld [vmem:[#allocation2 + $0x43c] sm:$0xf]
    %v341 = vld [vmem:[#allocation2 + $0x440] sm:$0xf]
    %v342 = vld [vmem:[#allocation2 + $0x444] sm:$0xf]
    %v343 = vld [vmem:[#allocation2 + $0x448] sm:$0xf]
    %v344 = vld [vmem:[#allocation2 + $0x44c] sm:$0xf]
    %v345 = vld [vmem:[#allocation2 + $0x450] sm:$0xf]
    %v346 = vld [vmem:[#allocation2 + $0x454] sm:$0xf]
    %v347 = vld [vmem:[#allocation2 + $0x458] sm:$0xf]
    %v348 = vld [vmem:[#allocation2 + $0x45c] sm:$0xf]
    %v349 = vld [vmem:[#allocation2 + $0x460] sm:$0xf]
    %v350 = vld [vmem:[#allocation2 + $0x464] sm:$0xf]
    %v351 = vld [vmem:[#allocation2 + $0x468] sm:$0xf]
    %v352 = vld [vmem:[#allocation2 + $0x46c] sm:$0xf]
    %v353 = vld [vmem:[#allocation2 + $0x470] sm:$0xf]
    %v354 = vld [vmem:[#allocation2 + $0x474] sm:$0xf]
    %v355 = vld [vmem:[#allocation2 + $0x478] sm:$0xf]
    %v356 = vld [vmem:[#allocation2 + $0x47c] sm:$0xf]
    %v357 = vld [vmem:[#allocation2 + $0x480] sm:$0xf]
    %v358 = vld [vmem:[#allocation2 + $0x484] sm:$0xf]
    %v359 = vld [vmem:[#allocation2 + $0x488] sm:$0xf]
    %v360 = vld [vmem:[#allocation2 + $0x48c] sm:$0xf]
    %v361 = vld [vmem:[#allocation2 + $0x490] sm:$0xf]
    %v362 = vld [vmem:[#allocation2 + $0x494] sm:$0xf]
    %v363 = vld [vmem:[#allocation2 + $0x498] sm:$0xf]
    %v364 = vld [vmem:[#allocation2 + $0x49c] sm:$0xf]
    %v365 = vld [vmem:[#allocation2 + $0x4a0] sm:$0xf]
    %v366 = vld [vmem:[#allocation2 + $0x4a4] sm:$0xf]
    %v367 = vld [vmem:[#allocation2 + $0x4a8] sm:$0xf]
    %v368 = vld [vmem:[#allocation2 + $0x4ac] sm:$0xf]
    %v369 = vld [vmem:[#allocation2 + $0x4b0] sm:$0xf]
    %v370 = vld [vmem:[#allocation2 + $0x4b4] sm:$0xf]
    %v371 = vld [vmem:[#allocation2 + $0x4b8] sm:$0xf]
    %v372 = vld [vmem:[#allocation2 + $0x4bc] sm:$0xf]
    %v373 = vld [vmem:[#allocation2 + $0x4c0] sm:$0xf]
    %v374 = vld [vmem:[#allocation2 + $0x4c4] sm:$0xf]
    %v375 = vld [vmem:[#allocation2 + $0x4c8] sm:$0xf]
    %v376 = vld [vmem:[#allocation2 + $0x4cc] sm:$0xf]
    %v377 = vld [vmem:[#allocation2 + $0x4d0] sm:$0xf]
    %v378 = vld [vmem:[#allocation2 + $0x4d4] sm:$0xf]
    %v379 = vld [vmem:[#allocation2 + $0x4d8] sm:$0xf]
    %v380 = vld [vmem:[#allocation2 + $0x4dc] sm:$0xf]
    %v381 = vld [vmem:[#allocation2 + $0x4e0] sm:$0xf]
    %v382 = vld [vmem:[#allocation2 + $0x4e4] sm:$0xf]
    %v383 = vld [vmem:[#allocation2 + $0x4e8] sm:$0xf]
    %v384 = vld [vmem:[#allocation2 + $0x4ec] sm:$0xf]
    %v385 = vld [vmem:[#allocation2 + $0x4f0] sm:$0xf]
    %v386 = vld [vmem:[#allocation2 + $0x4f4] sm:$0xf]
    %v387 = vld [vmem:[#allocation2 + $0x4f8] sm:$0xf]
    %v388 = vld [vmem:[#allocation2 + $0x4fc] sm:$0xf]
    %v389 = vld [vmem:[#allocation2 + $0x500] sm:$0xf]
    %v390 = vld [vmem:[#allocation2 + $0x504] sm:$0xf]
    %v391 = vld [vmem:[#allocation2 + $0x508] sm:$0xf]
    %v392 = vld [vmem:[#allocation2 + $0x50c] sm:$0xf]
    %v393 = vld [vmem:[#allocation2 + $0x510] sm:$0xf]
    %v394 = vld [vmem:[#allocation2 + $0x514] sm:$0xf]
    %v395 = vld [vmem:[#allocation2 + $0x518] sm:$0xf]
    %v396 = vld [vmem:[#allocation2 + $0x51c] sm:$0xf]
    %v397 = vld [vmem:[#allocation2 + $0x520] sm:$0xf]
    %v398 = vld [vmem:[#allocation2 + $0x524] sm:$0xf]
    %v399 = vld [vmem:[#allocation2 + $0x528] sm:$0xf]
    %v400 = vld [vmem:[#allocation2 + $0x52c] sm:$0xf]
    %v401 = vld [vmem:[#allocation2 + $0x530] sm:$0xf]
    %v402 = vld [vmem:[#allocation2 + $0x534] sm:$0xf]
    %v403 = vld [vmem:[#allocation2 + $0x538] sm:$0xf]
    %v404 = vld [vmem:[#allocation2 + $0x53c] sm:$0xf]
    %v405 = vld [vmem:[#allocation2 + $0x540] sm:$0xf]
    %v406 = vld [vmem:[#allocation2 + $0x544] sm:$0xf]
    %v407 = vld [vmem:[#allocation2 + $0x548] sm:$0xf]
    %v408 = vld [vmem:[#allocation2 + $0x54c] sm:$0xf]
    %v409 = vld [vmem:[#allocation2 + $0x550] sm:$0xf]
    %v410 = vld [vmem:[#allocation2 + $0x554] sm:$0xf]
    %v411 = vld [vmem:[#allocation2 + $0x558] sm:$0xf]
    %v412 = vld [vmem:[#allocation2 + $0x55c] sm:$0xf]
    %v413 = vld [vmem:[#allocation2 + $0x560] sm:$0xf]
    %v414 = vld [vmem:[#allocation2 + $0x564] sm:$0xf]
    %v415 = vld [vmem:[#allocation2 + $0x568] sm:$0xf]
    %v416 = vld [vmem:[#allocation2 + $0x56c] sm:$0xf]
    %v417 = vld [vmem:[#allocation2 + $0x570] sm:$0xf]
    %v418 = vld [vmem:[#allocation2 + $0x574] sm:$0xf]
    %v419 = vld [vmem:[#allocation2 + $0x578] sm:$0xf]
    %v420 = vld [vmem:[#allocation2 + $0x57c] sm:$0xf]
    %v421 = vld [vmem:[#allocation2 + $0x580] sm:$0xf]
    %v422 = vld [vmem:[#allocation2 + $0x584] sm:$0xf]
    %v423 = vld [vmem:[#allocation2 + $0x588] sm:$0xf]
    %v424 = vld [vmem:[#allocation2 + $0x58c] sm:$0xf]
    %v425 = vld [vmem:[#allocation2 + $0x590] sm:$0xf]
    %v426 = vld [vmem:[#allocation2 + $0x594] sm:$0xf]
    %v427 = vld [vmem:[#allocation2 + $0x598] sm:$0xf]
    %v428 = vld [vmem:[#allocation2 + $0x59c] sm:$0xf]
    %v429 = vld [vmem:[#allocation2 + $0x5a0] sm:$0xf]
    %v430 = vld [vmem:[#allocation2 + $0x5a4] sm:$0xf]
    %v431 = vld [vmem:[#allocation2 + $0x5a8] sm:$0xf]
    %v432 = vld [vmem:[#allocation2 + $0x5ac] sm:$0xf]
    %v433 = vld [vmem:[#allocation2 + $0x5b0] sm:$0xf]
    %v434 = vld [vmem:[#allocation2 + $0x5b4] sm:$0xf]
    %v435 = vld [vmem:[#allocation2 + $0x5b8] sm:$0xf]
    %v436 = vld [vmem:[#allocation2 + $0x5bc] sm:$0xf]
    %v437 = vld [vmem:[#allocation2 + $0x5c0] sm:$0xf]
    %v438 = vld [vmem:[#allocation2 + $0x5c4] sm:$0xf]
    %v439 = vld [vmem:[#allocation2 + $0x5c8] sm:$0xf]
    %v440 = vld [vmem:[#allocation2 + $0x5cc] sm:$0xf]
    %v441 = vld [vmem:[#allocation2 + $0x5d0] sm:$0xf]
    %v442 = vld [vmem:[#allocation2 + $0x5d4] sm:$0xf]
    %v443 = vld [vmem:[#allocation2 + $0x5d8] sm:$0xf]
    %v444 = vld [vmem:[#allocation2 + $0x5dc] sm:$0xf]
    %v445 = vld [vmem:[#allocation2 + $0x5e0] sm:$0xf]
    %v446 = vld [vmem:[#allocation2 + $0x5e4] sm:$0xf]
    %v447 = vld [vmem:[#allocation2 + $0x5e8] sm:$0xf]
    %v448 = vld [vmem:[#allocation2 + $0x5ec] sm:$0xf]
    %v449 = vld [vmem:[#allocation2 + $0x5f0] sm:$0xf]
    %v450 = vld [vmem:[#allocation2 + $0x5f4] sm:$0xf]
    %v451 = vld [vmem:[#allocation2 + $0x5f8] sm:$0xf]
    %v452 = vld [vmem:[#allocation2 + $0x5fc] sm:$0xf]
    %v453 = vld [vmem:[#allocation2 + $0x600] sm:$0xf]
    %v454 = vld [vmem:[#allocation2 + $0x604] sm:$0xf]
    %v455 = vld [vmem:[#allocation2 + $0x608] sm:$0xf]
    %v456 = vld [vmem:[#allocation2 + $0x60c] sm:$0xf]
    %v457 = vld [vmem:[#allocation2 + $0x610] sm:$0xf]
    %v458 = vld [vmem:[#allocation2 + $0x614] sm:$0xf]
    %v459 = vld [vmem:[#allocation2 + $0x618] sm:$0xf]
    %v460 = vld [vmem:[#allocation2 + $0x61c] sm:$0xf]
    %v461 = vld [vmem:[#allocation2 + $0x620] sm:$0xf]
    %v462 = vld [vmem:[#allocation2 + $0x624] sm:$0xf]
    %v463 = vld [vmem:[#allocation2 + $0x628] sm:$0xf]
    %v464 = vld [vmem:[#allocation2 + $0x62c] sm:$0xf]
    %v465 = vld [vmem:[#allocation2 + $0x630] sm:$0xf]
    %v466 = vld [vmem:[#allocation2 + $0x634] sm:$0xf]
    %v467 = vld [vmem:[#allocation2 + $0x638] sm:$0xf]
    %v468 = vld [vmem:[#allocation2 + $0x63c] sm:$0xf]
    %v469 = vld [vmem:[#allocation2 + $0x640] sm:$0xf]
    %v470 = vld [vmem:[#allocation2 + $0x644] sm:$0xf]
    %v471 = vld [vmem:[#allocation2 + $0x648] sm:$0xf]
    %v472 = vld [vmem:[#allocation2 + $0x64c] sm:$0xf]
    %v473 = vld [vmem:[#allocation2 + $0x650] sm:$0xf]
    %v474 = vld [vmem:[#allocation2 + $0x654] sm:$0xf]
    %v475 = vld [vmem:[#allocation2 + $0x658] sm:$0xf]
    %v476 = vld [vmem:[#allocation2 + $0x65c] sm:$0xf]
    %v477 = vld [vmem:[#allocation2 + $0x660] sm:$0xf]
    %v478 = vld [vmem:[#allocation2 + $0x664] sm:$0xf]
    %v479 = vld [vmem:[#allocation2 + $0x668] sm:$0xf]
    %v480 = vld [vmem:[#allocation2 + $0x66c] sm:$0xf]
    %v481 = vld [vmem:[#allocation2 + $0x670] sm:$0xf]
    %v482 = vld [vmem:[#allocation2 + $0x674] sm:$0xf]
    %v483 = vld [vmem:[#allocation2 + $0x678] sm:$0xf]
    %v484 = vld [vmem:[#allocation2 + $0x67c] sm:$0xf]
    %v485 = vld [vmem:[#allocation2 + $0x680] sm:$0xf]
    %v486 = vld [vmem:[#allocation2 + $0x684] sm:$0xf]
    %v487 = vld [vmem:[#allocation2 + $0x688] sm:$0xf]
    %v488 = vld [vmem:[#allocation2 + $0x68c] sm:$0xf]
    %v489 = vld [vmem:[#allocation2 + $0x690] sm:$0xf]
    %v490 = vld [vmem:[#allocation2 + $0x694] sm:$0xf]
    %v491 = vld [vmem:[#allocation2 + $0x698] sm:$0xf]
    %v492 = vld [vmem:[#allocation2 + $0x69c] sm:$0xf]
    %v493 = vld [vmem:[#allocation2 + $0x6a0] sm:$0xf]
    %v494 = vld [vmem:[#allocation2 + $0x6a4] sm:$0xf]
    %v495 = vld [vmem:[#allocation2 + $0x6a8] sm:$0xf]
    %v496 = vld [vmem:[#allocation2 + $0x6ac] sm:$0xf]
    %v497 = vld [vmem:[#allocation2 + $0x6b0] sm:$0xf]
    %v498 = vld [vmem:[#allocation2 + $0x6b4] sm:$0xf]
    %v499 = vld [vmem:[#allocation2 + $0x6b8] sm:$0xf]
    %v500 = vld [vmem:[#allocation2 + $0x6bc] sm:$0xf]
    %v501 = vld [vmem:[#allocation2 + $0x6c0] sm:$0xf]
    %v502 = vld [vmem:[#allocation2 + $0x6c4] sm:$0xf]
    %v503 = vld [vmem:[#allocation2 + $0x6c8] sm:$0xf]
    %v504 = vld [vmem:[#allocation2 + $0x6cc] sm:$0xf]
    %v505 = vld [vmem:[#allocation2 + $0x6d0] sm:$0xf]
    %v506 = vld [vmem:[#allocation2 + $0x6d4] sm:$0xf]
    %v507 = vld [vmem:[#allocation2 + $0x6d8] sm:$0xf]
    %v508 = vld [vmem:[#allocation2 + $0x6dc] sm:$0xf]
    %v509 = vld [vmem:[#allocation2 + $0x6e0] sm:$0xf]
    %v510 = vld [vmem:[#allocation2 + $0x6e4] sm:$0xf]
    %v511 = vld [vmem:[#allocation2 + $0x6e8] sm:$0xf]
    %v512 = vld [vmem:[#allocation2 + $0x6ec] sm:$0xf]
    %v513 = vld [vmem:[#allocation2 + $0x6f0] sm:$0xf]
    %v514 = vld [vmem:[#allocation2 + $0x6f4] sm:$0xf]
    %v515 = vld [vmem:[#allocation2 + $0x6f8] sm:$0xf]
    %v516 = vld [vmem:[#allocation2 + $0x6fc] sm:$0xf]
    %v517 = vld [vmem:[#allocation2 + $0x700] sm:$0xf]
    %v518 = vld [vmem:[#allocation2 + $0x704] sm:$0xf]
    %v519 = vld [vmem:[#allocation2 + $0x708] sm:$0xf]
    %v520 = vld [vmem:[#allocation2 + $0x70c] sm:$0xf]
    %v521 = vld [vmem:[#allocation2 + $0x710] sm:$0xf]
    %v522 = vld [vmem:[#allocation2 + $0x714] sm:$0xf]
    %v523 = vld [vmem:[#allocation2 + $0x718] sm:$0xf]
    %v524 = vld [vmem:[#allocation2 + $0x71c] sm:$0xf]
    %v525 = vld [vmem:[#allocation2 + $0x720] sm:$0xf]
    %v526 = vld [vmem:[#allocation2 + $0x724] sm:$0xf]
    %v527 = vld [vmem:[#allocation2 + $0x728] sm:$0xf]
    %v528 = vld [vmem:[#allocation2 + $0x72c] sm:$0xf]
    %v529 = vld [vmem:[#allocation2 + $0x730] sm:$0xf]
    %v530 = vld [vmem:[#allocation2 + $0x734] sm:$0xf]
    %v531 = vld [vmem:[#allocation2 + $0x738] sm:$0xf]
    %v532 = vld [vmem:[#allocation2 + $0x73c] sm:$0xf]
    %v533 = vld [vmem:[#allocation2 + $0x740] sm:$0xf]
    %v534 = vld [vmem:[#allocation2 + $0x744] sm:$0xf]
    %v535 = vld [vmem:[#allocation2 + $0x748] sm:$0xf]
    %v536 = vld [vmem:[#allocation2 + $0x74c] sm:$0xf]
    %v537 = vld [vmem:[#allocation2 + $0x750] sm:$0xf]
    %v538 = vld [vmem:[#allocation2 + $0x754] sm:$0xf]
    %v539 = vld [vmem:[#allocation2 + $0x758] sm:$0xf]
    %v540 = vld [vmem:[#allocation2 + $0x75c] sm:$0xf]
    %v541 = vld [vmem:[#allocation2 + $0x760] sm:$0xf]
    %v542 = vld [vmem:[#allocation2 + $0x764] sm:$0xf]
    %v543 = vld [vmem:[#allocation2 + $0x768] sm:$0xf]
    %v544 = vld [vmem:[#allocation2 + $0x76c] sm:$0xf]
    %v545 = vld [vmem:[#allocation2 + $0x770] sm:$0xf]
    %v546 = vld [vmem:[#allocation2 + $0x774] sm:$0xf]
    %v547 = vld [vmem:[#allocation2 + $0x778] sm:$0xf]
    %v548 = vld [vmem:[#allocation2 + $0x77c] sm:$0xf]
    %v549 = vld [vmem:[#allocation2 + $0x780] sm:$0xf]
    %v550 = vld [vmem:[#allocation2 + $0x784] sm:$0xf]
    %v551 = vld [vmem:[#allocation2 + $0x788] sm:$0xf]
    %v552 = vld [vmem:[#allocation2 + $0x78c] sm:$0xf]
    %v553 = vld [vmem:[#allocation2 + $0x790] sm:$0xf]
    %v554 = vld [vmem:[#allocation2 + $0x794] sm:$0xf]
    %v555 = vld [vmem:[#allocation2 + $0x798] sm:$0xf]
    %v556 = vld [vmem:[#allocation2 + $0x79c] sm:$0xf]
    %v557 = vld [vmem:[#allocation2 + $0x7a0] sm:$0xf]
    %v558 = vld [vmem:[#allocation2 + $0x7a4] sm:$0xf]
    %v559 = vld [vmem:[#allocation2 + $0x7a8] sm:$0xf]
    %v560 = vld [vmem:[#allocation2 + $0x7ac] sm:$0xf]
    %v561 = vld [vmem:[#allocation2 + $0x7b0] sm:$0xf]
    %v562 = vld [vmem:[#allocation2 + $0x7b4] sm:$0xf]
    %v563 = vld [vmem:[#allocation2 + $0x7b8] sm:$0xf]
    %v564 = vld [vmem:[#allocation2 + $0x7bc] sm:$0xf]
    %v565 = vld [vmem:[#allocation2 + $0x7c0] sm:$0xf]
    %v566 = vld [vmem:[#allocation2 + $0x7c4] sm:$0xf]
    %v567 = vld [vmem:[#allocation2 + $0x7c8] sm:$0xf]
    %v568 = vld [vmem:[#allocation2 + $0x7cc] sm:$0xf]
    %v569 = vld [vmem:[#allocation2 + $0x7d0] sm:$0xf]
    %v570 = vld [vmem:[#allocation2 + $0x7d4] sm:$0xf]
    %v571 = vld [vmem:[#allocation2 + $0x7d8] sm:$0xf]
    %v572 = vld [vmem:[#allocation2 + $0x7dc] sm:$0xf]
    %v573 = vld [vmem:[#allocation2 + $0x7e0] sm:$0xf]
    %v574 = vld [vmem:[#allocation2 + $0x7e4] sm:$0xf]
    %v575 = vld [vmem:[#allocation2 + $0x7e8] sm:$0xf]
    %v576 = vld [vmem:[#allocation2 + $0x7ec] sm:$0xf]
    %v577 = vld [vmem:[#allocation2 + $0x7f0] sm:$0xf]
    %v578 = vld [vmem:[#allocation2 + $0x7f4] sm:$0xf]
    %v579 = vld [vmem:[#allocation2 + $0x7f8] sm:$0xf]
    %v580 = vld [vmem:[#allocation2 + $0x7fc] sm:$0xf]
    %v613 = vunpack.c.l.b16 %v37
    %v614 = vunpack.c.h.b16 %v37
    %v615 = vunpack.c.l.b16 %v38
    %v616 = vunpack.c.h.b16 %v38
    %v617 = vunpack.c.l.b16 %v39
    %v618 = vunpack.c.h.b16 %v39
    %v619 = vunpack.c.l.b16 %v40
    %v620 = vunpack.c.h.b16 %v40
    %v621 = vunpack.c.l.b16 %v41
    %v622 = vunpack.c.h.b16 %v41
    %v623 = vunpack.c.l.b16 %v42
    %v624 = vunpack.c.h.b16 %v42
    %v625 = vunpack.c.l.b16 %v43
    %v626 = vunpack.c.h.b16 %v43
    %v627 = vunpack.c.l.b16 %v44
    %v628 = vunpack.c.h.b16 %v44
    %v629 = vunpack.c.l.b16 %v45
    %v630 = vunpack.c.h.b16 %v45
    %v631 = vunpack.c.l.b16 %v46
    %v632 = vunpack.c.h.b16 %v46
    %v633 = vunpack.c.l.b16 %v47
    %v634 = vunpack.c.h.b16 %v47
    %v635 = vunpack.c.l.b16 %v48
    %v636 = vunpack.c.h.b16 %v48
    %v637 = vunpack.c.l.b16 %v49
    %v638 = vunpack.c.h.b16 %v49
    %v639 = vunpack.c.l.b16 %v50
    %v640 = vunpack.c.h.b16 %v50
    %v641 = vunpack.c.l.b16 %v51
    %v642 = vunpack.c.h.b16 %v51
    %v643 = vunpack.c.l.b16 %v52
    %v644 = vunpack.c.h.b16 %v52
    %v645 = vunpack.c.l.b16 %v53
    %v646 = vunpack.c.h.b16 %v53
    %v647 = vunpack.c.l.b16 %v54
    %v648 = vunpack.c.h.b16 %v54
    %v649 = vunpack.c.l.b16 %v55
    %v650 = vunpack.c.h.b16 %v55
    %v651 = vunpack.c.l.b16 %v56
    %v652 = vunpack.c.h.b16 %v56
    %v653 = vunpack.c.l.b16 %v57
    %v654 = vunpack.c.h.b16 %v57
    %v655 = vunpack.c.l.b16 %v58
    %v656 = vunpack.c.h.b16 %v58
    %v657 = vunpack.c.l.b16 %v59
    %v658 = vunpack.c.h.b16 %v59
    %v659 = vunpack.c.l.b16 %v60
    %v660 = vunpack.c.h.b16 %v60
    %v661 = vunpack.c.l.b16 %v61
    %v662 = vunpack.c.h.b16 %v61
    %v663 = vunpack.c.l.b16 %v62
    %v664 = vunpack.c.h.b16 %v62
    %v665 = vunpack.c.l.b16 %v63
    %v666 = vunpack.c.h.b16 %v63
    %v667 = vunpack.c.l.b16 %v64
    %v668 = vunpack.c.h.b16 %v64
    %v669 = vunpack.c.l.b16 %v65
    %v670 = vunpack.c.h.b16 %v65
    %v671 = vunpack.c.l.b16 %v66
    %v672 = vunpack.c.h.b16 %v66
    %v673 = vunpack.c.l.b16 %v67
    %v674 = vunpack.c.h.b16 %v67
    %v675 = vunpack.c.l.b16 %v68
    %v676 = vunpack.c.h.b16 %v68
    %v677 = vpack.c.b16 %v645, %v613
    %v678 = vpack.c.b16 %v646, %v614
    %v679 = vpack.c.b16 %v647, %v615
    %v680 = vpack.c.b16 %v648, %v616
    %v681 = vpack.c.b16 %v649, %v617
    %v682 = vpack.c.b16 %v650, %v618
    %v683 = vpack.c.b16 %v651, %v619
    %v684 = vpack.c.b16 %v652, %v620
    %v685 = vpack.c.b16 %v653, %v621
    %v686 = vpack.c.b16 %v654, %v622
    %v687 = vpack.c.b16 %v655, %v623
    %v688 = vpack.c.b16 %v656, %v624
    %v689 = vpack.c.b16 %v657, %v625
    %v690 = vpack.c.b16 %v658, %v626
    %v691 = vpack.c.b16 %v659, %v627
    %v692 = vpack.c.b16 %v660, %v628
    %v693 = vpack.c.b16 %v661, %v629
    %v694 = vpack.c.b16 %v662, %v630
    %v695 = vpack.c.b16 %v663, %v631
    %v696 = vpack.c.b16 %v664, %v632
    %v697 = vpack.c.b16 %v665, %v633
    %v698 = vpack.c.b16 %v666, %v634
    %v699 = vpack.c.b16 %v667, %v635
    %v700 = vpack.c.b16 %v668, %v636
    %v701 = vpack.c.b16 %v669, %v637
    %v702 = vpack.c.b16 %v670, %v638
    %v703 = vpack.c.b16 %v671, %v639
    %v704 = vpack.c.b16 %v672, %v640
    %v705 = vpack.c.b16 %v673, %v641
    %v706 = vpack.c.b16 %v674, %v642
    %v707 = vpack.c.b16 %v675, %v643
    %v708 = vpack.c.b16 %v676, %v644
    %v1253 = vunpack.c.l.b16 %v69
    %v1254 = vunpack.c.l.b16 %v70
    %v1255 = vunpack.c.l.b16 %v71
    %v1256 = vunpack.c.l.b16 %v72
    %v1257 = vunpack.c.l.b16 %v73
    %v1258 = vunpack.c.l.b16 %v74
    %v1259 = vunpack.c.l.b16 %v75
    %v1260 = vunpack.c.l.b16 %v76
    %v1261 = vunpack.c.l.b16 %v77
    %v1262 = vunpack.c.l.b16 %v78
    %v1263 = vunpack.c.l.b16 %v79
    %v1264 = vunpack.c.l.b16 %v80
    %v1265 = vunpack.c.l.b16 %v81
    %v1266 = vunpack.c.l.b16 %v82
    %v1267 = vunpack.c.l.b16 %v83
    %v1268 = vunpack.c.l.b16 %v84
    %v1269 = vunpack.c.l.b16 %v85
    %v1270 = vunpack.c.l.b16 %v86
    %v1271 = vunpack.c.l.b16 %v87
    %v1272 = vunpack.c.l.b16 %v88
    %v1273 = vunpack.c.l.b16 %v89
    %v1274 = vunpack.c.l.b16 %v90
    %v1275 = vunpack.c.l.b16 %v91
    %v1276 = vunpack.c.l.b16 %v92
    %v1277 = vunpack.c.l.b16 %v93
    %v1278 = vunpack.c.l.b16 %v94
    %v1279 = vunpack.c.l.b16 %v95
    %v1280 = vunpack.c.l.b16 %v96
    %v1281 = vunpack.c.l.b16 %v97
    %v1282 = vunpack.c.l.b16 %v98
    %v1283 = vunpack.c.l.b16 %v99
    %v1284 = vunpack.c.l.b16 %v100
    %v1285 = vunpack.c.l.b16 %v101
    %v1286 = vunpack.c.l.b16 %v102
    %v1287 = vunpack.c.l.b16 %v103
    %v1288 = vunpack.c.l.b16 %v104
    %v1289 = vunpack.c.l.b16 %v105
    %v1290 = vunpack.c.l.b16 %v106
    %v1291 = vunpack.c.l.b16 %v107
    %v1292 = vunpack.c.l.b16 %v108
    %v1293 = vunpack.c.l.b16 %v109
    %v1294 = vunpack.c.l.b16 %v110
    %v1295 = vunpack.c.l.b16 %v111
    %v1296 = vunpack.c.l.b16 %v112
    %v1297 = vunpack.c.l.b16 %v113
    %v1298 = vunpack.c.l.b16 %v114
    %v1299 = vunpack.c.l.b16 %v115
    %v1300 = vunpack.c.l.b16 %v116
    %v1301 = vunpack.c.l.b16 %v117
    %v1302 = vunpack.c.l.b16 %v118
    %v1303 = vunpack.c.l.b16 %v119
    %v1304 = vunpack.c.l.b16 %v120
    %v1305 = vunpack.c.l.b16 %v121
    %v1306 = vunpack.c.l.b16 %v122
    %v1307 = vunpack.c.l.b16 %v123
    %v1308 = vunpack.c.l.b16 %v124
    %v1309 = vunpack.c.l.b16 %v125
    %v1310 = vunpack.c.l.b16 %v126
    %v1311 = vunpack.c.l.b16 %v127
    %v1312 = vunpack.c.l.b16 %v128
    %v1313 = vunpack.c.l.b16 %v129
    %v1314 = vunpack.c.l.b16 %v130
    %v1315 = vunpack.c.l.b16 %v131
    %v1316 = vunpack.c.l.b16 %v132
    %v1317 = vunpack.c.l.b16 %v133
    %v1318 = vunpack.c.l.b16 %v134
    %v1319 = vunpack.c.l.b16 %v135
    %v1320 = vunpack.c.l.b16 %v136
    %v1321 = vunpack.c.l.b16 %v137
    %v1322 = vunpack.c.l.b16 %v138
    %v1323 = vunpack.c.l.b16 %v139
    %v1324 = vunpack.c.l.b16 %v140
    %v1325 = vunpack.c.l.b16 %v141
    %v1326 = vunpack.c.l.b16 %v142
    %v1327 = vunpack.c.l.b16 %v143
    %v1328 = vunpack.c.l.b16 %v144
    %v1329 = vunpack.c.l.b16 %v145
    %v1330 = vunpack.c.l.b16 %v146
    %v1331 = vunpack.c.l.b16 %v147
    %v1332 = vunpack.c.l.b16 %v148
    %v1333 = vunpack.c.l.b16 %v149
    %v1334 = vunpack.c.l.b16 %v150
    %v1335 = vunpack.c.l.b16 %v151
    %v1336 = vunpack.c.l.b16 %v152
    %v1337 = vunpack.c.l.b16 %v153
    %v1338 = vunpack.c.l.b16 %v154
    %v1339 = vunpack.c.l.b16 %v155
    %v1340 = vunpack.c.l.b16 %v156
    %v1341 = vunpack.c.l.b16 %v157
    %v1342 = vunpack.c.l.b16 %v158
    %v1343 = vunpack.c.l.b16 %v159
    %v1344 = vunpack.c.l.b16 %v160
    %v1345 = vunpack.c.l.b16 %v161
    %v1346 = vunpack.c.l.b16 %v162
    %v1347 = vunpack.c.l.b16 %v163
    %v1348 = vunpack.c.l.b16 %v164
    %v1349 = vunpack.c.l.b16 %v165
    %v1350 = vunpack.c.l.b16 %v166
    %v1351 = vunpack.c.l.b16 %v167
    %v1352 = vunpack.c.l.b16 %v168
    %v1353 = vunpack.c.l.b16 %v169
    %v1354 = vunpack.c.l.b16 %v170
    %v1355 = vunpack.c.l.b16 %v171
    %v1356 = vunpack.c.l.b16 %v172
    %v1357 = vunpack.c.l.b16 %v173
    %v1358 = vunpack.c.l.b16 %v174
    %v1359 = vunpack.c.l.b16 %v175
    %v1360 = vunpack.c.l.b16 %v176
    %v1361 = vunpack.c.l.b16 %v177
    %v1362 = vunpack.c.l.b16 %v178
    %v1363 = vunpack.c.l.b16 %v179
    %v1364 = vunpack.c.l.b16 %v180
    %v1365 = vunpack.c.l.b16 %v181
    %v1366 = vunpack.c.l.b16 %v182
    %v1367 = vunpack.c.l.b16 %v183
    %v1368 = vunpack.c.l.b16 %v184
    %v1369 = vunpack.c.l.b16 %v185
    %v1370 = vunpack.c.l.b16 %v186
    %v1371 = vunpack.c.l.b16 %v187
    %v1372 = vunpack.c.l.b16 %v188
    %v1373 = vunpack.c.l.b16 %v189
    %v1374 = vunpack.c.l.b16 %v190
    %v1375 = vunpack.c.l.b16 %v191
    %v1376 = vunpack.c.l.b16 %v192
    %v1377 = vunpack.c.l.b16 %v193
    %v1378 = vunpack.c.l.b16 %v194
    %v1379 = vunpack.c.l.b16 %v195
    %v1380 = vunpack.c.l.b16 %v196
    %v1381 = vunpack.c.l.b16 %v197
    %v1382 = vunpack.c.l.b16 %v198
    %v1383 = vunpack.c.l.b16 %v199
    %v1384 = vunpack.c.l.b16 %v200
    %v1385 = vunpack.c.l.b16 %v201
    %v1386 = vunpack.c.l.b16 %v202
    %v1387 = vunpack.c.l.b16 %v203
    %v1388 = vunpack.c.l.b16 %v204
    %v1389 = vunpack.c.l.b16 %v205
    %v1390 = vunpack.c.l.b16 %v206
    %v1391 = vunpack.c.l.b16 %v207
    %v1392 = vunpack.c.l.b16 %v208
    %v1393 = vunpack.c.l.b16 %v209
    %v1394 = vunpack.c.l.b16 %v210
    %v1395 = vunpack.c.l.b16 %v211
    %v1396 = vunpack.c.l.b16 %v212
    %v1397 = vunpack.c.l.b16 %v213
    %v1398 = vunpack.c.l.b16 %v214
    %v1399 = vunpack.c.l.b16 %v215
    %v1400 = vunpack.c.l.b16 %v216
    %v1401 = vunpack.c.l.b16 %v217
    %v1402 = vunpack.c.l.b16 %v218
    %v1403 = vunpack.c.l.b16 %v219
    %v1404 = vunpack.c.l.b16 %v220
    %v1405 = vunpack.c.l.b16 %v221
    %v1406 = vunpack.c.l.b16 %v222
    %v1407 = vunpack.c.l.b16 %v223
    %v1408 = vunpack.c.l.b16 %v224
    %v1409 = vunpack.c.l.b16 %v225
    %v1410 = vunpack.c.l.b16 %v226
    %v1411 = vunpack.c.l.b16 %v227
    %v1412 = vunpack.c.l.b16 %v228
    %v1413 = vunpack.c.l.b16 %v229
    %v1414 = vunpack.c.l.b16 %v230
    %v1415 = vunpack.c.l.b16 %v231
    %v1416 = vunpack.c.l.b16 %v232
    %v1417 = vunpack.c.l.b16 %v233
    %v1418 = vunpack.c.l.b16 %v234
    %v1419 = vunpack.c.l.b16 %v235
    %v1420 = vunpack.c.l.b16 %v236
    %v1421 = vunpack.c.l.b16 %v237
    %v1422 = vunpack.c.l.b16 %v238
    %v1423 = vunpack.c.l.b16 %v239
    %v1424 = vunpack.c.l.b16 %v240
    %v1425 = vunpack.c.l.b16 %v241
    %v1426 = vunpack.c.l.b16 %v242
    %v1427 = vunpack.c.l.b16 %v243
    %v1428 = vunpack.c.l.b16 %v244
    %v1429 = vunpack.c.l.b16 %v245
    %v1430 = vunpack.c.l.b16 %v246
    %v1431 = vunpack.c.l.b16 %v247
    %v1432 = vunpack.c.l.b16 %v248
    %v1433 = vunpack.c.l.b16 %v249
    %v1434 = vunpack.c.l.b16 %v250
    %v1435 = vunpack.c.l.b16 %v251
    %v1436 = vunpack.c.l.b16 %v252
    %v1437 = vunpack.c.l.b16 %v253
    %v1438 = vunpack.c.l.b16 %v254
    %v1439 = vunpack.c.l.b16 %v255
    %v1440 = vunpack.c.l.b16 %v256
    %v1441 = vunpack.c.l.b16 %v257
    %v1442 = vunpack.c.l.b16 %v258
    %v1443 = vunpack.c.l.b16 %v259
    %v1444 = vunpack.c.l.b16 %v260
    %v1445 = vunpack.c.l.b16 %v261
    %v1446 = vunpack.c.l.b16 %v262
    %v1447 = vunpack.c.l.b16 %v263
    %v1448 = vunpack.c.l.b16 %v264
    %v1449 = vunpack.c.l.b16 %v265
    %v1450 = vunpack.c.l.b16 %v266
    %v1451 = vunpack.c.l.b16 %v267
    %v1452 = vunpack.c.l.b16 %v268
    %v1453 = vunpack.c.l.b16 %v269
    %v1454 = vunpack.c.l.b16 %v270
    %v1455 = vunpack.c.l.b16 %v271
    %v1456 = vunpack.c.l.b16 %v272
    %v1457 = vunpack.c.l.b16 %v273
    %v1458 = vunpack.c.l.b16 %v274
    %v1459 = vunpack.c.l.b16 %v275
    %v1460 = vunpack.c.l.b16 %v276
    %v1461 = vunpack.c.l.b16 %v277
    %v1462 = vunpack.c.l.b16 %v278
    %v1463 = vunpack.c.l.b16 %v279
    %v1464 = vunpack.c.l.b16 %v280
    %v1465 = vunpack.c.l.b16 %v281
    %v1466 = vunpack.c.l.b16 %v282
    %v1467 = vunpack.c.l.b16 %v283
    %v1468 = vunpack.c.l.b16 %v284
    %v1469 = vunpack.c.l.b16 %v285
    %v1470 = vunpack.c.l.b16 %v286
    %v1471 = vunpack.c.l.b16 %v287
    %v1472 = vunpack.c.l.b16 %v288
    %v1473 = vunpack.c.l.b16 %v289
    %v1474 = vunpack.c.l.b16 %v290
    %v1475 = vunpack.c.l.b16 %v291
    %v1476 = vunpack.c.l.b16 %v292
    %v1477 = vunpack.c.l.b16 %v293
    %v1478 = vunpack.c.l.b16 %v294
    %v1479 = vunpack.c.l.b16 %v295
    %v1480 = vunpack.c.l.b16 %v296
    %v1481 = vunpack.c.l.b16 %v297
    %v1482 = vunpack.c.l.b16 %v298
    %v1483 = vunpack.c.l.b16 %v299
    %v1484 = vunpack.c.l.b16 %v300
    %v1485 = vunpack.c.l.b16 %v301
    %v1486 = vunpack.c.l.b16 %v302
    %v1487 = vunpack.c.l.b16 %v303
    %v1488 = vunpack.c.l.b16 %v304
    %v1489 = vunpack.c.l.b16 %v305
    %v1490 = vunpack.c.l.b16 %v306
    %v1491 = vunpack.c.l.b16 %v307
    %v1492 = vunpack.c.l.b16 %v308
    %v1493 = vunpack.c.l.b16 %v309
    %v1494 = vunpack.c.l.b16 %v310
    %v1495 = vunpack.c.l.b16 %v311
    %v1496 = vunpack.c.l.b16 %v312
    %v1497 = vunpack.c.l.b16 %v313
    %v1498 = vunpack.c.l.b16 %v314
    %v1499 = vunpack.c.l.b16 %v315
    %v1500 = vunpack.c.l.b16 %v316
    %v1501 = vunpack.c.l.b16 %v317
    %v1502 = vunpack.c.l.b16 %v318
    %v1503 = vunpack.c.l.b16 %v319
    %v1504 = vunpack.c.l.b16 %v320
    %v1505 = vunpack.c.l.b16 %v321
    %v1506 = vunpack.c.l.b16 %v322
    %v1507 = vunpack.c.l.b16 %v323
    %v1508 = vunpack.c.l.b16 %v324
    %v1509 = vunpack.c.l.b16 %v325
    %v1510 = vunpack.c.l.b16 %v326
    %v1511 = vunpack.c.l.b16 %v327
    %v1512 = vunpack.c.l.b16 %v328
    %v1513 = vunpack.c.l.b16 %v329
    %v1514 = vunpack.c.l.b16 %v330
    %v1515 = vunpack.c.l.b16 %v331
    %v1516 = vunpack.c.l.b16 %v332
    %v1517 = vunpack.c.l.b16 %v333
    %v1518 = vunpack.c.l.b16 %v334
    %v1519 = vunpack.c.l.b16 %v335
    %v1520 = vunpack.c.l.b16 %v336
    %v1521 = vunpack.c.l.b16 %v337
    %v1522 = vunpack.c.l.b16 %v338
    %v1523 = vunpack.c.l.b16 %v339
    %v1524 = vunpack.c.l.b16 %v340
    %v1525 = vunpack.c.l.b16 %v341
    %v1526 = vunpack.c.l.b16 %v342
    %v1527 = vunpack.c.l.b16 %v343
    %v1528 = vunpack.c.l.b16 %v344
    %v1529 = vunpack.c.l.b16 %v345
    %v1530 = vunpack.c.l.b16 %v346
    %v1531 = vunpack.c.l.b16 %v347
    %v1532 = vunpack.c.l.b16 %v348
    %v1533 = vunpack.c.l.b16 %v349
    %v1534 = vunpack.c.l.b16 %v350
    %v1535 = vunpack.c.l.b16 %v351
    %v1536 = vunpack.c.l.b16 %v352
    %v1537 = vunpack.c.l.b16 %v353
    %v1538 = vunpack.c.l.b16 %v354
    %v1539 = vunpack.c.l.b16 %v355
    %v1540 = vunpack.c.l.b16 %v356
    %v1541 = vunpack.c.l.b16 %v357
    %v1542 = vunpack.c.l.b16 %v358
    %v1543 = vunpack.c.l.b16 %v359
    %v1544 = vunpack.c.l.b16 %v360
    %v1545 = vunpack.c.l.b16 %v361
    %v1546 = vunpack.c.l.b16 %v362
    %v1547 = vunpack.c.l.b16 %v363
    %v1548 = vunpack.c.l.b16 %v364
    %v1549 = vunpack.c.l.b16 %v365
    %v1550 = vunpack.c.l.b16 %v366
    %v1551 = vunpack.c.l.b16 %v367
    %v1552 = vunpack.c.l.b16 %v368
    %v1553 = vunpack.c.l.b16 %v369
    %v1554 = vunpack.c.l.b16 %v370
    %v1555 = vunpack.c.l.b16 %v371
    %v1556 = vunpack.c.l.b16 %v372
    %v1557 = vunpack.c.l.b16 %v373
    %v1558 = vunpack.c.l.b16 %v374
    %v1559 = vunpack.c.l.b16 %v375
    %v1560 = vunpack.c.l.b16 %v376
    %v1561 = vunpack.c.l.b16 %v377
    %v1562 = vunpack.c.l.b16 %v378
    %v1563 = vunpack.c.l.b16 %v379
    %v1564 = vunpack.c.l.b16 %v380
    %v1565 = vunpack.c.l.b16 %v381
    %v1566 = vunpack.c.l.b16 %v382
    %v1567 = vunpack.c.l.b16 %v383
    %v1568 = vunpack.c.l.b16 %v384
    %v1569 = vunpack.c.l.b16 %v385
    %v1570 = vunpack.c.l.b16 %v386
    %v1571 = vunpack.c.l.b16 %v387
    %v1572 = vunpack.c.l.b16 %v388
    %v1573 = vunpack.c.l.b16 %v389
    %v1574 = vunpack.c.l.b16 %v390
    %v1575 = vunpack.c.l.b16 %v391
    %v1576 = vunpack.c.l.b16 %v392
    %v1577 = vunpack.c.l.b16 %v393
    %v1578 = vunpack.c.l.b16 %v394
    %v1579 = vunpack.c.l.b16 %v395
    %v1580 = vunpack.c.l.b16 %v396
    %v1581 = vunpack.c.l.b16 %v397
    %v1582 = vunpack.c.l.b16 %v398
    %v1583 = vunpack.c.l.b16 %v399
    %v1584 = vunpack.c.l.b16 %v400
    %v1585 = vunpack.c.l.b16 %v401
    %v1586 = vunpack.c.l.b16 %v402
    %v1587 = vunpack.c.l.b16 %v403
    %v1588 = vunpack.c.l.b16 %v404
    %v1589 = vunpack.c.l.b16 %v405
    %v1590 = vunpack.c.l.b16 %v406
    %v1591 = vunpack.c.l.b16 %v407
    %v1592 = vunpack.c.l.b16 %v408
    %v1593 = vunpack.c.l.b16 %v409
    %v1594 = vunpack.c.l.b16 %v410
    %v1595 = vunpack.c.l.b16 %v411
    %v1596 = vunpack.c.l.b16 %v412
    %v1597 = vunpack.c.l.b16 %v413
    %v1598 = vunpack.c.l.b16 %v414
    %v1599 = vunpack.c.l.b16 %v415
    %v1600 = vunpack.c.l.b16 %v416
    %v1601 = vunpack.c.l.b16 %v417
    %v1602 = vunpack.c.l.b16 %v418
    %v1603 = vunpack.c.l.b16 %v419
    %v1604 = vunpack.c.l.b16 %v420
    %v1605 = vunpack.c.l.b16 %v421
    %v1606 = vunpack.c.l.b16 %v422
    %v1607 = vunpack.c.l.b16 %v423
    %v1608 = vunpack.c.l.b16 %v424
    %v1609 = vunpack.c.l.b16 %v425
    %v1610 = vunpack.c.l.b16 %v426
    %v1611 = vunpack.c.l.b16 %v427
    %v1612 = vunpack.c.l.b16 %v428
    %v1613 = vunpack.c.l.b16 %v429
    %v1614 = vunpack.c.l.b16 %v430
    %v1615 = vunpack.c.l.b16 %v431
    %v1616 = vunpack.c.l.b16 %v432
    %v1617 = vunpack.c.l.b16 %v433
    %v1618 = vunpack.c.l.b16 %v434
    %v1619 = vunpack.c.l.b16 %v435
    %v1620 = vunpack.c.l.b16 %v436
    %v1621 = vunpack.c.l.b16 %v437
    %v1622 = vunpack.c.l.b16 %v438
    %v1623 = vunpack.c.l.b16 %v439
    %v1624 = vunpack.c.l.b16 %v440
    %v1625 = vunpack.c.l.b16 %v441
    %v1626 = vunpack.c.l.b16 %v442
    %v1627 = vunpack.c.l.b16 %v443
    %v1628 = vunpack.c.l.b16 %v444
    %v1629 = vunpack.c.l.b16 %v445
    %v1630 = vunpack.c.l.b16 %v446
    %v1631 = vunpack.c.l.b16 %v447
    %v1632 = vunpack.c.l.b16 %v448
    %v1633 = vunpack.c.l.b16 %v449
    %v1634 = vunpack.c.l.b16 %v450
    %v1635 = vunpack.c.l.b16 %v451
    %v1636 = vunpack.c.l.b16 %v452
    %v1637 = vunpack.c.l.b16 %v453
    %v1638 = vunpack.c.l.b16 %v454
    %v1639 = vunpack.c.l.b16 %v455
    %v1640 = vunpack.c.l.b16 %v456
    %v1641 = vunpack.c.l.b16 %v457
    %v1642 = vunpack.c.l.b16 %v458
    %v1643 = vunpack.c.l.b16 %v459
    %v1644 = vunpack.c.l.b16 %v460
    %v1645 = vunpack.c.l.b16 %v461
    %v1646 = vunpack.c.l.b16 %v462
    %v1647 = vunpack.c.l.b16 %v463
    %v1648 = vunpack.c.l.b16 %v464
    %v1649 = vunpack.c.l.b16 %v465
    %v1650 = vunpack.c.l.b16 %v466
    %v1651 = vunpack.c.l.b16 %v467
    %v1652 = vunpack.c.l.b16 %v468
    %v1653 = vunpack.c.l.b16 %v469
    %v1654 = vunpack.c.l.b16 %v470
    %v1655 = vunpack.c.l.b16 %v471
    %v1656 = vunpack.c.l.b16 %v472
    %v1657 = vunpack.c.l.b16 %v473
    %v1658 = vunpack.c.l.b16 %v474
    %v1659 = vunpack.c.l.b16 %v475
    %v1660 = vunpack.c.l.b16 %v476
    %v1661 = vunpack.c.l.b16 %v477
    %v1662 = vunpack.c.l.b16 %v478
    %v1663 = vunpack.c.l.b16 %v479
    %v1664 = vunpack.c.l.b16 %v480
    %v1665 = vunpack.c.l.b16 %v481
    %v1666 = vunpack.c.l.b16 %v482
    %v1667 = vunpack.c.l.b16 %v483
    %v1668 = vunpack.c.l.b16 %v484
    %v1669 = vunpack.c.l.b16 %v485
    %v1670 = vunpack.c.l.b16 %v486
    %v1671 = vunpack.c.l.b16 %v487
    %v1672 = vunpack.c.l.b16 %v488
    %v1673 = vunpack.c.l.b16 %v489
    %v1674 = vunpack.c.l.b16 %v490
    %v1675 = vunpack.c.l.b16 %v491
    %v1676 = vunpack.c.l.b16 %v492
    %v1677 = vunpack.c.l.b16 %v493
    %v1678 = vunpack.c.l.b16 %v494
    %v1679 = vunpack.c.l.b16 %v495
    %v1680 = vunpack.c.l.b16 %v496
    %v1681 = vunpack.c.l.b16 %v497
    %v1682 = vunpack.c.l.b16 %v498
    %v1683 = vunpack.c.l.b16 %v499
    %v1684 = vunpack.c.l.b16 %v500
    %v1685 = vunpack.c.l.b16 %v501
    %v1686 = vunpack.c.l.b16 %v502
    %v1687 = vunpack.c.l.b16 %v503
    %v1688 = vunpack.c.l.b16 %v504
    %v1689 = vunpack.c.l.b16 %v505
    %v1690 = vunpack.c.l.b16 %v506
    %v1691 = vunpack.c.l.b16 %v507
    %v1692 = vunpack.c.l.b16 %v508
    %v1693 = vunpack.c.l.b16 %v509
    %v1694 = vunpack.c.l.b16 %v510
    %v1695 = vunpack.c.l.b16 %v511
    %v1696 = vunpack.c.l.b16 %v512
    %v1697 = vunpack.c.l.b16 %v513
    %v1698 = vunpack.c.l.b16 %v514
    %v1699 = vunpack.c.l.b16 %v515
    %v1700 = vunpack.c.l.b16 %v516
    %v1701 = vunpack.c.l.b16 %v517
    %v1702 = vunpack.c.l.b16 %v518
    %v1703 = vunpack.c.l.b16 %v519
    %v1704 = vunpack.c.l.b16 %v520
    %v1705 = vunpack.c.l.b16 %v521
    %v1706 = vunpack.c.l.b16 %v522
    %v1707 = vunpack.c.l.b16 %v523
    %v1708 = vunpack.c.l.b16 %v524
    %v1709 = vunpack.c.l.b16 %v525
    %v1710 = vunpack.c.l.b16 %v526
    %v1711 = vunpack.c.l.b16 %v527
    %v1712 = vunpack.c.l.b16 %v528
    %v1713 = vunpack.c.l.b16 %v529
    %v1714 = vunpack.c.l.b16 %v530
    %v1715 = vunpack.c.l.b16 %v531
    %v1716 = vunpack.c.l.b16 %v532
    %v1717 = vunpack.c.l.b16 %v533
    %v1718 = vunpack.c.l.b16 %v534
    %v1719 = vunpack.c.l.b16 %v535
    %v1720 = vunpack.c.l.b16 %v536
    %v1721 = vunpack.c.l.b16 %v537
    %v1722 = vunpack.c.l.b16 %v538
    %v1723 = vunpack.c.l.b16 %v539
    %v1724 = vunpack.c.l.b16 %v540
    %v1725 = vunpack.c.l.b16 %v541
    %v1726 = vunpack.c.l.b16 %v542
    %v1727 = vunpack.c.l.b16 %v543
    %v1728 = vunpack.c.l.b16 %v544
    %v1729 = vunpack.c.l.b16 %v545
    %v1730 = vunpack.c.l.b16 %v546
    %v1731 = vunpack.c.l.b16 %v547
    %v1732 = vunpack.c.l.b16 %v548
    %v1733 = vunpack.c.l.b16 %v549
    %v1734 = vunpack.c.l.b16 %v550
    %v1735 = vunpack.c.l.b16 %v551
    %v1736 = vunpack.c.l.b16 %v552
    %v1737 = vunpack.c.l.b16 %v553
    %v1738 = vunpack.c.l.b16 %v554
    %v1739 = vunpack.c.l.b16 %v555
    %v1740 = vunpack.c.l.b16 %v556
    %v1741 = vunpack.c.l.b16 %v557
    %v1742 = vunpack.c.l.b16 %v558
    %v1743 = vunpack.c.l.b16 %v559
    %v1744 = vunpack.c.l.b16 %v560
    %v1745 = vunpack.c.l.b16 %v561
    %v1746 = vunpack.c.l.b16 %v562
    %v1747 = vunpack.c.l.b16 %v563
    %v1748 = vunpack.c.l.b16 %v564
    %v1749 = vunpack.c.l.b16 %v565
    %v1750 = vunpack.c.l.b16 %v566
    %v1751 = vunpack.c.l.b16 %v567
    %v1752 = vunpack.c.l.b16 %v568
    %v1753 = vunpack.c.l.b16 %v569
    %v1754 = vunpack.c.l.b16 %v570
    %v1755 = vunpack.c.l.b16 %v571
    %v1756 = vunpack.c.l.b16 %v572
    %v1757 = vunpack.c.l.b16 %v573
    %v1758 = vunpack.c.l.b16 %v574
    %v1759 = vunpack.c.l.b16 %v575
    %v1760 = vunpack.c.l.b16 %v576
    %v1761 = vunpack.c.l.b16 %v577
    %v1762 = vunpack.c.l.b16 %v578
    %v1763 = vunpack.c.l.b16 %v579
    %v1764 = vunpack.c.l.b16 %v580
    %v1765 = vpack.c.b16 %v1254, %v1253
    %v1766 = vpack.c.b16 %v1256, %v1255
    %v1767 = vpack.c.b16 %v1258, %v1257
    %v1768 = vpack.c.b16 %v1260, %v1259
    %v1769 = vpack.c.b16 %v1262, %v1261
    %v1770 = vpack.c.b16 %v1264, %v1263
    %v1771 = vpack.c.b16 %v1266, %v1265
    %v1772 = vpack.c.b16 %v1268, %v1267
    %v1773 = vpack.c.b16 %v1270, %v1269
    %v1774 = vpack.c.b16 %v1272, %v1271
    %v1775 = vpack.c.b16 %v1274, %v1273
    %v1776 = vpack.c.b16 %v1276, %v1275
    %v1777 = vpack.c.b16 %v1278, %v1277
    %v1778 = vpack.c.b16 %v1280, %v1279
    %v1779 = vpack.c.b16 %v1282, %v1281
    %v1780 = vpack.c.b16 %v1284, %v1283
    %v1781 = vpack.c.b16 %v1286, %v1285
    %v1782 = vpack.c.b16 %v1288, %v1287
    %v1783 = vpack.c.b16 %v1290, %v1289
    %v1784 = vpack.c.b16 %v1292, %v1291
    %v1785 = vpack.c.b16 %v1294, %v1293
    %v1786 = vpack.c.b16 %v1296, %v1295
    %v1787 = vpack.c.b16 %v1298, %v1297
    %v1788 = vpack.c.b16 %v1300, %v1299
    %v1789 = vpack.c.b16 %v1302, %v1301
    %v1790 = vpack.c.b16 %v1304, %v1303
    %v1791 = vpack.c.b16 %v1306, %v1305
    %v1792 = vpack.c.b16 %v1308, %v1307
    %v1793 = vpack.c.b16 %v1310, %v1309
    %v1794 = vpack.c.b16 %v1312, %v1311
    %v1795 = vpack.c.b16 %v1314, %v1313
    %v1796 = vpack.c.b16 %v1316, %v1315
    %v1797 = vpack.c.b16 %v1318, %v1317
    %v1798 = vpack.c.b16 %v1320, %v1319
    %v1799 = vpack.c.b16 %v1322, %v1321
    %v1800 = vpack.c.b16 %v1324, %v1323
    %v1801 = vpack.c.b16 %v1326, %v1325
    %v1802 = vpack.c.b16 %v1328, %v1327
    %v1803 = vpack.c.b16 %v1330, %v1329
    %v1804 = vpack.c.b16 %v1332, %v1331
    %v1805 = vpack.c.b16 %v1334, %v1333
    %v1806 = vpack.c.b16 %v1336, %v1335
    %v1807 = vpack.c.b16 %v1338, %v1337
    %v1808 = vpack.c.b16 %v1340, %v1339
    %v1809 = vpack.c.b16 %v1342, %v1341
    %v1810 = vpack.c.b16 %v1344, %v1343
    %v1811 = vpack.c.b16 %v1346, %v1345
    %v1812 = vpack.c.b16 %v1348, %v1347
    %v1813 = vpack.c.b16 %v1350, %v1349
    %v1814 = vpack.c.b16 %v1352, %v1351
    %v1815 = vpack.c.b16 %v1354, %v1353
    %v1816 = vpack.c.b16 %v1356, %v1355
    %v1817 = vpack.c.b16 %v1358, %v1357
    %v1818 = vpack.c.b16 %v1360, %v1359
    %v1819 = vpack.c.b16 %v1362, %v1361
    %v1820 = vpack.c.b16 %v1364, %v1363
    %v1821 = vpack.c.b16 %v1366, %v1365
    %v1822 = vpack.c.b16 %v1368, %v1367
    %v1823 = vpack.c.b16 %v1370, %v1369
    %v1824 = vpack.c.b16 %v1372, %v1371
    %v1825 = vpack.c.b16 %v1374, %v1373
    %v1826 = vpack.c.b16 %v1376, %v1375
    %v1827 = vpack.c.b16 %v1378, %v1377
    %v1828 = vpack.c.b16 %v1380, %v1379
    %v1829 = vpack.c.b16 %v1382, %v1381
    %v1830 = vpack.c.b16 %v1384, %v1383
    %v1831 = vpack.c.b16 %v1386, %v1385
    %v1832 = vpack.c.b16 %v1388, %v1387
    %v1833 = vpack.c.b16 %v1390, %v1389
    %v1834 = vpack.c.b16 %v1392, %v1391
    %v1835 = vpack.c.b16 %v1394, %v1393
    %v1836 = vpack.c.b16 %v1396, %v1395
    %v1837 = vpack.c.b16 %v1398, %v1397
    %v1838 = vpack.c.b16 %v1400, %v1399
    %v1839 = vpack.c.b16 %v1402, %v1401
    %v1840 = vpack.c.b16 %v1404, %v1403
    %v1841 = vpack.c.b16 %v1406, %v1405
    %v1842 = vpack.c.b16 %v1408, %v1407
    %v1843 = vpack.c.b16 %v1410, %v1409
    %v1844 = vpack.c.b16 %v1412, %v1411
    %v1845 = vpack.c.b16 %v1414, %v1413
    %v1846 = vpack.c.b16 %v1416, %v1415
    %v1847 = vpack.c.b16 %v1418, %v1417
    %v1848 = vpack.c.b16 %v1420, %v1419
    %v1849 = vpack.c.b16 %v1422, %v1421
    %v1850 = vpack.c.b16 %v1424, %v1423
    %v1851 = vpack.c.b16 %v1426, %v1425
    %v1852 = vpack.c.b16 %v1428, %v1427
    %v1853 = vpack.c.b16 %v1430, %v1429
    %v1854 = vpack.c.b16 %v1432, %v1431
    %v1855 = vpack.c.b16 %v1434, %v1433
    %v1856 = vpack.c.b16 %v1436, %v1435
    %v1857 = vpack.c.b16 %v1438, %v1437
    %v1858 = vpack.c.b16 %v1440, %v1439
    %v1859 = vpack.c.b16 %v1442, %v1441
    %v1860 = vpack.c.b16 %v1444, %v1443
    %v1861 = vpack.c.b16 %v1446, %v1445
    %v1862 = vpack.c.b16 %v1448, %v1447
    %v1863 = vpack.c.b16 %v1450, %v1449
    %v1864 = vpack.c.b16 %v1452, %v1451
    %v1865 = vpack.c.b16 %v1454, %v1453
    %v1866 = vpack.c.b16 %v1456, %v1455
    %v1867 = vpack.c.b16 %v1458, %v1457
    %v1868 = vpack.c.b16 %v1460, %v1459
    %v1869 = vpack.c.b16 %v1462, %v1461
    %v1870 = vpack.c.b16 %v1464, %v1463
    %v1871 = vpack.c.b16 %v1466, %v1465
    %v1872 = vpack.c.b16 %v1468, %v1467
    %v1873 = vpack.c.b16 %v1470, %v1469
    %v1874 = vpack.c.b16 %v1472, %v1471
    %v1875 = vpack.c.b16 %v1474, %v1473
    %v1876 = vpack.c.b16 %v1476, %v1475
    %v1877 = vpack.c.b16 %v1478, %v1477
    %v1878 = vpack.c.b16 %v1480, %v1479
    %v1879 = vpack.c.b16 %v1482, %v1481
    %v1880 = vpack.c.b16 %v1484, %v1483
    %v1881 = vpack.c.b16 %v1486, %v1485
    %v1882 = vpack.c.b16 %v1488, %v1487
    %v1883 = vpack.c.b16 %v1490, %v1489
    %v1884 = vpack.c.b16 %v1492, %v1491
    %v1885 = vpack.c.b16 %v1494, %v1493
    %v1886 = vpack.c.b16 %v1496, %v1495
    %v1887 = vpack.c.b16 %v1498, %v1497
    %v1888 = vpack.c.b16 %v1500, %v1499
    %v1889 = vpack.c.b16 %v1502, %v1501
    %v1890 = vpack.c.b16 %v1504, %v1503
    %v1891 = vpack.c.b16 %v1506, %v1505
    %v1892 = vpack.c.b16 %v1508, %v1507
    %v1893 = vpack.c.b16 %v1510, %v1509
    %v1894 = vpack.c.b16 %v1512, %v1511
    %v1895 = vpack.c.b16 %v1514, %v1513
    %v1896 = vpack.c.b16 %v1516, %v1515
    %v1897 = vpack.c.b16 %v1518, %v1517
    %v1898 = vpack.c.b16 %v1520, %v1519
    %v1899 = vpack.c.b16 %v1522, %v1521
    %v1900 = vpack.c.b16 %v1524, %v1523
    %v1901 = vpack.c.b16 %v1526, %v1525
    %v1902 = vpack.c.b16 %v1528, %v1527
    %v1903 = vpack.c.b16 %v1530, %v1529
    %v1904 = vpack.c.b16 %v1532, %v1531
    %v1905 = vpack.c.b16 %v1534, %v1533
    %v1906 = vpack.c.b16 %v1536, %v1535
    %v1907 = vpack.c.b16 %v1538, %v1537
    %v1908 = vpack.c.b16 %v1540, %v1539
    %v1909 = vpack.c.b16 %v1542, %v1541
    %v1910 = vpack.c.b16 %v1544, %v1543
    %v1911 = vpack.c.b16 %v1546, %v1545
    %v1912 = vpack.c.b16 %v1548, %v1547
    %v1913 = vpack.c.b16 %v1550, %v1549
    %v1914 = vpack.c.b16 %v1552, %v1551
    %v1915 = vpack.c.b16 %v1554, %v1553
    %v1916 = vpack.c.b16 %v1556, %v1555
    %v1917 = vpack.c.b16 %v1558, %v1557
    %v1918 = vpack.c.b16 %v1560, %v1559
    %v1919 = vpack.c.b16 %v1562, %v1561
    %v1920 = vpack.c.b16 %v1564, %v1563
    %v1921 = vpack.c.b16 %v1566, %v1565
    %v1922 = vpack.c.b16 %v1568, %v1567
    %v1923 = vpack.c.b16 %v1570, %v1569
    %v1924 = vpack.c.b16 %v1572, %v1571
    %v1925 = vpack.c.b16 %v1574, %v1573
    %v1926 = vpack.c.b16 %v1576, %v1575
    %v1927 = vpack.c.b16 %v1578, %v1577
    %v1928 = vpack.c.b16 %v1580, %v1579
    %v1929 = vpack.c.b16 %v1582, %v1581
    %v1930 = vpack.c.b16 %v1584, %v1583
    %v1931 = vpack.c.b16 %v1586, %v1585
    %v1932 = vpack.c.b16 %v1588, %v1587
    %v1933 = vpack.c.b16 %v1590, %v1589
    %v1934 = vpack.c.b16 %v1592, %v1591
    %v1935 = vpack.c.b16 %v1594, %v1593
    %v1936 = vpack.c.b16 %v1596, %v1595
    %v1937 = vpack.c.b16 %v1598, %v1597
    %v1938 = vpack.c.b16 %v1600, %v1599
    %v1939 = vpack.c.b16 %v1602, %v1601
    %v1940 = vpack.c.b16 %v1604, %v1603
    %v1941 = vpack.c.b16 %v1606, %v1605
    %v1942 = vpack.c.b16 %v1608, %v1607
    %v1943 = vpack.c.b16 %v1610, %v1609
    %v1944 = vpack.c.b16 %v1612, %v1611
    %v1945 = vpack.c.b16 %v1614, %v1613
    %v1946 = vpack.c.b16 %v1616, %v1615
    %v1947 = vpack.c.b16 %v1618, %v1617
    %v1948 = vpack.c.b16 %v1620, %v1619
    %v1949 = vpack.c.b16 %v1622, %v1621
    %v1950 = vpack.c.b16 %v1624, %v1623
    %v1951 = vpack.c.b16 %v1626, %v1625
    %v1952 = vpack.c.b16 %v1628, %v1627
    %v1953 = vpack.c.b16 %v1630, %v1629
    %v1954 = vpack.c.b16 %v1632, %v1631
    %v1955 = vpack.c.b16 %v1634, %v1633
    %v1956 = vpack.c.b16 %v1636, %v1635
    %v1957 = vpack.c.b16 %v1638, %v1637
    %v1958 = vpack.c.b16 %v1640, %v1639
    %v1959 = vpack.c.b16 %v1642, %v1641
    %v1960 = vpack.c.b16 %v1644, %v1643
    %v1961 = vpack.c.b16 %v1646, %v1645
    %v1962 = vpack.c.b16 %v1648, %v1647
    %v1963 = vpack.c.b16 %v1650, %v1649
    %v1964 = vpack.c.b16 %v1652, %v1651
    %v1965 = vpack.c.b16 %v1654, %v1653
    %v1966 = vpack.c.b16 %v1656, %v1655
    %v1967 = vpack.c.b16 %v1658, %v1657
    %v1968 = vpack.c.b16 %v1660, %v1659
    %v1969 = vpack.c.b16 %v1662, %v1661
    %v1970 = vpack.c.b16 %v1664, %v1663
    %v1971 = vpack.c.b16 %v1666, %v1665
    %v1972 = vpack.c.b16 %v1668, %v1667
    %v1973 = vpack.c.b16 %v1670, %v1669
    %v1974 = vpack.c.b16 %v1672, %v1671
    %v1975 = vpack.c.b16 %v1674, %v1673
    %v1976 = vpack.c.b16 %v1676, %v1675
    %v1977 = vpack.c.b16 %v1678, %v1677
    %v1978 = vpack.c.b16 %v1680, %v1679
    %v1979 = vpack.c.b16 %v1682, %v1681
    %v1980 = vpack.c.b16 %v1684, %v1683
    %v1981 = vpack.c.b16 %v1686, %v1685
    %v1982 = vpack.c.b16 %v1688, %v1687
    %v1983 = vpack.c.b16 %v1690, %v1689
    %v1984 = vpack.c.b16 %v1692, %v1691
    %v1985 = vpack.c.b16 %v1694, %v1693
    %v1986 = vpack.c.b16 %v1696, %v1695
    %v1987 = vpack.c.b16 %v1698, %v1697
    %v1988 = vpack.c.b16 %v1700, %v1699
    %v1989 = vpack.c.b16 %v1702, %v1701
    %v1990 = vpack.c.b16 %v1704, %v1703
    %v1991 = vpack.c.b16 %v1706, %v1705
    %v1992 = vpack.c.b16 %v1708, %v1707
    %v1993 = vpack.c.b16 %v1710, %v1709
    %v1994 = vpack.c.b16 %v1712, %v1711
    %v1995 = vpack.c.b16 %v1714, %v1713
    %v1996 = vpack.c.b16 %v1716, %v1715
    %v1997 = vpack.c.b16 %v1718, %v1717
    %v1998 = vpack.c.b16 %v1720, %v1719
    %v1999 = vpack.c.b16 %v1722, %v1721
    %v2000 = vpack.c.b16 %v1724, %v1723
    %v2001 = vpack.c.b16 %v1726, %v1725
    %v2002 = vpack.c.b16 %v1728, %v1727
    %v2003 = vpack.c.b16 %v1730, %v1729
    %v2004 = vpack.c.b16 %v1732, %v1731
    %v2005 = vpack.c.b16 %v1734, %v1733
    %v2006 = vpack.c.b16 %v1736, %v1735
    %v2007 = vpack.c.b16 %v1738, %v1737
    %v2008 = vpack.c.b16 %v1740, %v1739
    %v2009 = vpack.c.b16 %v1742, %v1741
    %v2010 = vpack.c.b16 %v1744, %v1743
    %v2011 = vpack.c.b16 %v1746, %v1745
    %v2012 = vpack.c.b16 %v1748, %v1747
    %v2013 = vpack.c.b16 %v1750, %v1749
    %v2014 = vpack.c.b16 %v1752, %v1751
    %v2015 = vpack.c.b16 %v1754, %v1753
    %v2016 = vpack.c.b16 %v1756, %v1755
    %v2017 = vpack.c.b16 %v1758, %v1757
    %v2018 = vpack.c.b16 %v1760, %v1759
    %v2019 = vpack.c.b16 %v1762, %v1761
    %v2020 = vpack.c.b16 %v1764, %v1763
    %2277 = vmatprep.subr.bf16.mxu0 0
    %2278 = vmatpush1.bf16.msra.mxu0 %v1765
    %2279 = vmatprep.subr.bf16.mxu0 0
    %2280 = vmatpush1.bf16.msra.mxu0 %v1766
    %2281 = vmatprep.subr.bf16.mxu0 0
    %2282 = vmatpush1.bf16.msra.mxu0 %v1767
    %2283 = vmatprep.subr.bf16.mxu0 0
    %2284 = vmatpush1.bf16.msra.mxu0 %v1768
    %2285 = vmatprep.subr.bf16.mxu0 0
    %2286 = vmatpush1.bf16.msra.mxu0 %v1769
    %2287 = vmatprep.subr.bf16.mxu0 0
    %2288 = vmatpush1.bf16.msra.mxu0 %v1770
    %2289 = vmatprep.subr.bf16.mxu0 0
    %2290 = vmatpush1.bf16.msra.mxu0 %v1771
    %2291 = vmatprep.subr.bf16.mxu0 0
    %2292 = vmatpush1.bf16.msra.mxu0 %v1772
    %2293 = vmatprep.subr.bf16.mxu0 0
    %2294 = vmatpush1.bf16.msra.mxu0 %v1773
    %2295 = vmatprep.subr.bf16.mxu0 0
    %2296 = vmatpush1.bf16.msra.mxu0 %v1774
    %2297 = vmatprep.subr.bf16.mxu0 0
    %2298 = vmatpush1.bf16.msra.mxu0 %v1775
    %2299 = vmatprep.subr.bf16.mxu0 0
    %2300 = vmatpush1.bf16.msra.mxu0 %v1776
    %2301 = vmatprep.subr.bf16.mxu0 0
    %2302 = vmatpush1.bf16.msra.mxu0 %v1777
    %2303 = vmatprep.subr.bf16.mxu0 0
    %2304 = vmatpush1.bf16.msra.mxu0 %v1778
    %2305 = vmatprep.subr.bf16.mxu0 0
    %2306 = vmatpush1.bf16.msra.mxu0 %v1779
    %2307 = vmatprep.subr.bf16.mxu0 0
    %2308 = vmatpush1.bf16.msra.mxu0 %v1780
    %2309 = vmatprep.mubr.bf16.mxu0 %v678
    %2310 = vmatmul.mubr.bf16.gmra.mrb[0].mxu0 %v677
    %v2311 = vpop.f32.mrb[0].mxu0
    %v2312 = vadd.f32 0.0, %v2311
    %v2313 = vpop.f32.mrb[0].mxu0
    %v2314 = vpop.f32.mrb[0].mxu0
    %v2315 = vadd.f32 0.0, %v2314
    %v2316 = vpop.f32.mrb[0].mxu0
    %2317 = vdwg.mxu0
    %2318 = vmatprep.subr.bf16.mxu0 0
    %2319 = vmatpush1.bf16.msra.mxu0 %v1781
    %2320 = vmatprep.subr.bf16.mxu0 0
    %2321 = vmatpush1.bf16.msra.mxu0 %v1782
    %2322 = vmatprep.subr.bf16.mxu0 0
    %2323 = vmatpush1.bf16.msra.mxu0 %v1783
    %2324 = vmatprep.subr.bf16.mxu0 0
    %2325 = vmatpush1.bf16.msra.mxu0 %v1784
    %2326 = vmatprep.subr.bf16.mxu0 0
    %2327 = vmatpush1.bf16.msra.mxu0 %v1785
    %2328 = vmatprep.subr.bf16.mxu0 0
    %2329 = vmatpush1.bf16.msra.mxu0 %v1786
    %2330 = vmatprep.subr.bf16.mxu0 0
    %2331 = vmatpush1.bf16.msra.mxu0 %v1787
    %2332 = vmatprep.subr.bf16.mxu0 0
    %2333 = vmatpush1.bf16.msra.mxu0 %v1788
    %2334 = vmatprep.subr.bf16.mxu0 0
    %2335 = vmatpush1.bf16.msra.mxu0 %v1789
    %2336 = vmatprep.subr.bf16.mxu0 0
    %2337 = vmatpush1.bf16.msra.mxu0 %v1790
    %2338 = vmatprep.subr.bf16.mxu0 0
    %2339 = vmatpush1.bf16.msra.mxu0 %v1791
    %2340 = vmatprep.subr.bf16.mxu0 0
    %2341 = vmatpush1.bf16.msra.mxu0 %v1792
    %2342 = vmatprep.subr.bf16.mxu0 0
    %2343 = vmatpush1.bf16.msra.mxu0 %v1793
    %2344 = vmatprep.subr.bf16.mxu0 0
    %2345 = vmatpush1.bf16.msra.mxu0 %v1794
    %2346 = vmatprep.subr.bf16.mxu0 0
    %2347 = vmatpush1.bf16.msra.mxu0 %v1795
    %2348 = vmatprep.subr.bf16.mxu0 0
    %2349 = vmatpush1.bf16.msra.mxu0 %v1796
    %2350 = vmatprep.mubr.bf16.mxu0 %v680
    %2351 = vmatmul.mubr.bf16.gmra.mrb[0].mxu0 %v679
    %v2352 = vpop.f32.mrb[0].mxu0
    %v2353 = vadd.f32 %v2312, %v2352
    %v2354 = vpop.f32.mrb[0].mxu0
    %v2355 = vpop.f32.mrb[0].mxu0
    %v2356 = vadd.f32 %v2315, %v2355
    %v2357 = vpop.f32.mrb[0].mxu0
    %2358 = vdwg.mxu0
    %2359 = vmatprep.subr.bf16.mxu0 0
    %2360 = vmatpush1.bf16.msra.mxu0 %v1797
    %2361 = vmatprep.subr.bf16.mxu0 0
    %2362 = vmatpush1.bf16.msra.mxu0 %v1798
    %2363 = vmatprep.subr.bf16.mxu0 0
    %2364 = vmatpush1.bf16.msra.mxu0 %v1799
    %2365 = vmatprep.subr.bf16.mxu0 0
    %2366 = vmatpush1.bf16.msra.mxu0 %v1800
    %2367 = vmatprep.subr.bf16.mxu0 0
    %2368 = vmatpush1.bf16.msra.mxu0 %v1801
    %2369 = vmatprep.subr.bf16.mxu0 0
    %2370 = vmatpush1.bf16.msra.mxu0 %v1802
    %2371 = vmatprep.subr.bf16.mxu0 0
    %2372 = vmatpush1.bf16.msra.mxu0 %v1803
    %2373 = vmatprep.subr.bf16.mxu0 0
    %2374 = vmatpush1.bf16.msra.mxu0 %v1804
    %2375 = vmatprep.subr.bf16.mxu0 0
    %2376 = vmatpush1.bf16.msra.mxu0 %v1805
    %2377 = vmatprep.subr.bf16.mxu0 0
    %2378 = vmatpush1.bf16.msra.mxu0 %v1806
    %2379 = vmatprep.subr.bf16.mxu0 0
    %2380 = vmatpush1.bf16.msra.mxu0 %v1807
    %2381 = vmatprep.subr.bf16.mxu0 0
    %2382 = vmatpush1.bf16.msra.mxu0 %v1808
    %2383 = vmatprep.subr.bf16.mxu0 0
    %2384 = vmatpush1.bf16.msra.mxu0 %v1809
    %2385 = vmatprep.subr.bf16.mxu0 0
    %2386 = vmatpush1.bf16.msra.mxu0 %v1810
    %2387 = vmatprep.subr.bf16.mxu0 0
    %2388 = vmatpush1.bf16.msra.mxu0 %v1811
    %2389 = vmatprep.subr.bf16.mxu0 0
    %2390 = vmatpush1.bf16.msra.mxu0 %v1812
    %2391 = vmatprep.mubr.bf16.mxu0 %v682
    %2392 = vmatmul.mubr.bf16.gmra.mrb[0].mxu0 %v681
    %v2393 = vpop.f32.mrb[0].mxu0
    %v2394 = vadd.f32 %v2353, %v2393
    %v2395 = vpop.f32.mrb[0].mxu0
    %v2396 = vpop.f32.mrb[0].mxu0
    %v2397 = vadd.f32 %v2356, %v2396
    %v2398 = vpop.f32.mrb[0].mxu0
    %2399 = vdwg.mxu0
    %2400 = vmatprep.subr.bf16.mxu0 0
    %2401 = vmatpush1.bf16.msra.mxu0 %v1813
    %2402 = vmatprep.subr.bf16.mxu0 0
    %2403 = vmatpush1.bf16.msra.mxu0 %v1814
    %2404 = vmatprep.subr.bf16.mxu0 0
    %2405 = vmatpush1.bf16.msra.mxu0 %v1815
    %2406 = vmatprep.subr.bf16.mxu0 0
    %2407 = vmatpush1.bf16.msra.mxu0 %v1816
    %2408 = vmatprep.subr.bf16.mxu0 0
    %2409 = vmatpush1.bf16.msra.mxu0 %v1817
    %2410 = vmatprep.subr.bf16.mxu0 0
    %2411 = vmatpush1.bf16.msra.mxu0 %v1818
    %2412 = vmatprep.subr.bf16.mxu0 0
    %2413 = vmatpush1.bf16.msra.mxu0 %v1819
    %2414 = vmatprep.subr.bf16.mxu0 0
    %2415 = vmatpush1.bf16.msra.mxu0 %v1820
    %2416 = vmatprep.subr.bf16.mxu0 0
    %2417 = vmatpush1.bf16.msra.mxu0 %v1821
    %2418 = vmatprep.subr.bf16.mxu0 0
    %2419 = vmatpush1.bf16.msra.mxu0 %v1822
    %2420 = vmatprep.subr.bf16.mxu0 0
    %2421 = vmatpush1.bf16.msra.mxu0 %v1823
    %2422 = vmatprep.subr.bf16.mxu0 0
    %2423 = vmatpush1.bf16.msra.mxu0 %v1824
    %2424 = vmatprep.subr.bf16.mxu0 0
    %2425 = vmatpush1.bf16.msra.mxu0 %v1825
    %2426 = vmatprep.subr.bf16.mxu0 0
    %2427 = vmatpush1.bf16.msra.mxu0 %v1826
    %2428 = vmatprep.subr.bf16.mxu0 0
    %2429 = vmatpush1.bf16.msra.mxu0 %v1827
    %2430 = vmatprep.subr.bf16.mxu0 0
    %2431 = vmatpush1.bf16.msra.mxu0 %v1828
    %2432 = vmatprep.mubr.bf16.mxu0 %v684
    %2433 = vmatmul.mubr.bf16.gmra.mrb[0].mxu0 %v683
    %v2434 = vpop.f32.mrb[0].mxu0
    %v2435 = vadd.f32 %v2394, %v2434
    %v2436 = vpop.f32.mrb[0].mxu0
    %v2437 = vpop.f32.mrb[0].mxu0
    %v2438 = vadd.f32 %v2397, %v2437
    %v2439 = vpop.f32.mrb[0].mxu0
    %2440 = vdwg.mxu0
    %2441 = vmatprep.subr.bf16.mxu0 0
    %2442 = vmatpush1.bf16.msra.mxu0 %v1829
    %2443 = vmatprep.subr.bf16.mxu0 0
    %2444 = vmatpush1.bf16.msra.mxu0 %v1830
    %2445 = vmatprep.subr.bf16.mxu0 0
    %2446 = vmatpush1.bf16.msra.mxu0 %v1831
    %2447 = vmatprep.subr.bf16.mxu0 0
    %2448 = vmatpush1.bf16.msra.mxu0 %v1832
    %2449 = vmatprep.subr.bf16.mxu0 0
    %2450 = vmatpush1.bf16.msra.mxu0 %v1833
    %2451 = vmatprep.subr.bf16.mxu0 0
    %2452 = vmatpush1.bf16.msra.mxu0 %v1834
    %2453 = vmatprep.subr.bf16.mxu0 0
    %2454 = vmatpush1.bf16.msra.mxu0 %v1835
    %2455 = vmatprep.subr.bf16.mxu0 0
    %2456 = vmatpush1.bf16.msra.mxu0 %v1836
    %2457 = vmatprep.subr.bf16.mxu0 0
    %2458 = vmatpush1.bf16.msra.mxu0 %v1837
    %2459 = vmatprep.subr.bf16.mxu0 0
    %2460 = vmatpush1.bf16.msra.mxu0 %v1838
    %2461 = vmatprep.subr.bf16.mxu0 0
    %2462 = vmatpush1.bf16.msra.mxu0 %v1839
    %2463 = vmatprep.subr.bf16.mxu0 0
    %2464 = vmatpush1.bf16.msra.mxu0 %v1840
    %2465 = vmatprep.subr.bf16.mxu0 0
    %2466 = vmatpush1.bf16.msra.mxu0 %v1841
    %2467 = vmatprep.subr.bf16.mxu0 0
    %2468 = vmatpush1.bf16.msra.mxu0 %v1842
    %2469 = vmatprep.subr.bf16.mxu0 0
    %2470 = vmatpush1.bf16.msra.mxu0 %v1843
    %2471 = vmatprep.subr.bf16.mxu0 0
    %2472 = vmatpush1.bf16.msra.mxu0 %v1844
    %2473 = vmatprep.mubr.bf16.mxu0 %v686
    %2474 = vmatmul.mubr.bf16.gmra.mrb[0].mxu0 %v685
    %v2475 = vpop.f32.mrb[0].mxu0
    %v2476 = vadd.f32 %v2435, %v2475
    %v2477 = vpop.f32.mrb[0].mxu0
    %v2478 = vpop.f32.mrb[0].mxu0
    %v2479 = vadd.f32 %v2438, %v2478
    %v2480 = vpop.f32.mrb[0].mxu0
    %2481 = vdwg.mxu0
    %2482 = vmatprep.subr.bf16.mxu0 0
    %2483 = vmatpush1.bf16.msra.mxu0 %v1845
    %2484 = vmatprep.subr.bf16.mxu0 0
    %2485 = vmatpush1.bf16.msra.mxu0 %v1846
    %2486 = vmatprep.subr.bf16.mxu0 0
    %2487 = vmatpush1.bf16.msra.mxu0 %v1847
    %2488 = vmatprep.subr.bf16.mxu0 0
    %2489 = vmatpush1.bf16.msra.mxu0 %v1848
    %2490 = vmatprep.subr.bf16.mxu0 0
    %2491 = vmatpush1.bf16.msra.mxu0 %v1849
    %2492 = vmatprep.subr.bf16.mxu0 0
    %2493 = vmatpush1.bf16.msra.mxu0 %v1850
    %2494 = vmatprep.subr.bf16.mxu0 0
    %2495 = vmatpush1.bf16.msra.mxu0 %v1851
    %2496 = vmatprep.subr.bf16.mxu0 0
    %2497 = vmatpush1.bf16.msra.mxu0 %v1852
    %2498 = vmatprep.subr.bf16.mxu0 0
    %2499 = vmatpush1.bf16.msra.mxu0 %v1853
    %2500 = vmatprep.subr.bf16.mxu0 0
    %2501 = vmatpush1.bf16.msra.mxu0 %v1854
    %2502 = vmatprep.subr.bf16.mxu0 0
    %2503 = vmatpush1.bf16.msra.mxu0 %v1855
    %2504 = vmatprep.subr.bf16.mxu0 0
    %2505 = vmatpush1.bf16.msra.mxu0 %v1856
    %2506 = vmatprep.subr.bf16.mxu0 0
    %2507 = vmatpush1.bf16.msra.mxu0 %v1857
    %2508 = vmatprep.subr.bf16.mxu0 0
    %2509 = vmatpush1.bf16.msra.mxu0 %v1858
    %2510 = vmatprep.subr.bf16.mxu0 0
    %2511 = vmatpush1.bf16.msra.mxu0 %v1859
    %2512 = vmatprep.subr.bf16.mxu0 0
    %2513 = vmatpush1.bf16.msra.mxu0 %v1860
    %2514 = vmatprep.mubr.bf16.mxu0 %v688
    %2515 = vmatmul.mubr.bf16.gmra.mrb[0].mxu0 %v687
    %v2516 = vpop.f32.mrb[0].mxu0
    %v2517 = vadd.f32 %v2476, %v2516
    %v2518 = vpop.f32.mrb[0].mxu0
    %v2519 = vpop.f32.mrb[0].mxu0
    %v2520 = vadd.f32 %v2479, %v2519
    %v2521 = vpop.f32.mrb[0].mxu0
    %2522 = vdwg.mxu0
    %2523 = vmatprep.subr.bf16.mxu0 0
    %2524 = vmatpush1.bf16.msra.mxu0 %v1861
    %2525 = vmatprep.subr.bf16.mxu0 0
    %2526 = vmatpush1.bf16.msra.mxu0 %v1862
    %2527 = vmatprep.subr.bf16.mxu0 0
    %2528 = vmatpush1.bf16.msra.mxu0 %v1863
    %2529 = vmatprep.subr.bf16.mxu0 0
    %2530 = vmatpush1.bf16.msra.mxu0 %v1864
    %2531 = vmatprep.subr.bf16.mxu0 0
    %2532 = vmatpush1.bf16.msra.mxu0 %v1865
    %2533 = vmatprep.subr.bf16.mxu0 0
    %2534 = vmatpush1.bf16.msra.mxu0 %v1866
    %2535 = vmatprep.subr.bf16.mxu0 0
    %2536 = vmatpush1.bf16.msra.mxu0 %v1867
    %2537 = vmatprep.subr.bf16.mxu0 0
    %2538 = vmatpush1.bf16.msra.mxu0 %v1868
    %2539 = vmatprep.subr.bf16.mxu0 0
    %2540 = vmatpush1.bf16.msra.mxu0 %v1869
    %2541 = vmatprep.subr.bf16.mxu0 0
    %2542 = vmatpush1.bf16.msra.mxu0 %v1870
    %2543 = vmatprep.subr.bf16.mxu0 0
    %2544 = vmatpush1.bf16.msra.mxu0 %v1871
    %2545 = vmatprep.subr.bf16.mxu0 0
    %2546 = vmatpush1.bf16.msra.mxu0 %v1872
    %2547 = vmatprep.subr.bf16.mxu0 0
    %2548 = vmatpush1.bf16.msra.mxu0 %v1873
    %2549 = vmatprep.subr.bf16.mxu0 0
    %2550 = vmatpush1.bf16.msra.mxu0 %v1874
    %2551 = vmatprep.subr.bf16.mxu0 0
    %2552 = vmatpush1.bf16.msra.mxu0 %v1875
    %2553 = vmatprep.subr.bf16.mxu0 0
    %2554 = vmatpush1.bf16.msra.mxu0 %v1876
    %2555 = vmatprep.mubr.bf16.mxu0 %v690
    %2556 = vmatmul.mubr.bf16.gmra.mrb[0].mxu0 %v689
    %v2557 = vpop.f32.mrb[0].mxu0
    %v2558 = vadd.f32 %v2517, %v2557
    %v2559 = vpop.f32.mrb[0].mxu0
    %v2560 = vpop.f32.mrb[0].mxu0
    %v2561 = vadd.f32 %v2520, %v2560
    %v2562 = vpop.f32.mrb[0].mxu0
    %2563 = vdwg.mxu0
    %2564 = vmatprep.subr.bf16.mxu0 0
    %2565 = vmatpush1.bf16.msra.mxu0 %v1877
    %2566 = vmatprep.subr.bf16.mxu0 0
    %2567 = vmatpush1.bf16.msra.mxu0 %v1878
    %2568 = vmatprep.subr.bf16.mxu0 0
    %2569 = vmatpush1.bf16.msra.mxu0 %v1879
    %2570 = vmatprep.subr.bf16.mxu0 0
    %2571 = vmatpush1.bf16.msra.mxu0 %v1880
    %2572 = vmatprep.subr.bf16.mxu0 0
    %2573 = vmatpush1.bf16.msra.mxu0 %v1881
    %2574 = vmatprep.subr.bf16.mxu0 0
    %2575 = vmatpush1.bf16.msra.mxu0 %v1882
    %2576 = vmatprep.subr.bf16.mxu0 0
    %2577 = vmatpush1.bf16.msra.mxu0 %v1883
    %2578 = vmatprep.subr.bf16.mxu0 0
    %2579 = vmatpush1.bf16.msra.mxu0 %v1884
    %2580 = vmatprep.subr.bf16.mxu0 0
    %2581 = vmatpush1.bf16.msra.mxu0 %v1885
    %2582 = vmatprep.subr.bf16.mxu0 0
    %2583 = vmatpush1.bf16.msra.mxu0 %v1886
    %2584 = vmatprep.subr.bf16.mxu0 0
    %2585 = vmatpush1.bf16.msra.mxu0 %v1887
    %2586 = vmatprep.subr.bf16.mxu0 0
    %2587 = vmatpush1.bf16.msra.mxu0 %v1888
    %2588 = vmatprep.subr.bf16.mxu0 0
    %2589 = vmatpush1.bf16.msra.mxu0 %v1889
    %2590 = vmatprep.subr.bf16.mxu0 0
    %2591 = vmatpush1.bf16.msra.mxu0 %v1890
    %2592 = vmatprep.subr.bf16.mxu0 0
    %2593 = vmatpush1.bf16.msra.mxu0 %v1891
    %2594 = vmatprep.subr.bf16.mxu0 0
    %2595 = vmatpush1.bf16.msra.mxu0 %v1892
    %2596 = vmatprep.mubr.bf16.mxu0 %v692
    %2597 = vmatmul.mubr.bf16.gmra.mrb[0].mxu0 %v691
    %v2598 = vpop.f32.mrb[0].mxu0
    %v2599 = vadd.f32 %v2558, %v2598
    %v2600 = vpop.f32.mrb[0].mxu0
    %v2601 = vpop.f32.mrb[0].mxu0
    %v2602 = vadd.f32 %v2561, %v2601
    %v2603 = vpop.f32.mrb[0].mxu0
    %2604 = vdwg.mxu0
    %2605 = vmatprep.subr.bf16.mxu0 0
    %2606 = vmatpush1.bf16.msra.mxu0 %v1893
    %2607 = vmatprep.subr.bf16.mxu0 0
    %2608 = vmatpush1.bf16.msra.mxu0 %v1894
    %2609 = vmatprep.subr.bf16.mxu0 0
    %2610 = vmatpush1.bf16.msra.mxu0 %v1895
    %2611 = vmatprep.subr.bf16.mxu0 0
    %2612 = vmatpush1.bf16.msra.mxu0 %v1896
    %2613 = vmatprep.subr.bf16.mxu0 0
    %2614 = vmatpush1.bf16.msra.mxu0 %v1897
    %2615 = vmatprep.subr.bf16.mxu0 0
    %2616 = vmatpush1.bf16.msra.mxu0 %v1898
    %2617 = vmatprep.subr.bf16.mxu0 0
    %2618 = vmatpush1.bf16.msra.mxu0 %v1899
    %2619 = vmatprep.subr.bf16.mxu0 0
    %2620 = vmatpush1.bf16.msra.mxu0 %v1900
    %2621 = vmatprep.subr.bf16.mxu0 0
    %2622 = vmatpush1.bf16.msra.mxu0 %v1901
    %2623 = vmatprep.subr.bf16.mxu0 0
    %2624 = vmatpush1.bf16.msra.mxu0 %v1902
    %2625 = vmatprep.subr.bf16.mxu0 0
    %2626 = vmatpush1.bf16.msra.mxu0 %v1903
    %2627 = vmatprep.subr.bf16.mxu0 0
    %2628 = vmatpush1.bf16.msra.mxu0 %v1904
    %2629 = vmatprep.subr.bf16.mxu0 0
    %2630 = vmatpush1.bf16.msra.mxu0 %v1905
    %2631 = vmatprep.subr.bf16.mxu0 0
    %2632 = vmatpush1.bf16.msra.mxu0 %v1906
    %2633 = vmatprep.subr.bf16.mxu0 0
    %2634 = vmatpush1.bf16.msra.mxu0 %v1907
    %2635 = vmatprep.subr.bf16.mxu0 0
    %2636 = vmatpush1.bf16.msra.mxu0 %v1908
    %2637 = vmatprep.mubr.bf16.mxu0 %v694
    %2638 = vmatmul.mubr.bf16.gmra.mrb[0].mxu0 %v693
    %v2639 = vpop.f32.mrb[0].mxu0
    %v2640 = vadd.f32 %v2599, %v2639
    %v2641 = vpop.f32.mrb[0].mxu0
    %v2642 = vpop.f32.mrb[0].mxu0
    %v2643 = vadd.f32 %v2602, %v2642
    %v2644 = vpop.f32.mrb[0].mxu0
    %2645 = vdwg.mxu0
    %2646 = vmatprep.subr.bf16.mxu0 0
    %2647 = vmatpush1.bf16.msra.mxu0 %v1909
    %2648 = vmatprep.subr.bf16.mxu0 0
    %2649 = vmatpush1.bf16.msra.mxu0 %v1910
    %2650 = vmatprep.subr.bf16.mxu0 0
    %2651 = vmatpush1.bf16.msra.mxu0 %v1911
    %2652 = vmatprep.subr.bf16.mxu0 0
    %2653 = vmatpush1.bf16.msra.mxu0 %v1912
    %2654 = vmatprep.subr.bf16.mxu0 0
    %2655 = vmatpush1.bf16.msra.mxu0 %v1913
    %2656 = vmatprep.subr.bf16.mxu0 0
    %2657 = vmatpush1.bf16.msra.mxu0 %v1914
    %2658 = vmatprep.subr.bf16.mxu0 0
    %2659 = vmatpush1.bf16.msra.mxu0 %v1915
    %2660 = vmatprep.subr.bf16.mxu0 0
    %2661 = vmatpush1.bf16.msra.mxu0 %v1916
    %2662 = vmatprep.subr.bf16.mxu0 0
    %2663 = vmatpush1.bf16.msra.mxu0 %v1917
    %2664 = vmatprep.subr.bf16.mxu0 0
    %2665 = vmatpush1.bf16.msra.mxu0 %v1918
    %2666 = vmatprep.subr.bf16.mxu0 0
    %2667 = vmatpush1.bf16.msra.mxu0 %v1919
    %2668 = vmatprep.subr.bf16.mxu0 0
    %2669 = vmatpush1.bf16.msra.mxu0 %v1920
    %2670 = vmatprep.subr.bf16.mxu0 0
    %2671 = vmatpush1.bf16.msra.mxu0 %v1921
    %2672 = vmatprep.subr.bf16.mxu0 0
    %2673 = vmatpush1.bf16.msra.mxu0 %v1922
    %2674 = vmatprep.subr.bf16.mxu0 0
    %2675 = vmatpush1.bf16.msra.mxu0 %v1923
    %2676 = vmatprep.subr.bf16.mxu0 0
    %2677 = vmatpush1.bf16.msra.mxu0 %v1924
    %2678 = vmatprep.mubr.bf16.mxu0 %v696
    %2679 = vmatmul.mubr.bf16.gmra.mrb[0].mxu0 %v695
    %v2680 = vpop.f32.mrb[0].mxu0
    %v2681 = vadd.f32 %v2640, %v2680
    %v2682 = vpop.f32.mrb[0].mxu0
    %v2683 = vpop.f32.mrb[0].mxu0
    %v2684 = vadd.f32 %v2643, %v2683
    %v2685 = vpop.f32.mrb[0].mxu0
    %2686 = vdwg.mxu0
    %2687 = vmatprep.subr.bf16.mxu0 0
    %2688 = vmatpush1.bf16.msra.mxu0 %v1925
    %2689 = vmatprep.subr.bf16.mxu0 0
    %2690 = vmatpush1.bf16.msra.mxu0 %v1926
    %2691 = vmatprep.subr.bf16.mxu0 0
    %2692 = vmatpush1.bf16.msra.mxu0 %v1927
    %2693 = vmatprep.subr.bf16.mxu0 0
    %2694 = vmatpush1.bf16.msra.mxu0 %v1928
    %2695 = vmatprep.subr.bf16.mxu0 0
    %2696 = vmatpush1.bf16.msra.mxu0 %v1929
    %2697 = vmatprep.subr.bf16.mxu0 0
    %2698 = vmatpush1.bf16.msra.mxu0 %v1930
    %2699 = vmatprep.subr.bf16.mxu0 0
    %2700 = vmatpush1.bf16.msra.mxu0 %v1931
    %2701 = vmatprep.subr.bf16.mxu0 0
    %2702 = vmatpush1.bf16.msra.mxu0 %v1932
    %2703 = vmatprep.subr.bf16.mxu0 0
    %2704 = vmatpush1.bf16.msra.mxu0 %v1933
    %2705 = vmatprep.subr.bf16.mxu0 0
    %2706 = vmatpush1.bf16.msra.mxu0 %v1934
    %2707 = vmatprep.subr.bf16.mxu0 0
    %2708 = vmatpush1.bf16.msra.mxu0 %v1935
    %2709 = vmatprep.subr.bf16.mxu0 0
    %2710 = vmatpush1.bf16.msra.mxu0 %v1936
    %2711 = vmatprep.subr.bf16.mxu0 0
    %2712 = vmatpush1.bf16.msra.mxu0 %v1937
    %2713 = vmatprep.subr.bf16.mxu0 0
    %2714 = vmatpush1.bf16.msra.mxu0 %v1938
    %2715 = vmatprep.subr.bf16.mxu0 0
    %2716 = vmatpush1.bf16.msra.mxu0 %v1939
    %2717 = vmatprep.subr.bf16.mxu0 0
    %2718 = vmatpush1.bf16.msra.mxu0 %v1940
    %2719 = vmatprep.mubr.bf16.mxu0 %v698
    %2720 = vmatmul.mubr.bf16.gmra.mrb[0].mxu0 %v697
    %v2721 = vpop.f32.mrb[0].mxu0
    %v2722 = vadd.f32 %v2681, %v2721
    %v2723 = vpop.f32.mrb[0].mxu0
    %v2724 = vpop.f32.mrb[0].mxu0
    %v2725 = vadd.f32 %v2684, %v2724
    %v2726 = vpop.f32.mrb[0].mxu0
    %2727 = vdwg.mxu0
    %2728 = vmatprep.subr.bf16.mxu0 0
    %2729 = vmatpush1.bf16.msra.mxu0 %v1941
    %2730 = vmatprep.subr.bf16.mxu0 0
    %2731 = vmatpush1.bf16.msra.mxu0 %v1942
    %2732 = vmatprep.subr.bf16.mxu0 0
    %2733 = vmatpush1.bf16.msra.mxu0 %v1943
    %2734 = vmatprep.subr.bf16.mxu0 0
    %2735 = vmatpush1.bf16.msra.mxu0 %v1944
    %2736 = vmatprep.subr.bf16.mxu0 0
    %2737 = vmatpush1.bf16.msra.mxu0 %v1945
    %2738 = vmatprep.subr.bf16.mxu0 0
    %2739 = vmatpush1.bf16.msra.mxu0 %v1946
    %2740 = vmatprep.subr.bf16.mxu0 0
    %2741 = vmatpush1.bf16.msra.mxu0 %v1947
    %2742 = vmatprep.subr.bf16.mxu0 0
    %2743 = vmatpush1.bf16.msra.mxu0 %v1948
    %2744 = vmatprep.subr.bf16.mxu0 0
    %2745 = vmatpush1.bf16.msra.mxu0 %v1949
    %2746 = vmatprep.subr.bf16.mxu0 0
    %2747 = vmatpush1.bf16.msra.mxu0 %v1950
    %2748 = vmatprep.subr.bf16.mxu0 0
    %2749 = vmatpush1.bf16.msra.mxu0 %v1951
    %2750 = vmatprep.subr.bf16.mxu0 0
    %2751 = vmatpush1.bf16.msra.mxu0 %v1952
    %2752 = vmatprep.subr.bf16.mxu0 0
    %2753 = vmatpush1.bf16.msra.mxu0 %v1953
    %2754 = vmatprep.subr.bf16.mxu0 0
    %2755 = vmatpush1.bf16.msra.mxu0 %v1954
    %2756 = vmatprep.subr.bf16.mxu0 0
    %2757 = vmatpush1.bf16.msra.mxu0 %v1955
    %2758 = vmatprep.subr.bf16.mxu0 0
    %2759 = vmatpush1.bf16.msra.mxu0 %v1956
    %2760 = vmatprep.mubr.bf16.mxu0 %v700
    %2761 = vmatmul.mubr.bf16.gmra.mrb[0].mxu0 %v699
    %v2762 = vpop.f32.mrb[0].mxu0
    %v2763 = vadd.f32 %v2722, %v2762
    %v2764 = vpop.f32.mrb[0].mxu0
    %v2765 = vpop.f32.mrb[0].mxu0
    %v2766 = vadd.f32 %v2725, %v2765
    %v2767 = vpop.f32.mrb[0].mxu0
    %2768 = vdwg.mxu0
    %2769 = vmatprep.subr.bf16.mxu0 0
    %2770 = vmatpush1.bf16.msra.mxu0 %v1957
    %2771 = vmatprep.subr.bf16.mxu0 0
    %2772 = vmatpush1.bf16.msra.mxu0 %v1958
    %2773 = vmatprep.subr.bf16.mxu0 0
    %2774 = vmatpush1.bf16.msra.mxu0 %v1959
    %2775 = vmatprep.subr.bf16.mxu0 0
    %2776 = vmatpush1.bf16.msra.mxu0 %v1960
    %2777 = vmatprep.subr.bf16.mxu0 0
    %2778 = vmatpush1.bf16.msra.mxu0 %v1961
    %2779 = vmatprep.subr.bf16.mxu0 0
    %2780 = vmatpush1.bf16.msra.mxu0 %v1962
    %2781 = vmatprep.subr.bf16.mxu0 0
    %2782 = vmatpush1.bf16.msra.mxu0 %v1963
    %2783 = vmatprep.subr.bf16.mxu0 0
    %2784 = vmatpush1.bf16.msra.mxu0 %v1964
    %2785 = vmatprep.subr.bf16.mxu0 0
    %2786 = vmatpush1.bf16.msra.mxu0 %v1965
    %2787 = vmatprep.subr.bf16.mxu0 0
    %2788 = vmatpush1.bf16.msra.mxu0 %v1966
    %2789 = vmatprep.subr.bf16.mxu0 0
    %2790 = vmatpush1.bf16.msra.mxu0 %v1967
    %2791 = vmatprep.subr.bf16.mxu0 0
    %2792 = vmatpush1.bf16.msra.mxu0 %v1968
    %2793 = vmatprep.subr.bf16.mxu0 0
    %2794 = vmatpush1.bf16.msra.mxu0 %v1969
    %2795 = vmatprep.subr.bf16.mxu0 0
    %2796 = vmatpush1.bf16.msra.mxu0 %v1970
    %2797 = vmatprep.subr.bf16.mxu0 0
    %2798 = vmatpush1.bf16.msra.mxu0 %v1971
    %2799 = vmatprep.subr.bf16.mxu0 0
    %2800 = vmatpush1.bf16.msra.mxu0 %v1972
    %2801 = vmatprep.mubr.bf16.mxu0 %v702
    %2802 = vmatmul.mubr.bf16.gmra.mrb[0].mxu0 %v701
    %v2803 = vpop.f32.mrb[0].mxu0
    %v2804 = vadd.f32 %v2763, %v2803
    %v2805 = vpop.f32.mrb[0].mxu0
    %v2806 = vpop.f32.mrb[0].mxu0
    %v2807 = vadd.f32 %v2766, %v2806
    %v2808 = vpop.f32.mrb[0].mxu0
    %2809 = vdwg.mxu0
    %2810 = vmatprep.subr.bf16.mxu0 0
    %2811 = vmatpush1.bf16.msra.mxu0 %v1973
    %2812 = vmatprep.subr.bf16.mxu0 0
    %2813 = vmatpush1.bf16.msra.mxu0 %v1974
    %2814 = vmatprep.subr.bf16.mxu0 0
    %2815 = vmatpush1.bf16.msra.mxu0 %v1975
    %2816 = vmatprep.subr.bf16.mxu0 0
    %2817 = vmatpush1.bf16.msra.mxu0 %v1976
    %2818 = vmatprep.subr.bf16.mxu0 0
    %2819 = vmatpush1.bf16.msra.mxu0 %v1977
    %2820 = vmatprep.subr.bf16.mxu0 0
    %2821 = vmatpush1.bf16.msra.mxu0 %v1978
    %2822 = vmatprep.subr.bf16.mxu0 0
    %2823 = vmatpush1.bf16.msra.mxu0 %v1979
    %2824 = vmatprep.subr.bf16.mxu0 0
    %2825 = vmatpush1.bf16.msra.mxu0 %v1980
    %2826 = vmatprep.subr.bf16.mxu0 0
    %2827 = vmatpush1.bf16.msra.mxu0 %v1981
    %2828 = vmatprep.subr.bf16.mxu0 0
    %2829 = vmatpush1.bf16.msra.mxu0 %v1982
    %2830 = vmatprep.subr.bf16.mxu0 0
    %2831 = vmatpush1.bf16.msra.mxu0 %v1983
    %2832 = vmatprep.subr.bf16.mxu0 0
    %2833 = vmatpush1.bf16.msra.mxu0 %v1984
    %2834 = vmatprep.subr.bf16.mxu0 0
    %2835 = vmatpush1.bf16.msra.mxu0 %v1985
    %2836 = vmatprep.subr.bf16.mxu0 0
    %2837 = vmatpush1.bf16.msra.mxu0 %v1986
    %2838 = vmatprep.subr.bf16.mxu0 0
    %2839 = vmatpush1.bf16.msra.mxu0 %v1987
    %2840 = vmatprep.subr.bf16.mxu0 0
    %2841 = vmatpush1.bf16.msra.mxu0 %v1988
    %2842 = vmatprep.mubr.bf16.mxu0 %v704
    %2843 = vmatmul.mubr.bf16.gmra.mrb[0].mxu0 %v703
    %v2844 = vpop.f32.mrb[0].mxu0
    %v2845 = vadd.f32 %v2804, %v2844
    %v2846 = vpop.f32.mrb[0].mxu0
    %v2847 = vpop.f32.mrb[0].mxu0
    %v2848 = vadd.f32 %v2807, %v2847
    %v2849 = vpop.f32.mrb[0].mxu0
    %2850 = vdwg.mxu0
    %2851 = vmatprep.subr.bf16.mxu0 0
    %2852 = vmatpush1.bf16.msra.mxu0 %v1989
    %2853 = vmatprep.subr.bf16.mxu0 0
    %2854 = vmatpush1.bf16.msra.mxu0 %v1990
    %2855 = vmatprep.subr.bf16.mxu0 0
    %2856 = vmatpush1.bf16.msra.mxu0 %v1991
    %2857 = vmatprep.subr.bf16.mxu0 0
    %2858 = vmatpush1.bf16.msra.mxu0 %v1992
    %2859 = vmatprep.subr.bf16.mxu0 0
    %2860 = vmatpush1.bf16.msra.mxu0 %v1993
    %2861 = vmatprep.subr.bf16.mxu0 0
    %2862 = vmatpush1.bf16.msra.mxu0 %v1994
    %2863 = vmatprep.subr.bf16.mxu0 0
    %2864 = vmatpush1.bf16.msra.mxu0 %v1995
    %2865 = vmatprep.subr.bf16.mxu0 0
    %2866 = vmatpush1.bf16.msra.mxu0 %v1996
    %2867 = vmatprep.subr.bf16.mxu0 0
    %2868 = vmatpush1.bf16.msra.mxu0 %v1997
    %2869 = vmatprep.subr.bf16.mxu0 0
    %2870 = vmatpush1.bf16.msra.mxu0 %v1998
    %2871 = vmatprep.subr.bf16.mxu0 0
    %2872 = vmatpush1.bf16.msra.mxu0 %v1999
    %2873 = vmatprep.subr.bf16.mxu0 0
    %2874 = vmatpush1.bf16.msra.mxu0 %v2000
    %2875 = vmatprep.subr.bf16.mxu0 0
    %2876 = vmatpush1.bf16.msra.mxu0 %v2001
    %2877 = vmatprep.subr.bf16.mxu0 0
    %2878 = vmatpush1.bf16.msra.mxu0 %v2002
    %2879 = vmatprep.subr.bf16.mxu0 0
    %2880 = vmatpush1.bf16.msra.mxu0 %v2003
    %2881 = vmatprep.subr.bf16.mxu0 0
    %2882 = vmatpush1.bf16.msra.mxu0 %v2004
    %2883 = vmatprep.mubr.bf16.mxu0 %v706
    %2884 = vmatmul.mubr.bf16.gmra.mrb[0].mxu0 %v705
    %v2885 = vpop.f32.mrb[0].mxu0
    %v2886 = vadd.f32 %v2845, %v2885
    %v2887 = vpop.f32.mrb[0].mxu0
    %v2888 = vpop.f32.mrb[0].mxu0
    %v2889 = vadd.f32 %v2848, %v2888
    %v2890 = vpop.f32.mrb[0].mxu0
    %2891 = vdwg.mxu0
    %2892 = vmatprep.subr.bf16.mxu0 0
    %2893 = vmatpush1.bf16.msra.mxu0 %v2005
    %2894 = vmatprep.subr.bf16.mxu0 0
    %2895 = vmatpush1.bf16.msra.mxu0 %v2006
    %2896 = vmatprep.subr.bf16.mxu0 0
    %2897 = vmatpush1.bf16.msra.mxu0 %v2007
    %2898 = vmatprep.subr.bf16.mxu0 0
    %2899 = vmatpush1.bf16.msra.mxu0 %v2008
    %2900 = vmatprep.subr.bf16.mxu0 0
    %2901 = vmatpush1.bf16.msra.mxu0 %v2009
    %2902 = vmatprep.subr.bf16.mxu0 0
    %2903 = vmatpush1.bf16.msra.mxu0 %v2010
    %2904 = vmatprep.subr.bf16.mxu0 0
    %2905 = vmatpush1.bf16.msra.mxu0 %v2011
    %2906 = vmatprep.subr.bf16.mxu0 0
    %2907 = vmatpush1.bf16.msra.mxu0 %v2012
    %2908 = vmatprep.subr.bf16.mxu0 0
    %2909 = vmatpush1.bf16.msra.mxu0 %v2013
    %2910 = vmatprep.subr.bf16.mxu0 0
    %2911 = vmatpush1.bf16.msra.mxu0 %v2014
    %2912 = vmatprep.subr.bf16.mxu0 0
    %2913 = vmatpush1.bf16.msra.mxu0 %v2015
    %2914 = vmatprep.subr.bf16.mxu0 0
    %2915 = vmatpush1.bf16.msra.mxu0 %v2016
    %2916 = vmatprep.subr.bf16.mxu0 0
    %2917 = vmatpush1.bf16.msra.mxu0 %v2017
    %2918 = vmatprep.subr.bf16.mxu0 0
    %2919 = vmatpush1.bf16.msra.mxu0 %v2018
    %2920 = vmatprep.subr.bf16.mxu0 0
    %2921 = vmatpush1.bf16.msra.mxu0 %v2019
    %2922 = vmatprep.subr.bf16.mxu0 0
    %2923 = vmatpush1.bf16.msra.mxu0 %v2020
    %2924 = vmatprep.mubr.bf16.mxu0 %v708
    %2925 = vmatmul.mubr.bf16.gmra.mrb[0].mxu0 %v707
    %v2926 = vpop.f32.mrb[0].mxu0
    %v2927 = vadd.f32 %v2886, %v2926
    %v2928 = vpop.f32.mrb[0].mxu0
    %v2929 = vpop.f32.mrb[0].mxu0
    %v2930 = vadd.f32 %v2889, %v2929
    %v2931 = vpop.f32.mrb[0].mxu0
    %2932 = vdwg.mxu0
    %v2933 = vadd.f32 %v35, %v2927
    %v2934 = vadd.f32 %v36, %v2930
    %2935 = vst [vmem:[%s3] sm:$0xff] %v2933
    %2936 = vst [vmem:[%s3 + $0x8] sm:$0xff] %v2934
    // Predicated region
    $region22: #{region_prop_forward.2} parent=1 // pred_check
      %p2937 = pneg %p29
    $region23: #{region_prop_forward.2} parent=1 // pred_check_branch
      %2939 = sbr.rel (%p2937) target = $region25
    $region24: #{region_prop_forward.2} parent=1 // pred_region
      %v2940 = vld [vmem:[%s3] sm:$0xff]
      %v2941 = vld [vmem:[%s3 + $0x8] sm:$0xff]
      %v2942 = vld [vmem:[%s2] sm:$0x1]
      %v2944 = vlaneseq
      %v2945 = vshrl.u32 %v2944, 7
      %v2946 = vsub.s32 0, %v2945
      %v2947 = vrot.slane %v2942, %v2946
      %v2949 = vadd.f32 %v2940, %v2947
      %v2950 = vadd.f32 %v2941, %v2947
      %v2951 = vxor.u32 %v2949, 2147483648
      %v2952 = vxor.u32 %v2950, 2147483648
      %v2953 = vmul.f32 %v2951, 1.442695
      %v2954 = vpow.pop %v2953
      %v2955 = vmul.f32 %v2952, 1.442695
      %v2956 = vpow.pop %v2955
      %v2957 = vadd.f32 %v2954, 1.0
      %v2958 = vadd.f32 %v2956, 1.0
      %v2959 = vrcp.pop %v2957
      %v2960 = vmul.f32 1.0, %v2959
      %v2961 = vrcp.pop %v2958
      %v2962 = vmul.f32 1.0, %v2961
      %2963 = vst [vmem:[%s3] sm:$0xff] %v2960
      %2964 = vst [vmem:[%s3 + $0x8] sm:$0xff] %v2962
    $region25: #{region_prop_forward.2} parent=1 // pred_fallthru
      _
    // Predicated region
    $region26: #{region_prop_forward.2} parent=1 // pred_check
      _
    $region27: #{region_prop_forward.2} parent=1 // pred_check_branch
      %2966 = sbr.rel (0) target = $region29
    $region28: #{region_prop_forward.2} parent=1 // pred_region
      _
    $region29: #{region_prop_forward.2} parent=1 // pred_fallthru
      _
    // Predicated region
    $region30: #{region_prop_forward.2} parent=1 // pred_check
      _
    $region31: #{region_prop_forward.2} parent=1 // pred_check_branch
      %2968 = sbr.rel (0) target = $region33
    $region32: #{region_prop_forward.2} parent=1 // pred_region
      _
    $region33: #{region_prop_forward.2} parent=1 // pred_fallthru
      _
    %2969 = vsyncpa [#allocation3], 1

</llo_original>
